<compile_context>
chip_gen: v6e
topology: v6e:2x2x1
jax: 0.10.0
libtpu: 0.0.40
codegen_flags: <defaults>
</compile_context>

<pallas_src>
import jax
import jax.numpy as jnp
from jax.experimental import pallas as pl
from jax.experimental.pallas import tpu as pltpu


def bottleneck_kernel(x_ref, w1_ref, b1_ref, w2_ref, b2_ref,
                      w3_ref, b3_ref, wse1_ref, wse2_ref,
                      out_ref, pad_ref, patch_ref, o3_ref):
    TB, H, W, Cin = x_ref.shape
    P = w1_ref.shape[1]
    C4 = w3_ref.shape[1]
    n_img = H * W
    M = TB * n_img

    # ---- conv1 1x1 (BN1 folded into w1) + bias + ReLU: (M,Cin)x(Cin,P) on MXU
    x2d = x_ref[...].reshape(M, Cin)                               # bf16
    o1 = jnp.dot(x2d, w1_ref[...], preferred_element_type=jnp.float32)
    o1 = jnp.maximum(o1 + b1_ref[...], 0.0)                        # f32 (M, P)
    o1b = o1.astype(jnp.bfloat16).reshape(TB, H, W, P)             # single cast

    # ---- conv2 3x3 stride=1 pad=1 via im2col staged in bf16 VMEM scratch.
    # Zero only the 1-pixel border of the pad scratch (interior fully
    # overwritten); done every step so per-core scratch reuse stays correct.
    zr = jnp.zeros((TB, 1, W + 2, P), jnp.bfloat16)
    zc = jnp.zeros((TB, H + 2, 1, P), jnp.bfloat16)
    pad_ref[:, pl.ds(0, 1), :, :] = zr
    pad_ref[:, pl.ds(H + 1, 1), :, :] = zr
    pad_ref[:, :, pl.ds(0, 1), :] = zc
    pad_ref[:, :, pl.ds(W + 1, 1), :] = zc
    pad_ref[:, pl.ds(1, H), pl.ds(1, W), :] = o1b

    # Stage the 9 shifted windows into lane-dense 128-wide column groups.
    for dy in range(3):
        for dx in range(3):
            win = pad_ref[:, pl.ds(dy, H), pl.ds(dx, W), :]        # bf16 (TB,H,W,P)
            patch_ref[:, pl.ds((dy * 3 + dx) * P, P)] = win.reshape(M, P)

    # Single K = 9*P matmul (one MRF drain on v5e/v6e).
    o2 = jnp.dot(patch_ref[...], w2_ref[...],
                 preferred_element_type=jnp.float32)
    o2 = jnp.maximum(o2 + b2_ref[...], 0.0)                        # f32 (M, P)

    # ---- conv3 1x1 (BN3 folded into w3) + bias -> staged in f32 VMEM scratch
    o3 = jnp.dot(o2.astype(jnp.bfloat16), w3_ref[...],
                 preferred_element_type=jnp.float32)
    o3_ref[...] = o3 + b3_ref[...]                                 # f32 (M, C4)

    # ---- SE: per-image global average pool -> fc -> ReLU -> fc -> sigmoid
    y = jnp.mean(o3_ref[...].reshape(TB, n_img, C4), axis=1)       # f32 (TB, C4)
    h = jnp.dot(y.astype(jnp.bfloat16), wse1_ref[...],
                preferred_element_type=jnp.float32)
    h = jnp.maximum(h, 0.0)
    z = jnp.dot(h.astype(jnp.bfloat16), wse2_ref[...],
                preferred_element_type=jnp.float32)
    gate = 1.0 / (1.0 + jnp.exp(-z))                               # exact sigmoid

    # ---- SE gate * conv3 + identity residual + ReLU, bf16 store
    o3v = o3_ref[...].reshape(TB, n_img, C4)
    res = x_ref[...].reshape(TB, n_img, C4).astype(jnp.float32)
    out = jnp.maximum(o3v * gate.reshape(TB, 1, C4) + res, 0.0)
    out_ref[...] = out.reshape(TB, H, W, C4).astype(out_ref.dtype)


def bottleneck_forward_nhwc(x_nhwc, params):
    B, H, W, Cin = x_nhwc.shape
    P = params['w1'].shape[1]
    C4 = params['w3'].shape[1]
    hid = params['wse1'].shape[1]
    assert Cin == C4, "identity shortcut requires inplanes == planes*expansion"
    # Layout guards: keep every in-kernel reshape a free relabel and every
    # matmul / output store lane-dense.
    assert Cin % 128 == 0 and P % 128 == 0 and C4 % 128 == 0, \
        "channel dims must be multiples of 128 (TPU lane width)"
    assert W % 8 == 0, "W must be a multiple of 8 (TPU sublane width)"

    n_img = H * W
    # Pack TB images per grid step so matmul M = TB*H*W fills the MXU height
    # (targets 256 rows for v6e/v7x, >=128 for v5e), bounded so scratch stays
    # comfortably inside VMEM.
    TB = 1
    while (TB < B and B % (2 * TB) == 0 and TB * n_img < 256
           and 2 * TB * n_img <= 2048):
        TB *= 2
    M = TB * n_img

    # bf16 activations: half the input DMA bytes, full-rate MXU.
    x = x_nhwc.astype(jnp.bfloat16)

    # Fold BN scales into conv weights (one-time, wrapper side); biases in f32.
    w1 = (params['w1'] * params['s1']).astype(jnp.bfloat16)              # (Cin, P)
    w2 = (params['w2'] * params['s2'].reshape(1, 1, 1, P))               # (3,3,P,P) HWIO
    w2 = w2.reshape(9 * P, P).astype(jnp.bfloat16)                       # (9P, P)
    w3 = (params['w3'] * params['s3']).astype(jnp.bfloat16)              # (P, C4)
    b1 = params['b1'].astype(jnp.float32)                                # (1, P)
    b2 = params['b2'].astype(jnp.float32)                                # (1, P)
    b3 = params['b3'].astype(jnp.float32)                                # (1, C4)
    wse1 = params['wse1'].astype(jnp.bfloat16)                           # (C4, hid)
    wse2 = params['wse2'].astype(jnp.bfloat16)                           # (hid, C4)
    consts = (w1, b1, w2, b2, w3, b3, wse1, wse2)

    def full_spec(a):
        nd = a.ndim
        return pl.BlockSpec(a.shape, lambda b, nd=nd: (0,) * nd)

    in_specs = [pl.BlockSpec((TB, H, W, Cin), lambda b: (b, 0, 0, 0))]
    in_specs += [full_spec(a) for a in consts]

    # Rough VMEM budget -> explicit scoped limit with headroom (capped at the
    # smallest physical VMEM, v7x's 64 MiB).
    bf16_b, f32_b = 2, 4
    est = (2 * TB * n_img * Cin * bf16_b            # input block (double buffered)
           + 2 * TB * n_img * C4 * bf16_b           # output block (double buffered)
           + (Cin * P + 9 * P * P + P * C4 + C4 * hid + hid * C4) * bf16_b
           + (2 * P + C4) * f32_b                   # biases
           + TB * (H + 2) * (W + 2) * P * bf16_b    # conv2 pad scratch
           + M * 9 * P * bf16_b                     # im2col scratch
           + M * C4 * f32_b)                        # conv3 scratch
    vmem_limit = int(min(max(2 * est, 32 * 1024 * 1024), 64 * 1024 * 1024))

    out = pl.pallas_call(
        bottleneck_kernel,
        out_shape=jax.ShapeDtypeStruct((B, H, W, C4), jnp.bfloat16),
        grid_spec=pltpu.PrefetchScalarGridSpec(
            num_scalar_prefetch=0,
            grid=(B // TB,),
            in_specs=in_specs,
            out_specs=pl.BlockSpec((TB, H, W, C4), lambda b: (b, 0, 0, 0)),
            scratch_shapes=[
                pltpu.VMEM((TB, H + 2, W + 2, P), jnp.bfloat16),   # conv2 pad
                pltpu.VMEM((M, 9 * P), jnp.bfloat16),              # im2col patches
                pltpu.VMEM((M, C4), jnp.float32),                  # conv3 output
            ]),
        compiler_params=pltpu.CompilerParams(
            dimension_semantics=("parallel",),       # batch blocks independent
            vmem_limit_bytes=vmem_limit),
    )(x, *consts)
    return out


def bottleneck_forward(x_nchw, params):
    # PyTorch-compatible NCHW interface.  If the surrounding model is NHWC
    # end-to-end, call bottleneck_forward_nhwc directly to skip the two
    # whole-tensor HBM transposes.
    x = jnp.transpose(x_nchw, (0, 2, 3, 1))                 # NCHW -> NHWC
    out = bottleneck_forward_nhwc(x, params)
    return jnp.transpose(out, (0, 3, 1, 2))                 # NHWC -> NCHW


def init_params(key, inplanes=512, planes=128, expansion=4, reduction=16,
                dtype=jnp.float32):
    c4 = planes * expansion
    hid = max(c4 // reduction, 1)
    keys = jax.random.split(key, 17)

    def bn_fold(kg, kb, km, kv, c):
        gamma = 1.0 + 0.1 * jax.random.normal(kg, (c,), dtype)
        beta = 0.1 * jax.random.normal(kb, (c,), dtype)
        mean = 0.1 * jax.random.normal(km, (c,), dtype)
        var = jnp.abs(jax.random.normal(kv, (c,), dtype)) + 0.5
        scale = gamma / jnp.sqrt(var + 1e-5)
        bias = beta - mean * scale
        return scale.reshape(1, c), bias.reshape(1, c)

    def winit(k, shape, fan_in):
        return jax.random.normal(k, shape, dtype) * (2.0 / fan_in) ** 0.5

    w1 = winit(keys[0], (inplanes, planes), inplanes)
    s1, b1 = bn_fold(keys[1], keys[2], keys[3], keys[4], planes)
    w2 = winit(keys[5], (3, 3, planes, planes), 9 * planes)   # HWIO
    s2, b2 = bn_fold(keys[6], keys[7], keys[8], keys[9], planes)
    w3 = winit(keys[10], (planes, c4), planes)
    s3, b3 = bn_fold(keys[11], keys[12], keys[13], keys[14], c4)
    wse1 = winit(keys[15], (c4, hid), c4)
    wse2 = winit(keys[16], (hid, c4), hid)
    return dict(w1=w1, s1=s1, b1=b1, w2=w2, s2=s2, b2=b2,
                w3=w3, s3=s3, b3=b3, wse1=wse1, wse2=wse2)


def reference_forward(x_nchw, p):
    """Pure-JAX f32 reference mirroring the PyTorch forward (inference BN)."""
    x = jnp.transpose(x_nchw, (0, 2, 3, 1)).astype(jnp.float32)
    o = jnp.einsum('bhwc,cd->bhwd', x, p['w1'])
    o = jnp.maximum(o * p['s1'] + p['b1'], 0.0)
    o = jax.lax.conv_general_dilated(
        o, p['w2'], (1, 1), 'SAME',
        dimension_numbers=('NHWC', 'HWIO', 'NHWC'))
    o = jnp.maximum(o * p['s2'] + p['b2'], 0.0)
    o = jnp.einsum('bhwc,cd->bhwd', o, p['w3'])
    o = o * p['s3'] + p['b3']
    y = jnp.mean(o, axis=(1, 2))
    h = jnp.maximum(y @ p['wse1'], 0.0)
    s = jax.nn.sigmoid(h @ p['wse2'])
    o = o * s[:, None, None, :]
    o = jnp.maximum(o + x, 0.0)
    return jnp.transpose(o, (0, 3, 1, 2))


if __name__ == "__main__":
    key = jax.random.PRNGKey(0)
    kx, kp = jax.random.split(key)

    # Real, lane-aligned ResNet bottleneck channel sizes (Cin = C4 = 512,
    # planes = 128 so the identity shortcut applies) with a tiny 8x8 spatial
    # extent and batch=2 to keep the test small.  The two images are packed
    # into one grid step so the conv matmuls run with M = 128.
    B, Cin, H, W = 2, 512, 8, 8
    planes = 128
    x = jax.random.normal(kx, (B, Cin, H, W), jnp.float32)
    params = init_params(kp, inplanes=Cin, planes=planes)

    out = jax.block_until_ready(bottleneck_forward(x, params))
    ref = jax.block_until_ready(reference_forward(x, params))

    assert out.shape == (B, Cin, H, W), out.shape
    out_f = out.astype(jnp.float32)
    max_err = float(jnp.max(jnp.abs(out_f - ref)))
    # bf16 MXU operands + bf16 output store vs. a pure-f32 reference.
    tol = 5e-2 * float(jnp.max(jnp.abs(ref))) + 3e-2
    assert max_err <= tol, (max_err, tol)
    print("KERNEL_OK")
</pallas_src>

<mosaic_0001>
module attributes {stable_mosaic.version = 11 : i64} {
  func.func @bottleneck_kernel(%arg0: i32, %arg1: memref<2x8x8x512xbf16, #tpu.memory_space<vmem>>, %arg2: memref<512x128xbf16, #tpu.memory_space<vmem>>, %arg3: memref<1x128xf32, #tpu.memory_space<vmem>>, %arg4: memref<1152x128xbf16, #tpu.memory_space<vmem>>, %arg5: memref<1x128xf32, #tpu.memory_space<vmem>>, %arg6: memref<128x512xbf16, #tpu.memory_space<vmem>>, %arg7: memref<1x512xf32, #tpu.memory_space<vmem>>, %arg8: memref<512x32xbf16, #tpu.memory_space<vmem>>, %arg9: memref<32x512xbf16, #tpu.memory_space<vmem>>, %arg10: memref<2x8x8x512xbf16, #tpu.memory_space<vmem>>, %arg11: memref<2x10x10x128xbf16, #tpu.memory_space<vmem>>, %arg12: memref<128x1152xbf16, #tpu.memory_space<vmem>>, %arg13: memref<128x512xf32, #tpu.memory_space<vmem>>) attributes {dimension_semantics = [#tpu.dimension_semantics<parallel>], iteration_bounds = array<i64: 1>, scalar_prefetch = 0 : i64, scratch_operands = 3 : i64, tpu.core_type = #tpu.core_type<tc>, window_params = [{transform_indices = @transform_0, window_bounds = array<i64: 2, 8, 8, 512>}, {pipeline_mode = #tpu.pipeline_mode<synchronous>, transform_indices = @transform_1, window_bounds = array<i64: 512, 128>}, {pipeline_mode = #tpu.pipeline_mode<synchronous>, transform_indices = @transform_2, window_bounds = array<i64: 1, 128>}, {pipeline_mode = #tpu.pipeline_mode<synchronous>, transform_indices = @transform_3, window_bounds = array<i64: 1152, 128>}, {pipeline_mode = #tpu.pipeline_mode<synchronous>, transform_indices = @transform_4, window_bounds = array<i64: 1, 128>}, {pipeline_mode = #tpu.pipeline_mode<synchronous>, transform_indices = @transform_5, window_bounds = array<i64: 128, 512>}, {pipeline_mode = #tpu.pipeline_mode<synchronous>, transform_indices = @transform_6, window_bounds = array<i64: 1, 512>}, {pipeline_mode = #tpu.pipeline_mode<synchronous>, transform_indices = @transform_7, window_bounds = array<i64: 512, 32>}, {pipeline_mode = #tpu.pipeline_mode<synchronous>, transform_indices = @transform_8, window_bounds = array<i64: 32, 512>}, {transform_indices = @transform_9, window_bounds = array<i64: 2, 8, 8, 512>}]} {
    %c0 = arith.constant 0 : index
    %c0_0 = arith.constant 0 : index
    %c0_1 = arith.constant 0 : index
    %c0_2 = arith.constant 0 : index
    %0 = vector.load %arg1[%c0, %c0_0, %c0_1, %c0_2] : memref<2x8x8x512xbf16, #tpu.memory_space<vmem>>, vector<2x8x8x512xbf16>
    %1 = vector.shape_cast %0 : vector<2x8x8x512xbf16> to vector<128x512xbf16>
    %c0_3 = arith.constant 0 : index
    %c0_4 = arith.constant 0 : index
    %2 = vector.load %arg2[%c0_3, %c0_4] : memref<512x128xbf16, #tpu.memory_space<vmem>>, vector<512x128xbf16>
    %cst = arith.constant dense<0.000000e+00> : vector<128x128xf32>
    %3 = tpu.matmul %1, %2, %cst {dimension_numbers = #tpu.dot_dimension_numbers<[1], [0], [0], [1], [0, 0, 1, 1], [], []>} : vector<128x512xbf16>, vector<512x128xbf16>, vector<128x128xf32> -> vector<128x128xf32>
    %c0_5 = arith.constant 0 : index
    %c0_6 = arith.constant 0 : index
    %4 = vector.load %arg3[%c0_5, %c0_6] : memref<1x128xf32, #tpu.memory_space<vmem>>, vector<1x128xf32>
    %5 = vector.broadcast %4 : vector<1x128xf32> to vector<128x128xf32>
    %6 = arith.addf %3, %5 : vector<128x128xf32>
    %cst_7 = arith.constant 0.000000e+00 : f32
    %7 = vector.broadcast %cst_7 : f32 to vector<128x128xf32>
    %8 = arith.maximumf %6, %7 : vector<128x128xf32>
    %9 = arith.truncf %8 : vector<128x128xf32> to vector<128x128xbf16>
    %10 = vector.shape_cast %9 : vector<128x128xbf16> to vector<2x8x8x128xbf16>
    %cst_8 = arith.constant 0.000000e+00 : bf16
    %11 = vector.broadcast %cst_8 : bf16 to vector<2x1x10x128xbf16>
    %cst_9 = arith.constant 0.000000e+00 : bf16
    %12 = vector.broadcast %cst_9 : bf16 to vector<2x10x1x128xbf16>
    %c0_10 = arith.constant 0 : index
    %c0_11 = arith.constant 0 : index
    %c0_12 = arith.constant 0 : index
    %c0_13 = arith.constant 0 : index
    %13 = vector.load %arg11[%c0_10, %c0_11, %c0_12, %c0_13] : memref<2x10x10x128xbf16, #tpu.memory_space<vmem>>, vector<2x1x10x128xbf16>
    tpu.vector_store %arg11[%c0_10, %c0_11, %c0_12, %c0_13], %11 {strides = array<i32>} : memref<2x10x10x128xbf16, #tpu.memory_space<vmem>>, vector<2x1x10x128xbf16>,
    %c0_14 = arith.constant 0 : index
    %c9 = arith.constant 9 : index
    %c0_15 = arith.constant 0 : index
    %c0_16 = arith.constant 0 : index
    %14 = vector.load %arg11[%c0_14, %c9, %c0_15, %c0_16] : memref<2x10x10x128xbf16, #tpu.memory_space<vmem>>, vector<2x1x10x128xbf16>
    tpu.vector_store %arg11[%c0_14, %c9, %c0_15, %c0_16], %11 {strides = array<i32>} : memref<2x10x10x128xbf16, #tpu.memory_space<vmem>>, vector<2x1x10x128xbf16>,
    %c0_17 = arith.constant 0 : index
    %c0_18 = arith.constant 0 : index
    %c0_19 = arith.constant 0 : index
    %c0_20 = arith.constant 0 : index
    %15 = vector.load %arg11[%c0_17, %c0_18, %c0_19, %c0_20] : memref<2x10x10x128xbf16, #tpu.memory_space<vmem>>, vector<2x10x1x128xbf16>
    tpu.vector_store %arg11[%c0_17, %c0_18, %c0_19, %c0_20], %12 {strides = array<i32>} : memref<2x10x10x128xbf16, #tpu.memory_space<vmem>>, vector<2x10x1x128xbf16>,
    %c0_21 = arith.constant 0 : index
    %c0_22 = arith.constant 0 : index
    %c9_23 = arith.constant 9 : index
    %c0_24 = arith.constant 0 : index
    %16 = vector.load %arg11[%c0_21, %c0_22, %c9_23, %c0_24] : memref<2x10x10x128xbf16, #tpu.memory_space<vmem>>, vector<2x10x1x128xbf16>
    tpu.vector_store %arg11[%c0_21, %c0_22, %c9_23, %c0_24], %12 {strides = array<i32>} : memref<2x10x10x128xbf16, #tpu.memory_space<vmem>>, vector<2x10x1x128xbf16>,
    %c0_25 = arith.constant 0 : index
    %c1 = arith.constant 1 : index
    %c1_26 = arith.constant 1 : index
    %c0_27 = arith.constant 0 : index
    %17 = vector.load %arg11[%c0_25, %c1, %c1_26, %c0_27] : memref<2x10x10x128xbf16, #tpu.memory_space<vmem>>, vector<2x8x8x128xbf16>
    tpu.vector_store %arg11[%c0_25, %c1, %c1_26, %c0_27], %10 {strides = array<i32>} : memref<2x10x10x128xbf16, #tpu.memory_space<vmem>>, vector<2x8x8x128xbf16>,
    %c0_28 = arith.constant 0 : index
    %c0_29 = arith.constant 0 : index
    %c0_30 = arith.constant 0 : index
    %c0_31 = arith.constant 0 : index
    %18 = vector.load %arg11[%c0_28, %c0_29, %c0_30, %c0_31] : memref<2x10x10x128xbf16, #tpu.memory_space<vmem>>, vector<2x8x8x128xbf16>
    %19 = vector.shape_cast %18 : vector<2x8x8x128xbf16> to vector<128x128xbf16>
    %c0_32 = arith.constant 0 : index
    %c0_33 = arith.constant 0 : index
    %20 = vector.load %arg12[%c0_32, %c0_33] : memref<128x1152xbf16, #tpu.memory_space<vmem>>, vector<128x128xbf16>
    tpu.vector_store %arg12[%c0_32, %c0_33], %19 {strides = array<i32>} : memref<128x1152xbf16, #tpu.memory_space<vmem>>, vector<128x128xbf16>,
    %c0_34 = arith.constant 0 : index
    %c0_35 = arith.constant 0 : index
    %c1_36 = arith.constant 1 : index
    %c0_37 = arith.constant 0 : index
    %21 = vector.load %arg11[%c0_34, %c0_35, %c1_36, %c0_37] : memref<2x10x10x128xbf16, #tpu.memory_space<vmem>>, vector<2x8x8x128xbf16>
    %22 = vector.shape_cast %21 : vector<2x8x8x128xbf16> to vector<128x128xbf16>
    %c0_38 = arith.constant 0 : index
    %c128 = arith.constant 128 : index
    %23 = vector.load %arg12[%c0_38, %c128] : memref<128x1152xbf16, #tpu.memory_space<vmem>>, vector<128x128xbf16>
    tpu.vector_store %arg12[%c0_38, %c128], %22 {strides = array<i32>} : memref<128x1152xbf16, #tpu.memory_space<vmem>>, vector<128x128xbf16>,
    %c0_39 = arith.constant 0 : index
    %c0_40 = arith.constant 0 : index
    %c2 = arith.constant 2 : index
    %c0_41 = arith.constant 0 : index
    %24 = vector.load %arg11[%c0_39, %c0_40, %c2, %c0_41] : memref<2x10x10x128xbf16, #tpu.memory_space<vmem>>, vector<2x8x8x128xbf16>
    %25 = vector.shape_cast %24 : vector<2x8x8x128xbf16> to vector<128x128xbf16>
    %c0_42 = arith.constant 0 : index
    %c256 = arith.constant 256 : index
    %26 = vector.load %arg12[%c0_42, %c256] : memref<128x1152xbf16, #tpu.memory_space<vmem>>, vector<128x128xbf16>
    tpu.vector_store %arg12[%c0_42, %c256], %25 {strides = array<i32>} : memref<128x1152xbf16, #tpu.memory_space<vmem>>, vector<128x128xbf16>,
    %c0_43 = arith.constant 0 : index
    %c1_44 = arith.constant 1 : index
    %c0_45 = arith.constant 0 : index
    %c0_46 = arith.constant 0 : index
    %27 = vector.load %arg11[%c0_43, %c1_44, %c0_45, %c0_46] : memref<2x10x10x128xbf16, #tpu.memory_space<vmem>>, vector<2x8x8x128xbf16>
    %28 = vector.shape_cast %27 : vector<2x8x8x128xbf16> to vector<128x128xbf16>
    %c0_47 = arith.constant 0 : index
    %c384 = arith.constant 384 : index
    %29 = vector.load %arg12[%c0_47, %c384] : memref<128x1152xbf16, #tpu.memory_space<vmem>>, vector<128x128xbf16>
    tpu.vector_store %arg12[%c0_47, %c384], %28 {strides = array<i32>} : memref<128x1152xbf16, #tpu.memory_space<vmem>>, vector<128x128xbf16>,
    %c0_48 = arith.constant 0 : index
    %c1_49 = arith.constant 1 : index
    %c1_50 = arith.constant 1 : index
    %c0_51 = arith.constant 0 : index
    %30 = vector.load %arg11[%c0_48, %c1_49, %c1_50, %c0_51] : memref<2x10x10x128xbf16, #tpu.memory_space<vmem>>, vector<2x8x8x128xbf16>
    %31 = vector.shape_cast %30 : vector<2x8x8x128xbf16> to vector<128x128xbf16>
    %c0_52 = arith.constant 0 : index
    %c512 = arith.constant 512 : index
    %32 = vector.load %arg12[%c0_52, %c512] : memref<128x1152xbf16, #tpu.memory_space<vmem>>, vector<128x128xbf16>
    tpu.vector_store %arg12[%c0_52, %c512], %31 {strides = array<i32>} : memref<128x1152xbf16, #tpu.memory_space<vmem>>, vector<128x128xbf16>,
    %c0_53 = arith.constant 0 : index
    %c1_54 = arith.constant 1 : index
    %c2_55 = arith.constant 2 : index
    %c0_56 = arith.constant 0 : index
    %33 = vector.load %arg11[%c0_53, %c1_54, %c2_55, %c0_56] : memref<2x10x10x128xbf16, #tpu.memory_space<vmem>>, vector<2x8x8x128xbf16>
    %34 = vector.shape_cast %33 : vector<2x8x8x128xbf16> to vector<128x128xbf16>
    %c0_57 = arith.constant 0 : index
    %c640 = arith.constant 640 : index
    %35 = vector.load %arg12[%c0_57, %c640] : memref<128x1152xbf16, #tpu.memory_space<vmem>>, vector<128x128xbf16>
    tpu.vector_store %arg12[%c0_57, %c640], %34 {strides = array<i32>} : memref<128x1152xbf16, #tpu.memory_space<vmem>>, vector<128x128xbf16>,
    %c0_58 = arith.constant 0 : index
    %c2_59 = arith.constant 2 : index
    %c0_60 = arith.constant 0 : index
    %c0_61 = arith.constant 0 : index
    %36 = vector.load %arg11[%c0_58, %c2_59, %c0_60, %c0_61] : memref<2x10x10x128xbf16, #tpu.memory_space<vmem>>, vector<2x8x8x128xbf16>
    %37 = vector.shape_cast %36 : vector<2x8x8x128xbf16> to vector<128x128xbf16>
    %c0_62 = arith.constant 0 : index
    %c768 = arith.constant 768 : index
    %38 = vector.load %arg12[%c0_62, %c768] : memref<128x1152xbf16, #tpu.memory_space<vmem>>, vector<128x128xbf16>
    tpu.vector_store %arg12[%c0_62, %c768], %37 {strides = array<i32>} : memref<128x1152xbf16, #tpu.memory_space<vmem>>, vector<128x128xbf16>,
    %c0_63 = arith.constant 0 : index
    %c2_64 = arith.constant 2 : index
    %c1_65 = arith.constant 1 : index
    %c0_66 = arith.constant 0 : index
    %39 = vector.load %arg11[%c0_63, %c2_64, %c1_65, %c0_66] : memref<2x10x10x128xbf16, #tpu.memory_space<vmem>>, vector<2x8x8x128xbf16>
    %40 = vector.shape_cast %39 : vector<2x8x8x128xbf16> to vector<128x128xbf16>
    %c0_67 = arith.constant 0 : index
    %c896 = arith.constant 896 : index
    %41 = vector.load %arg12[%c0_67, %c896] : memref<128x1152xbf16, #tpu.memory_space<vmem>>, vector<128x128xbf16>
    tpu.vector_store %arg12[%c0_67, %c896], %40 {strides = array<i32>} : memref<128x1152xbf16, #tpu.memory_space<vmem>>, vector<128x128xbf16>,
    %c0_68 = arith.constant 0 : index
    %c2_69 = arith.constant 2 : index
    %c2_70 = arith.constant 2 : index
    %c0_71 = arith.constant 0 : index
    %42 = vector.load %arg11[%c0_68, %c2_69, %c2_70, %c0_71] : memref<2x10x10x128xbf16, #tpu.memory_space<vmem>>, vector<2x8x8x128xbf16>
    %43 = vector.shape_cast %42 : vector<2x8x8x128xbf16> to vector<128x128xbf16>
    %c0_72 = arith.constant 0 : index
    %c1024 = arith.constant 1024 : index
    %44 = vector.load %arg12[%c0_72, %c1024] : memref<128x1152xbf16, #tpu.memory_space<vmem>>, vector<128x128xbf16>
    tpu.vector_store %arg12[%c0_72, %c1024], %43 {strides = array<i32>} : memref<128x1152xbf16, #tpu.memory_space<vmem>>, vector<128x128xbf16>,
    %c0_73 = arith.constant 0 : index
    %c0_74 = arith.constant 0 : index
    %45 = vector.load %arg12[%c0_73, %c0_74] : memref<128x1152xbf16, #tpu.memory_space<vmem>>, vector<128x1152xbf16>
    %c0_75 = arith.constant 0 : index
    %c0_76 = arith.constant 0 : index
    %46 = vector.load %arg4[%c0_75, %c0_76] : memref<1152x128xbf16, #tpu.memory_space<vmem>>, vector<1152x128xbf16>
    %cst_77 = arith.constant dense<0.000000e+00> : vector<128x128xf32>
    %47 = tpu.matmul %45, %46, %cst_77 {dimension_numbers = #tpu.dot_dimension_numbers<[1], [0], [0], [1], [0, 0, 1, 1], [], []>} : vector<128x1152xbf16>, vector<1152x128xbf16>, vector<128x128xf32> -> vector<128x128xf32>
    %c0_78 = arith.constant 0 : index
    %c0_79 = arith.constant 0 : index
    %48 = vector.load %arg5[%c0_78, %c0_79] : memref<1x128xf32, #tpu.memory_space<vmem>>, vector<1x128xf32>
    %49 = vector.broadcast %48 : vector<1x128xf32> to vector<128x128xf32>
    %50 = arith.addf %47, %49 : vector<128x128xf32>
    %cst_80 = arith.constant 0.000000e+00 : f32
    %51 = vector.broadcast %cst_80 : f32 to vector<128x128xf32>
    %52 = arith.maximumf %50, %51 : vector<128x128xf32>
    %53 = arith.truncf %52 : vector<128x128xf32> to vector<128x128xbf16>
    %c0_81 = arith.constant 0 : index
    %c0_82 = arith.constant 0 : index
    %54 = vector.load %arg6[%c0_81, %c0_82] : memref<128x512xbf16, #tpu.memory_space<vmem>>, vector<128x512xbf16>
    %cst_83 = arith.constant dense<0.000000e+00> : vector<128x512xf32>
    %55 = tpu.matmul %53, %54, %cst_83 {dimension_numbers = #tpu.dot_dimension_numbers<[1], [0], [0], [1], [0, 0, 1, 1], [], []>} : vector<128x128xbf16>, vector<128x512xbf16>, vector<128x512xf32> -> vector<128x512xf32>
    %c0_84 = arith.constant 0 : index
    %c0_85 = arith.constant 0 : index
    %56 = vector.load %arg7[%c0_84, %c0_85] : memref<1x512xf32, #tpu.memory_space<vmem>>, vector<1x512xf32>
    %57 = vector.broadcast %56 : vector<1x512xf32> to vector<128x512xf32>
    %58 = arith.addf %55, %57 : vector<128x512xf32>
    %c0_86 = arith.constant 0 : index
    %c0_87 = arith.constant 0 : index
    %59 = vector.load %arg13[%c0_86, %c0_87] : memref<128x512xf32, #tpu.memory_space<vmem>>, vector<128x512xf32>
    tpu.vector_store %arg13[%c0_86, %c0_87], %58 {strides = array<i32>} : memref<128x512xf32, #tpu.memory_space<vmem>>, vector<128x512xf32>,
    %c0_88 = arith.constant 0 : index
    %c0_89 = arith.constant 0 : index
    %60 = vector.load %arg13[%c0_88, %c0_89] : memref<128x512xf32, #tpu.memory_space<vmem>>, vector<128x512xf32>
    %61 = vector.shape_cast %60 : vector<128x512xf32> to vector<2x64x512xf32>
    %cst_90 = arith.constant dense<0.000000e+00> : vector<2x512xf32>
    %62 = vector.multi_reduction <add>, %61, %cst_90 [1] : vector<2x64x512xf32> to vector<2x512xf32>
    %cst_91 = arith.constant 6.400000e+01 : f32
    %63 = vector.broadcast %cst_91 : f32 to vector<2x512xf32>
    %64 = arith.divf %62, %63 : vector<2x512xf32>
    %65 = arith.truncf %64 : vector<2x512xf32> to vector<2x512xbf16>
    %c0_92 = arith.constant 0 : index
    %c0_93 = arith.constant 0 : index
    %66 = vector.load %arg8[%c0_92, %c0_93] : memref<512x32xbf16, #tpu.memory_space<vmem>>, vector<512x32xbf16>
    %cst_94 = arith.constant dense<0.000000e+00> : vector<2x32xf32>
    %67 = tpu.matmul %65, %66, %cst_94 {dimension_numbers = #tpu.dot_dimension_numbers<[1], [0], [0], [1], [0, 0, 1, 1], [], []>} : vector<2x512xbf16>, vector<512x32xbf16>, vector<2x32xf32> -> vector<2x32xf32>
    %cst_95 = arith.constant 0.000000e+00 : f32
    %68 = vector.broadcast %cst_95 : f32 to vector<2x32xf32>
    %69 = arith.maximumf %67, %68 : vector<2x32xf32>
    %70 = arith.truncf %69 : vector<2x32xf32> to vector<2x32xbf16>
    %c0_96 = arith.constant 0 : index
    %c0_97 = arith.constant 0 : index
    %71 = vector.load %arg9[%c0_96, %c0_97] : memref<32x512xbf16, #tpu.memory_space<vmem>>, vector<32x512xbf16>
    %cst_98 = arith.constant dense<0.000000e+00> : vector<2x512xf32>
    %72 = tpu.matmul %70, %71, %cst_98 {dimension_numbers = #tpu.dot_dimension_numbers<[1], [0], [0], [1], [0, 0, 1, 1], [], []>} : vector<2x32xbf16>, vector<32x512xbf16>, vector<2x512xf32> -> vector<2x512xf32>
    %cst_99 = arith.constant 0.000000e+00 : f32
    %73 = vector.broadcast %cst_99 : f32 to vector<2x512xf32>
    %74 = arith.subf %73, %72 : vector<2x512xf32>
    %75 = math.exp %74 : vector<2x512xf32>
    %cst_100 = arith.constant 1.000000e+00 : f32
    %76 = vector.broadcast %cst_100 : f32 to vector<2x512xf32>
    %77 = arith.addf %76, %75 : vector<2x512xf32>
    %cst_101 = arith.constant 1.000000e+00 : f32
    %78 = vector.broadcast %cst_101 : f32 to vector<2x512xf32>
    %79 = arith.divf %78, %77 : vector<2x512xf32>
    %c0_102 = arith.constant 0 : index
    %c0_103 = arith.constant 0 : index
    %80 = vector.load %arg13[%c0_102, %c0_103] : memref<128x512xf32, #tpu.memory_space<vmem>>, vector<128x512xf32>
    %81 = vector.shape_cast %80 : vector<128x512xf32> to vector<2x64x512xf32>
    %c0_104 = arith.constant 0 : index
    %c0_105 = arith.constant 0 : index
    %c0_106 = arith.constant 0 : index
    %c0_107 = arith.constant 0 : index
    %82 = vector.load %arg1[%c0_104, %c0_105, %c0_106, %c0_107] : memref<2x8x8x512xbf16, #tpu.memory_space<vmem>>, vector<2x8x8x512xbf16>
    %83 = vector.shape_cast %82 : vector<2x8x8x512xbf16> to vector<2x64x512xbf16>
    %84 = arith.extf %83 : vector<2x64x512xbf16> to vector<2x64x512xf32>
    %85 = vector.shape_cast %79 : vector<2x512xf32> to vector<2x1x512xf32>
    %86 = vector.broadcast %85 : vector<2x1x512xf32> to vector<2x64x512xf32>
    %87 = arith.mulf %81, %86 : vector<2x64x512xf32>
    %88 = arith.addf %87, %84 : vector<2x64x512xf32>
    %cst_108 = arith.constant 0.000000e+00 : f32
    %89 = vector.broadcast %cst_108 : f32 to vector<2x64x512xf32>
    %90 = arith.maximumf %88, %89 : vector<2x64x512xf32>
    %91 = vector.shape_cast %90 : vector<2x64x512xf32> to vector<2x8x8x512xf32>
    %92 = arith.truncf %91 : vector<2x8x8x512xf32> to vector<2x8x8x512xbf16>
    %c0_109 = arith.constant 0 : index
    %c0_110 = arith.constant 0 : index
    %c0_111 = arith.constant 0 : index
    %c0_112 = arith.constant 0 : index
    %93 = vector.load %arg10[%c0_109, %c0_110, %c0_111, %c0_112] : memref<2x8x8x512xbf16, #tpu.memory_space<vmem>>, vector<2x8x8x512xbf16>
    tpu.vector_store %arg10[%c0_109, %c0_110, %c0_111, %c0_112], %92 {strides = array<i32>} : memref<2x8x8x512xbf16, #tpu.memory_space<vmem>>, vector<2x8x8x512xbf16>,
    return
  }
  func.func @transform_0(%arg0: i32) -> (i32, i32, i32, i32) {
    %c0_i32 = arith.constant 0 : i32
    %c0_i32_0 = arith.constant 0 : i32
    %c0_i32_1 = arith.constant 0 : i32
    %c0_i32_2 = arith.constant 0 : i32
    return %arg0, %c0_i32, %c0_i32_0, %c0_i32_1 : i32, i32, i32, i32
  }
  func.func @transform_1(%arg0: i32) -> (i32, i32) {
    %c0_i32 = arith.constant 0 : i32
    %c0_i32_0 = arith.constant 0 : i32
    %c0_i32_1 = arith.constant 0 : i32
    return %c0_i32, %c0_i32_0 : i32, i32
  }
  func.func @transform_2(%arg0: i32) -> (i32, i32) {
    %c0_i32 = arith.constant 0 : i32
    %c0_i32_0 = arith.constant 0 : i32
    %c0_i32_1 = arith.constant 0 : i32
    return %c0_i32, %c0_i32_0 : i32, i32
  }
  func.func @transform_3(%arg0: i32) -> (i32, i32) {
    %c0_i32 = arith.constant 0 : i32
    %c0_i32_0 = arith.constant 0 : i32
    %c0_i32_1 = arith.constant 0 : i32
    return %c0_i32, %c0_i32_0 : i32, i32
  }
  func.func @transform_4(%arg0: i32) -> (i32, i32) {
    %c0_i32 = arith.constant 0 : i32
    %c0_i32_0 = arith.constant 0 : i32
    %c0_i32_1 = arith.constant 0 : i32
    return %c0_i32, %c0_i32_0 : i32, i32
  }
  func.func @transform_5(%arg0: i32) -> (i32, i32) {
    %c0_i32 = arith.constant 0 : i32
    %c0_i32_0 = arith.constant 0 : i32
    %c0_i32_1 = arith.constant 0 : i32
    return %c0_i32, %c0_i32_0 : i32, i32
  }
  func.func @transform_6(%arg0: i32) -> (i32, i32) {
    %c0_i32 = arith.constant 0 : i32
    %c0_i32_0 = arith.constant 0 : i32
    %c0_i32_1 = arith.constant 0 : i32
    return %c0_i32, %c0_i32_0 : i32, i32
  }
  func.func @transform_7(%arg0: i32) -> (i32, i32) {
    %c0_i32 = arith.constant 0 : i32
    %c0_i32_0 = arith.constant 0 : i32
    %c0_i32_1 = arith.constant 0 : i32
    return %c0_i32, %c0_i32_0 : i32, i32
  }
  func.func @transform_8(%arg0: i32) -> (i32, i32) {
    %c0_i32 = arith.constant 0 : i32
    %c0_i32_0 = arith.constant 0 : i32
    %c0_i32_1 = arith.constant 0 : i32
    return %c0_i32, %c0_i32_0 : i32, i32
  }
  func.func @transform_9(%arg0: i32) -> (i32, i32, i32, i32) {
    %c0_i32 = arith.constant 0 : i32
    %c0_i32_0 = arith.constant 0 : i32
    %c0_i32_1 = arith.constant 0 : i32
    %c0_i32_2 = arith.constant 0 : i32
    return %arg0, %c0_i32, %c0_i32_0, %c0_i32_1 : i32, i32, i32, i32
  }
}

</mosaic_0001>

<llo_original>
// kernel: tpu_custom_call.1
$region0: #{tpu_custom_call.1}
  #allocation0 [shape = 'u32[]', space=smem, size = 0x4, offset = 0x4, fixed_abs, tag = 'smem constant byte address 0x4 - core index']
  #allocation1 [shape = 'u32[144,128]{1,0:T(1,128)}', space=vmem, size = 0x12000, scoped, tag = 'internal scratch']
  #allocation2 [shape = 'bf16[2,10,10,128]{3,2,1,0:T(8,128)(2,1)}', space=vmem, size = 0x14000, scoped, tag = 'scratch operand']
  #allocation3 [shape = 'bf16[128,1152]{1,0:T(8,128)(2,1)}', space=vmem, size = 0x48000, scoped, tag = 'scratch operand']
  #allocation4 [shape = 'f32[128,512]{1,0:T(8,128)}', space=vmem, size = 0x40000, scoped, tag = 'scratch operand']
  %s0 = inlined_call_operand.vmem [shape: bf16[2,8,8,512], index: 0, kind: input, shape index: {}]
  %s1 = inlined_call_operand.hbm [shape: bf16[512,128], index: 1, kind: input, shape index: {}]
  %s2 = inlined_call_operand.vmem [shape: f32[1,128], index: 2, kind: input, shape index: {}]
  %s3 = inlined_call_operand.hbm [shape: bf16[1152,128], index: 3, kind: input, shape index: {}]
  %s4 = inlined_call_operand.vmem [shape: f32[1,128], index: 4, kind: input, shape index: {}]
  %s5 = inlined_call_operand.hbm [shape: bf16[128,512], index: 5, kind: input, shape index: {}]
  %s6 = inlined_call_operand.vmem [shape: f32[1,512], index: 6, kind: input, shape index: {}]
  %s7 = inlined_call_operand.vmem [shape: bf16[512,32], index: 7, kind: input, shape index: {}]
  %s8 = inlined_call_operand.vmem [shape: bf16[32,512], index: 8, kind: input, shape index: {}]
  %s9 = inlined_call_operand.hbm [shape: bf16[2,8,8,512], index: 9, kind: output, shape index: {}]
  %s10 = sld [smem:[#allocation0]]
  $region58: #{tpu_custom_call.1} parent=0
    _
  %s12 = ssub.s32 1, %s10
  %s13 = scalar_select 0, %s12, %s10
  $region1: #{tpu_custom_call.1} parent=0
    #allocation5 [shape = 'u8[131072]{0}', space=vmem, size = 0x20000, scoped, tag = 'input window, operand 1, single buffered']
    #allocation6 [shape = 's32[1]{0}', space=sflag, size = 0x4, scoped, tag = 'scoped memory for tpu_custom_call.1']
    #allocation7 [shape = 's32[1]{0}', space=sflag, size = 0x4, scoped, tag = 'scoped memory for tpu_custom_call.1']
    #allocation8 [shape = 'u8[294912]{0}', space=vmem, size = 0x48000, scoped, tag = 'input window, operand 3, single buffered']
    #allocation9 [shape = 's32[1]{0}', space=sflag, size = 0x4, scoped, tag = 'scoped memory for tpu_custom_call.1']
    #allocation10 [shape = 'u8[131072]{0}', space=vmem, size = 0x20000, scoped, tag = 'input window, operand 5, single buffered']
    #allocation11 [shape = 'u8[131072]{0}', space=vmem, size = 0x20000, scoped, tag = 'output window, operand 0, single buffered']
    %14 = vsyncpa [#allocation6], 0
    %15 = vsyncpa [#allocation9], 0
    %16 = vsyncpa [#allocation7], 0
    // Predicated region
    $region2: #{tpu_custom_call.1} parent=1 // pred_check
      _
    $region3: #{tpu_custom_call.1} parent=1 // pred_check_branch
      %18 = sbr.rel (0) target = $region5
    $region4: #{tpu_custom_call.1} parent=1 // pred_region
      _
    $region5: #{tpu_custom_call.1} parent=1 // pred_fallthru
      _
    // Predicated region
    $region6: #{tpu_custom_call.1} parent=1 // pred_check
      _
    $region7: #{tpu_custom_call.1} parent=1 // pred_check_branch
      %20 = sbr.rel (0) target = $region9
    $region8: #{tpu_custom_call.1} parent=1 // pred_region
      %s22 = ssub.s32 4096, 4096
      %23 = vsyncadd [#allocation6], %s22
      %s24 = sshll.u32 [#allocation5], 4
      %s25 = int_to_ptr.vmem [resolvable:$true] %s24
      %30 = dma.hbm_to_vmem [thread:$0]  %s1, 4096, %s25, [#allocation6], 64, 64, 4
    $region9: #{tpu_custom_call.1} parent=1 // pred_fallthru
      _
    // Predicated region
    $region10: #{tpu_custom_call.1} parent=1 // pred_check
      _
    $region11: #{tpu_custom_call.1} parent=1 // pred_check_branch
      %32 = sbr.rel (0) target = $region13
    $region12: #{tpu_custom_call.1} parent=1 // pred_region
      _
    $region13: #{tpu_custom_call.1} parent=1 // pred_fallthru
      _
    // Predicated region
    $region14: #{tpu_custom_call.1} parent=1 // pred_check
      _
    $region15: #{tpu_custom_call.1} parent=1 // pred_check_branch
      %34 = sbr.rel (0) target = $region17
    $region16: #{tpu_custom_call.1} parent=1 // pred_region
      %s36 = ssub.s32 9216, 9216
      %37 = vsyncadd [#allocation9], %s36
      %s38 = sshll.u32 [#allocation8], 4
      %s39 = int_to_ptr.vmem [resolvable:$true] %s38
      %44 = dma.hbm_to_vmem [thread:$0]  %s3, 9216, %s39, [#allocation9], 64, 64, 4
    $region17: #{tpu_custom_call.1} parent=1 // pred_fallthru
      _
    // Predicated region
    $region18: #{tpu_custom_call.1} parent=1 // pred_check
      _
    $region19: #{tpu_custom_call.1} parent=1 // pred_check_branch
      %46 = sbr.rel (0) target = $region21
    $region20: #{tpu_custom_call.1} parent=1 // pred_region
      _
    $region21: #{tpu_custom_call.1} parent=1 // pred_fallthru
      _
    // Predicated region
    $region22: #{tpu_custom_call.1} parent=1 // pred_check
      _
    $region23: #{tpu_custom_call.1} parent=1 // pred_check_branch
      %48 = sbr.rel (0) target = $region25
    $region24: #{tpu_custom_call.1} parent=1 // pred_region
      %s50 = ssub.s32 4096, 4096
      %51 = vsyncadd [#allocation9], %s50
      %s52 = sshll.u32 [#allocation10], 4
      %s53 = int_to_ptr.vmem [resolvable:$true] %s52
      %58 = dma.hbm_to_vmem [thread:$0]  %s5, 4096, %s53, [#allocation9], 256, 256, 16
    $region25: #{tpu_custom_call.1} parent=1 // pred_fallthru
      _
    // Predicated region
    $region26: #{tpu_custom_call.1} parent=1 // pred_check
      _
    $region27: #{tpu_custom_call.1} parent=1 // pred_check_branch
      %60 = sbr.rel (0) target = $region29
    $region28: #{tpu_custom_call.1} parent=1 // pred_region
      _
    $region29: #{tpu_custom_call.1} parent=1 // pred_fallthru
      _
    // Predicated region
    $region30: #{tpu_custom_call.1} parent=1 // pred_check
      _
    $region31: #{tpu_custom_call.1} parent=1 // pred_check_branch
      %62 = sbr.rel (0) target = $region33
    $region32: #{tpu_custom_call.1} parent=1 // pred_region
      _
    $region33: #{tpu_custom_call.1} parent=1 // pred_fallthru
      _
    // Predicated region
    $region34: #{tpu_custom_call.1} parent=1 // pred_check
      _
    $region35: #{tpu_custom_call.1} parent=1 // pred_check_branch
      %64 = sbr.rel (0) target = $region37
    $region36: #{tpu_custom_call.1} parent=1 // pred_region
      _
    $region37: #{tpu_custom_call.1} parent=1 // pred_fallthru
      _
    // Predicated region
    $region38: #{tpu_custom_call.1} parent=1 // pred_check
      _
    $region39: #{tpu_custom_call.1} parent=1 // pred_check_branch
      %66 = sbr.rel (0) target = $region41
    $region40: #{tpu_custom_call.1} parent=1 // pred_region
      %67 = dma.done [#allocation6], 4096
    $region41: #{tpu_custom_call.1} parent=1 // pred_fallthru
      _
    // Predicated region
    $region42: #{tpu_custom_call.1} parent=1 // pred_check
      _
    $region43: #{tpu_custom_call.1} parent=1 // pred_check_branch
      %69 = sbr.rel (0) target = $region45
    $region44: #{tpu_custom_call.1} parent=1 // pred_region
      %70 = dma.done [#allocation9], 9216
    $region45: #{tpu_custom_call.1} parent=1 // pred_fallthru
      _
    // Predicated region
    $region46: #{tpu_custom_call.1} parent=1 // pred_check
      _
    $region47: #{tpu_custom_call.1} parent=1 // pred_check_branch
      %72 = sbr.rel (0) target = $region49
    $region48: #{tpu_custom_call.1} parent=1 // pred_region
      %73 = dma.done [#allocation9], 4096
    $region49: #{tpu_custom_call.1} parent=1 // pred_fallthru
      _
    %v75 = vld [vmem:[%s0] sm:$0xff]
    %v76 = vld [vmem:[%s0 + $0x8] sm:$0xff]
    %v77 = vld [vmem:[%s0 + $0x10] sm:$0xff]
    %v78 = vld [vmem:[%s0 + $0x18] sm:$0xff]
    %v79 = vld [vmem:[%s0 + $0x20] sm:$0xff]
    %v80 = vld [vmem:[%s0 + $0x28] sm:$0xff]
    %v81 = vld [vmem:[%s0 + $0x30] sm:$0xff]
    %v82 = vld [vmem:[%s0 + $0x38] sm:$0xff]
    %v83 = vld [vmem:[%s0 + $0x40] sm:$0xff]
    %v84 = vld [vmem:[%s0 + $0x48] sm:$0xff]
    %v85 = vld [vmem:[%s0 + $0x50] sm:$0xff]
    %v86 = vld [vmem:[%s0 + $0x58] sm:$0xff]
    %v87 = vld [vmem:[%s0 + $0x60] sm:$0xff]
    %v88 = vld [vmem:[%s0 + $0x68] sm:$0xff]
    %v89 = vld [vmem:[%s0 + $0x70] sm:$0xff]
    %v90 = vld [vmem:[%s0 + $0x78] sm:$0xff]
    %v91 = vld [vmem:[%s0 + $0x80] sm:$0xff]
    %v92 = vld [vmem:[%s0 + $0x88] sm:$0xff]
    %v93 = vld [vmem:[%s0 + $0x90] sm:$0xff]
    %v94 = vld [vmem:[%s0 + $0x98] sm:$0xff]
    %v95 = vld [vmem:[%s0 + $0xa0] sm:$0xff]
    %v96 = vld [vmem:[%s0 + $0xa8] sm:$0xff]
    %v97 = vld [vmem:[%s0 + $0xb0] sm:$0xff]
    %v98 = vld [vmem:[%s0 + $0xb8] sm:$0xff]
    %v99 = vld [vmem:[%s0 + $0xc0] sm:$0xff]
    %v100 = vld [vmem:[%s0 + $0xc8] sm:$0xff]
    %v101 = vld [vmem:[%s0 + $0xd0] sm:$0xff]
    %v102 = vld [vmem:[%s0 + $0xd8] sm:$0xff]
    %v103 = vld [vmem:[%s0 + $0xe0] sm:$0xff]
    %v104 = vld [vmem:[%s0 + $0xe8] sm:$0xff]
    %v105 = vld [vmem:[%s0 + $0xf0] sm:$0xff]
    %v106 = vld [vmem:[%s0 + $0xf8] sm:$0xff]
    %v107 = vld [vmem:[#allocation5] sm:$0xf]
    %v108 = vld [vmem:[#allocation5 + $0x4] sm:$0xf]
    %v109 = vld [vmem:[#allocation5 + $0x8] sm:$0xf]
    %v110 = vld [vmem:[#allocation5 + $0xc] sm:$0xf]
    %v111 = vld [vmem:[#allocation5 + $0x10] sm:$0xf]
    %v112 = vld [vmem:[#allocation5 + $0x14] sm:$0xf]
    %v113 = vld [vmem:[#allocation5 + $0x18] sm:$0xf]
    %v114 = vld [vmem:[#allocation5 + $0x1c] sm:$0xf]
    %v115 = vld [vmem:[#allocation5 + $0x20] sm:$0xf]
    %v116 = vld [vmem:[#allocation5 + $0x24] sm:$0xf]
    %v117 = vld [vmem:[#allocation5 + $0x28] sm:$0xf]
    %v118 = vld [vmem:[#allocation5 + $0x2c] sm:$0xf]
    %v119 = vld [vmem:[#allocation5 + $0x30] sm:$0xf]
    %v120 = vld [vmem:[#allocation5 + $0x34] sm:$0xf]
    %v121 = vld [vmem:[#allocation5 + $0x38] sm:$0xf]
    %v122 = vld [vmem:[#allocation5 + $0x3c] sm:$0xf]
    %v123 = vld [vmem:[#allocation5 + $0x40] sm:$0xf]
    %v124 = vld [vmem:[#allocation5 + $0x44] sm:$0xf]
    %v125 = vld [vmem:[#allocation5 + $0x48] sm:$0xf]
    %v126 = vld [vmem:[#allocation5 + $0x4c] sm:$0xf]
    %v127 = vld [vmem:[#allocation5 + $0x50] sm:$0xf]
    %v128 = vld [vmem:[#allocation5 + $0x54] sm:$0xf]
    %v129 = vld [vmem:[#allocation5 + $0x58] sm:$0xf]
    %v130 = vld [vmem:[#allocation5 + $0x5c] sm:$0xf]
    %v131 = vld [vmem:[#allocation5 + $0x60] sm:$0xf]
    %v132 = vld [vmem:[#allocation5 + $0x64] sm:$0xf]
    %v133 = vld [vmem:[#allocation5 + $0x68] sm:$0xf]
    %v134 = vld [vmem:[#allocation5 + $0x6c] sm:$0xf]
    %v135 = vld [vmem:[#allocation5 + $0x70] sm:$0xf]
    %v136 = vld [vmem:[#allocation5 + $0x74] sm:$0xf]
    %v137 = vld [vmem:[#allocation5 + $0x78] sm:$0xf]
    %v138 = vld [vmem:[#allocation5 + $0x7c] sm:$0xf]
    %v139 = vld [vmem:[#allocation5 + $0x80] sm:$0xf]
    %v140 = vld [vmem:[#allocation5 + $0x84] sm:$0xf]
    %v141 = vld [vmem:[#allocation5 + $0x88] sm:$0xf]
    %v142 = vld [vmem:[#allocation5 + $0x8c] sm:$0xf]
    %v143 = vld [vmem:[#allocation5 + $0x90] sm:$0xf]
    %v144 = vld [vmem:[#allocation5 + $0x94] sm:$0xf]
    %v145 = vld [vmem:[#allocation5 + $0x98] sm:$0xf]
    %v146 = vld [vmem:[#allocation5 + $0x9c] sm:$0xf]
    %v147 = vld [vmem:[#allocation5 + $0xa0] sm:$0xf]
    %v148 = vld [vmem:[#allocation5 + $0xa4] sm:$0xf]
    %v149 = vld [vmem:[#allocation5 + $0xa8] sm:$0xf]
    %v150 = vld [vmem:[#allocation5 + $0xac] sm:$0xf]
    %v151 = vld [vmem:[#allocation5 + $0xb0] sm:$0xf]
    %v152 = vld [vmem:[#allocation5 + $0xb4] sm:$0xf]
    %v153 = vld [vmem:[#allocation5 + $0xb8] sm:$0xf]
    %v154 = vld [vmem:[#allocation5 + $0xbc] sm:$0xf]
    %v155 = vld [vmem:[#allocation5 + $0xc0] sm:$0xf]
    %v156 = vld [vmem:[#allocation5 + $0xc4] sm:$0xf]
    %v157 = vld [vmem:[#allocation5 + $0xc8] sm:$0xf]
    %v158 = vld [vmem:[#allocation5 + $0xcc] sm:$0xf]
    %v159 = vld [vmem:[#allocation5 + $0xd0] sm:$0xf]
    %v160 = vld [vmem:[#allocation5 + $0xd4] sm:$0xf]
    %v161 = vld [vmem:[#allocation5 + $0xd8] sm:$0xf]
    %v162 = vld [vmem:[#allocation5 + $0xdc] sm:$0xf]
    %v163 = vld [vmem:[#allocation5 + $0xe0] sm:$0xf]
    %v164 = vld [vmem:[#allocation5 + $0xe4] sm:$0xf]
    %v165 = vld [vmem:[#allocation5 + $0xe8] sm:$0xf]
    %v166 = vld [vmem:[#allocation5 + $0xec] sm:$0xf]
    %v167 = vld [vmem:[#allocation5 + $0xf0] sm:$0xf]
    %v168 = vld [vmem:[#allocation5 + $0xf4] sm:$0xf]
    %v169 = vld [vmem:[#allocation5 + $0xf8] sm:$0xf]
    %v170 = vld [vmem:[#allocation5 + $0xfc] sm:$0xf]
    %v171 = vld [vmem:[%s2] sm:$0x1]
    %v173 = vlaneseq
    %v174 = vshrl.u32 %v173, 7
    %v175 = vsub.s32 0, %v174
    %v176 = vrot.slane %v171, %v175
    %v210 = vunpack.c.l.b16 %v75
    %v211 = vunpack.c.h.b16 %v75
    %v212 = vunpack.c.l.b16 %v76
    %v213 = vunpack.c.h.b16 %v76
    %v214 = vunpack.c.l.b16 %v77
    %v215 = vunpack.c.h.b16 %v77
    %v216 = vunpack.c.l.b16 %v78
    %v217 = vunpack.c.h.b16 %v78
    %v218 = vunpack.c.l.b16 %v79
    %v219 = vunpack.c.h.b16 %v79
    %v220 = vunpack.c.l.b16 %v80
    %v221 = vunpack.c.h.b16 %v80
    %v222 = vunpack.c.l.b16 %v81
    %v223 = vunpack.c.h.b16 %v81
    %v224 = vunpack.c.l.b16 %v82
    %v225 = vunpack.c.h.b16 %v82
    %v226 = vunpack.c.l.b16 %v83
    %v227 = vunpack.c.h.b16 %v83
    %v228 = vunpack.c.l.b16 %v84
    %v229 = vunpack.c.h.b16 %v84
    %v230 = vunpack.c.l.b16 %v85
    %v231 = vunpack.c.h.b16 %v85
    %v232 = vunpack.c.l.b16 %v86
    %v233 = vunpack.c.h.b16 %v86
    %v234 = vunpack.c.l.b16 %v87
    %v235 = vunpack.c.h.b16 %v87
    %v236 = vunpack.c.l.b16 %v88
    %v237 = vunpack.c.h.b16 %v88
    %v238 = vunpack.c.l.b16 %v89
    %v239 = vunpack.c.h.b16 %v89
    %v240 = vunpack.c.l.b16 %v90
    %v241 = vunpack.c.h.b16 %v90
    %v242 = vunpack.c.l.b16 %v91
    %v243 = vunpack.c.h.b16 %v91
    %v244 = vunpack.c.l.b16 %v92
    %v245 = vunpack.c.h.b16 %v92
    %v246 = vunpack.c.l.b16 %v93
    %v247 = vunpack.c.h.b16 %v93
    %v248 = vunpack.c.l.b16 %v94
    %v249 = vunpack.c.h.b16 %v94
    %v250 = vunpack.c.l.b16 %v95
    %v251 = vunpack.c.h.b16 %v95
    %v252 = vunpack.c.l.b16 %v96
    %v253 = vunpack.c.h.b16 %v96
    %v254 = vunpack.c.l.b16 %v97
    %v255 = vunpack.c.h.b16 %v97
    %v256 = vunpack.c.l.b16 %v98
    %v257 = vunpack.c.h.b16 %v98
    %v258 = vunpack.c.l.b16 %v99
    %v259 = vunpack.c.h.b16 %v99
    %v260 = vunpack.c.l.b16 %v100
    %v261 = vunpack.c.h.b16 %v100
    %v262 = vunpack.c.l.b16 %v101
    %v263 = vunpack.c.h.b16 %v101
    %v264 = vunpack.c.l.b16 %v102
    %v265 = vunpack.c.h.b16 %v102
    %v266 = vunpack.c.l.b16 %v103
    %v267 = vunpack.c.h.b16 %v103
    %v268 = vunpack.c.l.b16 %v104
    %v269 = vunpack.c.h.b16 %v104
    %v270 = vunpack.c.l.b16 %v105
    %v271 = vunpack.c.h.b16 %v105
    %v272 = vunpack.c.l.b16 %v106
    %v273 = vunpack.c.h.b16 %v106
    %v274 = vpack.c.b16 %v214, %v210
    %v275 = vpack.c.b16 %v215, %v211
    %v276 = vpack.c.b16 %v216, %v212
    %v277 = vpack.c.b16 %v217, %v213
    %v278 = vpack.c.b16 %v222, %v218
    %v279 = vpack.c.b16 %v223, %v219
    %v280 = vpack.c.b16 %v224, %v220
    %v281 = vpack.c.b16 %v225, %v221
    %v282 = vpack.c.b16 %v230, %v226
    %v283 = vpack.c.b16 %v231, %v227
    %v284 = vpack.c.b16 %v232, %v228
    %v285 = vpack.c.b16 %v233, %v229
    %v286 = vpack.c.b16 %v238, %v234
    %v287 = vpack.c.b16 %v239, %v235
    %v288 = vpack.c.b16 %v240, %v236
    %v289 = vpack.c.b16 %v241, %v237
    %v290 = vpack.c.b16 %v246, %v242
    %v291 = vpack.c.b16 %v247, %v243
    %v292 = vpack.c.b16 %v248, %v244
    %v293 = vpack.c.b16 %v249, %v245
    %v294 = vpack.c.b16 %v254, %v250
    %v295 = vpack.c.b16 %v255, %v251
    %v296 = vpack.c.b16 %v256, %v252
    %v297 = vpack.c.b16 %v257, %v253
    %v298 = vpack.c.b16 %v262, %v258
    %v299 = vpack.c.b16 %v263, %v259
    %v300 = vpack.c.b16 %v264, %v260
    %v301 = vpack.c.b16 %v265, %v261
    %v302 = vpack.c.b16 %v270, %v266
    %v303 = vpack.c.b16 %v271, %v267
    %v304 = vpack.c.b16 %v272, %v268
    %v305 = vpack.c.b16 %v273, %v269
    %v402 = vunpack.c.l.b16 %v107
    %v403 = vunpack.c.l.b16 %v108
    %v404 = vunpack.c.l.b16 %v109
    %v405 = vunpack.c.l.b16 %v110
    %v406 = vunpack.c.l.b16 %v111
    %v407 = vunpack.c.l.b16 %v112
    %v408 = vunpack.c.l.b16 %v113
    %v409 = vunpack.c.l.b16 %v114
    %v410 = vunpack.c.l.b16 %v115
    %v411 = vunpack.c.l.b16 %v116
    %v412 = vunpack.c.l.b16 %v117
    %v413 = vunpack.c.l.b16 %v118
    %v414 = vunpack.c.l.b16 %v119
    %v415 = vunpack.c.l.b16 %v120
    %v416 = vunpack.c.l.b16 %v121
    %v417 = vunpack.c.l.b16 %v122
    %v418 = vunpack.c.l.b16 %v123
    %v419 = vunpack.c.l.b16 %v124
    %v420 = vunpack.c.l.b16 %v125
    %v421 = vunpack.c.l.b16 %v126
    %v422 = vunpack.c.l.b16 %v127
    %v423 = vunpack.c.l.b16 %v128
    %v424 = vunpack.c.l.b16 %v129
    %v425 = vunpack.c.l.b16 %v130
    %v426 = vunpack.c.l.b16 %v131
    %v427 = vunpack.c.l.b16 %v132
    %v428 = vunpack.c.l.b16 %v133
    %v429 = vunpack.c.l.b16 %v134
    %v430 = vunpack.c.l.b16 %v135
    %v431 = vunpack.c.l.b16 %v136
    %v432 = vunpack.c.l.b16 %v137
    %v433 = vunpack.c.l.b16 %v138
    %v434 = vunpack.c.l.b16 %v139
    %v435 = vunpack.c.l.b16 %v140
    %v436 = vunpack.c.l.b16 %v141
    %v437 = vunpack.c.l.b16 %v142
    %v438 = vunpack.c.l.b16 %v143
    %v439 = vunpack.c.l.b16 %v144
    %v440 = vunpack.c.l.b16 %v145
    %v441 = vunpack.c.l.b16 %v146
    %v442 = vunpack.c.l.b16 %v147
    %v443 = vunpack.c.l.b16 %v148
    %v444 = vunpack.c.l.b16 %v149
    %v445 = vunpack.c.l.b16 %v150
    %v446 = vunpack.c.l.b16 %v151
    %v447 = vunpack.c.l.b16 %v152
    %v448 = vunpack.c.l.b16 %v153
    %v449 = vunpack.c.l.b16 %v154
    %v450 = vunpack.c.l.b16 %v155
    %v451 = vunpack.c.l.b16 %v156
    %v452 = vunpack.c.l.b16 %v157
    %v453 = vunpack.c.l.b16 %v158
    %v454 = vunpack.c.l.b16 %v159
    %v455 = vunpack.c.l.b16 %v160
    %v456 = vunpack.c.l.b16 %v161
    %v457 = vunpack.c.l.b16 %v162
    %v458 = vunpack.c.l.b16 %v163
    %v459 = vunpack.c.l.b16 %v164
    %v460 = vunpack.c.l.b16 %v165
    %v461 = vunpack.c.l.b16 %v166
    %v462 = vunpack.c.l.b16 %v167
    %v463 = vunpack.c.l.b16 %v168
    %v464 = vunpack.c.l.b16 %v169
    %v465 = vunpack.c.l.b16 %v170
    %v466 = vpack.c.b16 %v403, %v402
    %v467 = vpack.c.b16 %v405, %v404
    %v468 = vpack.c.b16 %v407, %v406
    %v469 = vpack.c.b16 %v409, %v408
    %v470 = vpack.c.b16 %v411, %v410
    %v471 = vpack.c.b16 %v413, %v412
    %v472 = vpack.c.b16 %v415, %v414
    %v473 = vpack.c.b16 %v417, %v416
    %v474 = vpack.c.b16 %v419, %v418
    %v475 = vpack.c.b16 %v421, %v420
    %v476 = vpack.c.b16 %v423, %v422
    %v477 = vpack.c.b16 %v425, %v424
    %v478 = vpack.c.b16 %v427, %v426
    %v479 = vpack.c.b16 %v429, %v428
    %v480 = vpack.c.b16 %v431, %v430
    %v481 = vpack.c.b16 %v433, %v432
    %v482 = vpack.c.b16 %v435, %v434
    %v483 = vpack.c.b16 %v437, %v436
    %v484 = vpack.c.b16 %v439, %v438
    %v485 = vpack.c.b16 %v441, %v440
    %v486 = vpack.c.b16 %v443, %v442
    %v487 = vpack.c.b16 %v445, %v444
    %v488 = vpack.c.b16 %v447, %v446
    %v489 = vpack.c.b16 %v449, %v448
    %v490 = vpack.c.b16 %v451, %v450
    %v491 = vpack.c.b16 %v453, %v452
    %v492 = vpack.c.b16 %v455, %v454
    %v493 = vpack.c.b16 %v457, %v456
    %v494 = vpack.c.b16 %v459, %v458
    %v495 = vpack.c.b16 %v461, %v460
    %v496 = vpack.c.b16 %v463, %v462
    %v497 = vpack.c.b16 %v465, %v464
    %530 = vmatprep.subr.bf16.mxu0 0
    %531 = vmatpush1.bf16.msra.mxu0 %v473
    %532 = vmatprep.subr.bf16.mxu0 0
    %533 = vmatpush1.bf16.msra.mxu0 %v472
    %534 = vmatprep.subr.bf16.mxu0 0
    %535 = vmatpush1.bf16.msra.mxu0 %v471
    %536 = vmatprep.subr.bf16.mxu0 0
    %537 = vmatpush1.bf16.msra.mxu0 %v470
    %538 = vmatprep.subr.bf16.mxu0 0
    %539 = vmatpush1.bf16.msra.mxu0 %v469
    %540 = vmatprep.subr.bf16.mxu0 0
    %541 = vmatpush1.bf16.msra.mxu0 %v468
    %542 = vmatprep.subr.bf16.mxu0 0
    %543 = vmatpush1.bf16.msra.mxu0 %v467
    %544 = vmatprep.subr.bf16.mxu0 0
    %545 = vmatpush1.bf16.msra.mxu0 %v466
    %546 = vmatprep.subr.bf16.mxu0 0
    %547 = vmatpush2.bf16.msra.mxu0 %v481
    %548 = vmatprep.subr.bf16.mxu0 0
    %549 = vmatpush2.bf16.msra.mxu0 %v480
    %550 = vmatprep.subr.bf16.mxu0 0
    %551 = vmatpush2.bf16.msra.mxu0 %v479
    %552 = vmatprep.subr.bf16.mxu0 0
    %553 = vmatpush2.bf16.msra.mxu0 %v478
    %554 = vmatprep.subr.bf16.mxu0 0
    %555 = vmatpush2.bf16.msra.mxu0 %v477
    %556 = vmatprep.subr.bf16.mxu0 0
    %557 = vmatpush2.bf16.msra.mxu0 %v476
    %558 = vmatprep.subr.bf16.mxu0 0
    %559 = vmatpush2.bf16.msra.mxu0 %v475
    %560 = vmatprep.subr.bf16.mxu0 0
    %561 = vmatpush2.bf16.msra.mxu0 %v474
    %562 = vmatprep.mubr.bf16.mxu0 %v275
    %563 = vmatmul.mubr.bf16.gmra.mxu0 %v274
    %v564 = vpop.f32.mrf.mxu0
    %v565 = vadd.f32 %v176, %v564
    %v566 = vpop.f32.mrf.mxu0
    %v567 = vpop.f32.mrf.mxu0
    %v568 = vadd.f32 %v176, %v567
    %v569 = vpop.f32.mrf.mxu0
    %570 = vmatprep.mubr.bf16.mxu0 %v279
    %571 = vmatmul.mubr.bf16.gmra.mxu0 %v278
    %v572 = vpop.f32.mrf.mxu0
    %v573 = vadd.f32 %v176, %v572
    %v574 = vpop.f32.mrf.mxu0
    %v575 = vpop.f32.mrf.mxu0
    %v576 = vadd.f32 %v176, %v575
    %v577 = vpop.f32.mrf.mxu0
    %578 = vmatprep.mubr.bf16.mxu0 %v283
    %579 = vmatmul.mubr.bf16.gmra.mxu0 %v282
    %v580 = vpop.f32.mrf.mxu0
    %v581 = vadd.f32 %v176, %v580
    %v582 = vpop.f32.mrf.mxu0
    %v583 = vpop.f32.mrf.mxu0
    %v584 = vadd.f32 %v176, %v583
    %v585 = vpop.f32.mrf.mxu0
    %586 = vmatprep.mubr.bf16.mxu0 %v287
    %587 = vmatmul.mubr.bf16.gmra.mxu0 %v286
    %v588 = vpop.f32.mrf.mxu0
    %v589 = vadd.f32 %v176, %v588
    %v590 = vpop.f32.mrf.mxu0
    %v591 = vpop.f32.mrf.mxu0
    %v592 = vadd.f32 %v176, %v591
    %v593 = vpop.f32.mrf.mxu0
    %594 = vmatprep.mubr.bf16.mxu0 %v291
    %595 = vmatmul.mubr.bf16.gmra.mxu0 %v290
    %v596 = vpop.f32.mrf.mxu0
    %v597 = vadd.f32 %v176, %v596
    %v598 = vpop.f32.mrf.mxu0
    %v599 = vpop.f32.mrf.mxu0
    %v600 = vadd.f32 %v176, %v599
    %v601 = vpop.f32.mrf.mxu0
    %602 = vmatprep.mubr.bf16.mxu0 %v295
    %603 = vmatmul.mubr.bf16.gmra.mxu0 %v294
    %v604 = vpop.f32.mrf.mxu0
    %v605 = vadd.f32 %v176, %v604
    %v606 = vpop.f32.mrf.mxu0
    %v607 = vpop.f32.mrf.mxu0
    %v608 = vadd.f32 %v176, %v607
    %v609 = vpop.f32.mrf.mxu0
    %610 = vmatprep.mubr.bf16.mxu0 %v299
    %611 = vmatmul.mubr.bf16.gmra.mxu0 %v298
    %v612 = vpop.f32.mrf.mxu0
    %v613 = vadd.f32 %v176, %v612
    %v614 = vpop.f32.mrf.mxu0
    %v615 = vpop.f32.mrf.mxu0
    %v616 = vadd.f32 %v176, %v615
    %v617 = vpop.f32.mrf.mxu0
    %618 = vmatprep.mubr.bf16.mxu0 %v303
    %619 = vmatmul.mubr.bf16.gmra.mxu0 %v302
    %v620 = vpop.f32.mrf.mxu0
    %v621 = vadd.f32 %v176, %v620
    %v622 = vpop.f32.mrf.mxu0
    %v623 = vpop.f32.mrf.mxu0
    %v624 = vadd.f32 %v176, %v623
    %v625 = vpop.f32.mrf.mxu0
    %626 = vdwg.mxu0
    %627 = vmatprep.subr.bf16.mxu0 0
    %628 = vmatpush1.bf16.msra.mxu0 %v489
    %629 = vmatprep.subr.bf16.mxu0 0
    %630 = vmatpush1.bf16.msra.mxu0 %v488
    %631 = vmatprep.subr.bf16.mxu0 0
    %632 = vmatpush1.bf16.msra.mxu0 %v487
    %633 = vmatprep.subr.bf16.mxu0 0
    %634 = vmatpush1.bf16.msra.mxu0 %v486
    %635 = vmatprep.subr.bf16.mxu0 0
    %636 = vmatpush1.bf16.msra.mxu0 %v485
    %637 = vmatprep.subr.bf16.mxu0 0
    %638 = vmatpush1.bf16.msra.mxu0 %v484
    %639 = vmatprep.subr.bf16.mxu0 0
    %640 = vmatpush1.bf16.msra.mxu0 %v483
    %641 = vmatprep.subr.bf16.mxu0 0
    %642 = vmatpush1.bf16.msra.mxu0 %v482
    %643 = vmatprep.subr.bf16.mxu0 0
    %644 = vmatpush2.bf16.msra.mxu0 %v497
    %645 = vmatprep.subr.bf16.mxu0 0
    %646 = vmatpush2.bf16.msra.mxu0 %v496
    %647 = vmatprep.subr.bf16.mxu0 0
    %648 = vmatpush2.bf16.msra.mxu0 %v495
    %649 = vmatprep.subr.bf16.mxu0 0
    %650 = vmatpush2.bf16.msra.mxu0 %v494
    %651 = vmatprep.subr.bf16.mxu0 0
    %652 = vmatpush2.bf16.msra.mxu0 %v493
    %653 = vmatprep.subr.bf16.mxu0 0
    %654 = vmatpush2.bf16.msra.mxu0 %v492
    %655 = vmatprep.subr.bf16.mxu0 0
    %656 = vmatpush2.bf16.msra.mxu0 %v491
    %657 = vmatprep.subr.bf16.mxu0 0
    %658 = vmatpush2.bf16.msra.mxu0 %v490
    %659 = vmatprep.mubr.bf16.mxu0 %v277
    %660 = vmatmul.mubr.bf16.gmra.mxu0 %v276
    %v661 = vpop.f32.mrf.mxu0
    %v662 = vadd.f32 %v565, %v661
    %v663 = vpop.f32.mrf.mxu0
    %v664 = vpop.f32.mrf.mxu0
    %v665 = vadd.f32 %v568, %v664
    %v666 = vpop.f32.mrf.mxu0
    %667 = vmatprep.mubr.bf16.mxu0 %v281
    %668 = vmatmul.mubr.bf16.gmra.mxu0 %v280
    %v669 = vpop.f32.mrf.mxu0
    %v670 = vadd.f32 %v573, %v669
    %v671 = vpop.f32.mrf.mxu0
    %v672 = vpop.f32.mrf.mxu0
    %v673 = vadd.f32 %v576, %v672
    %v674 = vpop.f32.mrf.mxu0
    %675 = vmatprep.mubr.bf16.mxu0 %v285
    %676 = vmatmul.mubr.bf16.gmra.mxu0 %v284
    %v677 = vpop.f32.mrf.mxu0
    %v678 = vadd.f32 %v581, %v677
    %v679 = vpop.f32.mrf.mxu0
    %v680 = vpop.f32.mrf.mxu0
    %v681 = vadd.f32 %v584, %v680
    %v682 = vpop.f32.mrf.mxu0
    %683 = vmatprep.mubr.bf16.mxu0 %v289
    %684 = vmatmul.mubr.bf16.gmra.mxu0 %v288
    %v685 = vpop.f32.mrf.mxu0
    %v686 = vadd.f32 %v589, %v685
    %v687 = vpop.f32.mrf.mxu0
    %v688 = vpop.f32.mrf.mxu0
    %v689 = vadd.f32 %v592, %v688
    %v690 = vpop.f32.mrf.mxu0
    %691 = vmatprep.mubr.bf16.mxu0 %v293
    %692 = vmatmul.mubr.bf16.gmra.mxu0 %v292
    %v693 = vpop.f32.mrf.mxu0
    %v694 = vadd.f32 %v597, %v693
    %v695 = vpop.f32.mrf.mxu0
    %v696 = vpop.f32.mrf.mxu0
    %v697 = vadd.f32 %v600, %v696
    %v698 = vpop.f32.mrf.mxu0
    %699 = vmatprep.mubr.bf16.mxu0 %v297
    %700 = vmatmul.mubr.bf16.gmra.mxu0 %v296
    %v701 = vpop.f32.mrf.mxu0
    %v702 = vadd.f32 %v605, %v701
    %v703 = vpop.f32.mrf.mxu0
    %v704 = vpop.f32.mrf.mxu0
    %v705 = vadd.f32 %v608, %v704
    %v706 = vpop.f32.mrf.mxu0
    %707 = vmatprep.mubr.bf16.mxu0 %v301
    %708 = vmatmul.mubr.bf16.gmra.mxu0 %v300
    %v709 = vpop.f32.mrf.mxu0
    %v710 = vadd.f32 %v613, %v709
    %v711 = vpop.f32.mrf.mxu0
    %v712 = vpop.f32.mrf.mxu0
    %v713 = vadd.f32 %v616, %v712
    %v714 = vpop.f32.mrf.mxu0
    %715 = vmatprep.mubr.bf16.mxu0 %v305
    %716 = vmatmul.mubr.bf16.gmra.mxu0 %v304
    %v717 = vpop.f32.mrf.mxu0
    %v718 = vadd.f32 %v621, %v717
    %v719 = vpop.f32.mrf.mxu0
    %v720 = vpop.f32.mrf.mxu0
    %v721 = vadd.f32 %v624, %v720
    %v722 = vpop.f32.mrf.mxu0
    %723 = vdwg.mxu0
    %v724 = vmax.f32 %v662, 0.0
    %v725 = vmax.f32 %v665, 0.0
    %v726 = vmax.f32 %v670, 0.0
    %v727 = vmax.f32 %v673, 0.0
    %v728 = vmax.f32 %v678, 0.0
    %v729 = vmax.f32 %v681, 0.0
    %v730 = vmax.f32 %v686, 0.0
    %v731 = vmax.f32 %v689, 0.0
    %v732 = vmax.f32 %v694, 0.0
    %v733 = vmax.f32 %v697, 0.0
    %v734 = vmax.f32 %v702, 0.0
    %v735 = vmax.f32 %v705, 0.0
    %v736 = vmax.f32 %v710, 0.0
    %v737 = vmax.f32 %v713, 0.0
    %v738 = vmax.f32 %v718, 0.0
    %v739 = vmax.f32 %v721, 0.0
    %v740 = vpack.c.bf16 %v725, %v724
    %v741 = vpack.c.bf16 %v727, %v726
    %v742 = vpack.c.bf16 %v729, %v728
    %v743 = vpack.c.bf16 %v731, %v730
    %v744 = vpack.c.bf16 %v733, %v732
    %v745 = vpack.c.bf16 %v735, %v734
    %v746 = vpack.c.bf16 %v737, %v736
    %v747 = vpack.c.bf16 %v739, %v738
    %v756 = vunpack.c.l.b16 %v740
    %v757 = vunpack.c.h.b16 %v740
    %v758 = vunpack.c.l.b16 %v741
    %v759 = vunpack.c.h.b16 %v741
    %v760 = vunpack.c.l.b16 %v742
    %v761 = vunpack.c.h.b16 %v742
    %v762 = vunpack.c.l.b16 %v743
    %v763 = vunpack.c.h.b16 %v743
    %v764 = vunpack.c.l.b16 %v744
    %v765 = vunpack.c.h.b16 %v744
    %v766 = vunpack.c.l.b16 %v745
    %v767 = vunpack.c.h.b16 %v745
    %v768 = vunpack.c.l.b16 %v746
    %v769 = vunpack.c.h.b16 %v746
    %v770 = vunpack.c.l.b16 %v747
    %v771 = vunpack.c.h.b16 %v747
    %v772 = vpack.c.b16 %v756, %v756
    %v773 = vpack.c.b16 %v757, %v757
    %v774 = vpack.c.b16 %v758, %v758
    %v775 = vpack.c.b16 %v759, %v759
    %v776 = vpack.c.b16 %v760, %v760
    %v777 = vpack.c.b16 %v761, %v761
    %v778 = vpack.c.b16 %v762, %v762
    %v779 = vpack.c.b16 %v763, %v763
    %v780 = vpack.c.b16 %v764, %v764
    %v781 = vpack.c.b16 %v765, %v765
    %v782 = vpack.c.b16 %v766, %v766
    %v783 = vpack.c.b16 %v767, %v767
    %v784 = vpack.c.b16 %v768, %v768
    %v785 = vpack.c.b16 %v769, %v769
    %v786 = vpack.c.b16 %v770, %v770
    %v787 = vpack.c.b16 %v771, %v771
    %788 = vst [vmem:[#allocation2] sm:$0xf] 0
    %789 = vst [vmem:[#allocation2 + $0x4] sm:$0x1] 0
    %790 = vst [vmem:[#allocation2 + $0x50] sm:$0xf] 0
    %791 = vst [vmem:[#allocation2 + $0x54] sm:$0x1] 0
    %s792 = scalar_lea.vmem [#allocation2], 72
    %793 = vst [vmem:[%s792] sm:$0xf] 0
    %794 = vst [vmem:[%s792 + $0x4] sm:$0x1] 0
    %795 = vst [vmem:[%s792 + $0x50] sm:$0xf] 0
    %796 = vst [vmem:[%s792 + $0x54] sm:$0x1] 0
    %vm797 = vcmask 1040384
    %vm798 = vsmask.f32 256
    %vm799 = vmand %vm797, %vm798
    %v800 = vld [vmem:[#allocation2] sm:$0x1]
    %v801 = vsel %vm799, 0, %v800
    %802 = vst [vmem:[#allocation2] sm:$0x1] %v801
    %v803 = vld [vmem:[#allocation2 + $0x8] sm:$0x1]
    %v804 = vsel %vm799, 0, %v803
    %805 = vst [vmem:[#allocation2 + $0x8] sm:$0x1] %v804
    %v806 = vld [vmem:[#allocation2 + $0x10] sm:$0x1]
    %v807 = vsel %vm799, 0, %v806
    %808 = vst [vmem:[#allocation2 + $0x10] sm:$0x1] %v807
    %v809 = vld [vmem:[#allocation2 + $0x18] sm:$0x1]
    %v810 = vsel %vm799, 0, %v809
    %811 = vst [vmem:[#allocation2 + $0x18] sm:$0x1] %v810
    %v812 = vld [vmem:[#allocation2 + $0x20] sm:$0x1]
    %v813 = vsel %vm799, 0, %v812
    %814 = vst [vmem:[#allocation2 + $0x20] sm:$0x1] %v813
    %v815 = vld [vmem:[#allocation2 + $0x28] sm:$0x1]
    %v816 = vsel %vm799, 0, %v815
    %817 = vst [vmem:[#allocation2 + $0x28] sm:$0x1] %v816
    %v818 = vld [vmem:[#allocation2 + $0x30] sm:$0x1]
    %v819 = vsel %vm799, 0, %v818
    %820 = vst [vmem:[#allocation2 + $0x30] sm:$0x1] %v819
    %v821 = vld [vmem:[#allocation2 + $0x38] sm:$0x1]
    %v822 = vsel %vm799, 0, %v821
    %823 = vst [vmem:[#allocation2 + $0x38] sm:$0x1] %v822
    %v824 = vld [vmem:[#allocation2 + $0x40] sm:$0x1]
    %v825 = vsel %vm799, 0, %v824
    %826 = vst [vmem:[#allocation2 + $0x40] sm:$0x1] %v825
    %v827 = vld [vmem:[#allocation2 + $0x48] sm:$0x1]
    %v828 = vsel %vm799, 0, %v827
    %829 = vst [vmem:[#allocation2 + $0x48] sm:$0x1] %v828
    %v830 = vld [vmem:[#allocation2 + $0x50] sm:$0x1]
    %v831 = vsel %vm799, 0, %v830
    %832 = vst [vmem:[#allocation2 + $0x50] sm:$0x1] %v831
    %v833 = vld [vmem:[#allocation2 + $0x58] sm:$0x1]
    %v834 = vsel %vm799, 0, %v833
    %835 = vst [vmem:[#allocation2 + $0x58] sm:$0x1] %v834
    %v836 = vld [vmem:[#allocation2 + $0x60] sm:$0x1]
    %v837 = vsel %vm799, 0, %v836
    %838 = vst [vmem:[#allocation2 + $0x60] sm:$0x1] %v837
    %v839 = vld [vmem:[#allocation2 + $0x68] sm:$0x1]
    %v840 = vsel %vm799, 0, %v839
    %841 = vst [vmem:[#allocation2 + $0x68] sm:$0x1] %v840
    %v842 = vld [vmem:[#allocation2 + $0x70] sm:$0x1]
    %v843 = vsel %vm799, 0, %v842
    %844 = vst [vmem:[#allocation2 + $0x70] sm:$0x1] %v843
    %v845 = vld [vmem:[#allocation2 + $0x78] sm:$0x1]
    %v846 = vsel %vm799, 0, %v845
    %847 = vst [vmem:[#allocation2 + $0x78] sm:$0x1] %v846
    %v848 = vld [vmem:[#allocation2 + $0x80] sm:$0x1]
    %v849 = vsel %vm799, 0, %v848
    %850 = vst [vmem:[#allocation2 + $0x80] sm:$0x1] %v849
    %v851 = vld [vmem:[#allocation2 + $0x88] sm:$0x1]
    %v852 = vsel %vm799, 0, %v851
    %853 = vst [vmem:[#allocation2 + $0x88] sm:$0x1] %v852
    %v854 = vld [vmem:[#allocation2 + $0x90] sm:$0x1]
    %v855 = vsel %vm799, 0, %v854
    %856 = vst [vmem:[#allocation2 + $0x90] sm:$0x1] %v855
    %v857 = vld [vmem:[#allocation2 + $0x98] sm:$0x1]
    %v858 = vsel %vm799, 0, %v857
    %859 = vst [vmem:[#allocation2 + $0x98] sm:$0x1] %v858
    %vm860 = vsmask.f32 7938
    %vm861 = vmand %vm797, %vm860
    %v862 = vld [vmem:[#allocation2 + $0x4] sm:$0x1]
    %v863 = vsel %vm861, 0, %v862
    %864 = vst [vmem:[#allocation2 + $0x4] sm:$0x1] %v863
    %v865 = vld [vmem:[#allocation2 + $0xc] sm:$0x1]
    %v866 = vsel %vm861, 0, %v865
    %867 = vst [vmem:[#allocation2 + $0xc] sm:$0x1] %v866
    %v868 = vld [vmem:[#allocation2 + $0x14] sm:$0x1]
    %v869 = vsel %vm861, 0, %v868
    %870 = vst [vmem:[#allocation2 + $0x14] sm:$0x1] %v869
    %v871 = vld [vmem:[#allocation2 + $0x1c] sm:$0x1]
    %v872 = vsel %vm861, 0, %v871
    %873 = vst [vmem:[#allocation2 + $0x1c] sm:$0x1] %v872
    %v874 = vld [vmem:[#allocation2 + $0x24] sm:$0x1]
    %v875 = vsel %vm861, 0, %v874
    %876 = vst [vmem:[#allocation2 + $0x24] sm:$0x1] %v875
    %v877 = vld [vmem:[#allocation2 + $0x2c] sm:$0x1]
    %v878 = vsel %vm861, 0, %v877
    %879 = vst [vmem:[#allocation2 + $0x2c] sm:$0x1] %v878
    %v880 = vld [vmem:[#allocation2 + $0x34] sm:$0x1]
    %v881 = vsel %vm861, 0, %v880
    %882 = vst [vmem:[#allocation2 + $0x34] sm:$0x1] %v881
    %v883 = vld [vmem:[#allocation2 + $0x3c] sm:$0x1]
    %v884 = vsel %vm861, 0, %v883
    %885 = vst [vmem:[#allocation2 + $0x3c] sm:$0x1] %v884
    %v886 = vld [vmem:[#allocation2 + $0x44] sm:$0x1]
    %v887 = vsel %vm861, 0, %v886
    %888 = vst [vmem:[#allocation2 + $0x44] sm:$0x1] %v887
    %v889 = vld [vmem:[#allocation2 + $0x4c] sm:$0x1]
    %v890 = vsel %vm861, 0, %v889
    %891 = vst [vmem:[#allocation2 + $0x4c] sm:$0x1] %v890
    %v892 = vld [vmem:[#allocation2 + $0x54] sm:$0x1]
    %v893 = vsel %vm861, 0, %v892
    %894 = vst [vmem:[#allocation2 + $0x54] sm:$0x1] %v893
    %v895 = vld [vmem:[#allocation2 + $0x5c] sm:$0x1]
    %v896 = vsel %vm861, 0, %v895
    %897 = vst [vmem:[#allocation2 + $0x5c] sm:$0x1] %v896
    %v898 = vld [vmem:[#allocation2 + $0x64] sm:$0x1]
    %v899 = vsel %vm861, 0, %v898
    %900 = vst [vmem:[#allocation2 + $0x64] sm:$0x1] %v899
    %v901 = vld [vmem:[#allocation2 + $0x6c] sm:$0x1]
    %v902 = vsel %vm861, 0, %v901
    %903 = vst [vmem:[#allocation2 + $0x6c] sm:$0x1] %v902
    %v904 = vld [vmem:[#allocation2 + $0x74] sm:$0x1]
    %v905 = vsel %vm861, 0, %v904
    %906 = vst [vmem:[#allocation2 + $0x74] sm:$0x1] %v905
    %v907 = vld [vmem:[#allocation2 + $0x7c] sm:$0x1]
    %v908 = vsel %vm861, 0, %v907
    %909 = vst [vmem:[#allocation2 + $0x7c] sm:$0x1] %v908
    %v910 = vld [vmem:[#allocation2 + $0x84] sm:$0x1]
    %v911 = vsel %vm861, 0, %v910
    %912 = vst [vmem:[#allocation2 + $0x84] sm:$0x1] %v911
    %v913 = vld [vmem:[#allocation2 + $0x8c] sm:$0x1]
    %v914 = vsel %vm861, 0, %v913
    %915 = vst [vmem:[#allocation2 + $0x8c] sm:$0x1] %v914
    %v916 = vld [vmem:[#allocation2 + $0x94] sm:$0x1]
    %v917 = vsel %vm861, 0, %v916
    %918 = vst [vmem:[#allocation2 + $0x94] sm:$0x1] %v917
    %v919 = vld [vmem:[#allocation2 + $0x9c] sm:$0x1]
    %v920 = vsel %vm861, 0, %v919
    %921 = vst [vmem:[#allocation2 + $0x9c] sm:$0x1] %v920
    %v923 = vshrl.u32 %v772, 16
    %v925 = vrot.slane %v923, 7
    %v926 = vshll.u32 %v772, 16
    %v928 = vor.u32 %v925, %v926
    %v929 = vrot.slane %v925, 4
    %v931 = vshrl.u32 %v773, 16
    %v933 = vrot.slane %v931, 7
    %v934 = vshll.u32 %v773, 16
    %v936 = vor.u32 %v933, %v934
    %v937 = vrot.slane %v933, 4
    %v939 = vshrl.u32 %v774, 16
    %v941 = vrot.slane %v939, 7
    %v942 = vshll.u32 %v774, 16
    %v944 = vor.u32 %v941, %v942
    %v945 = vrot.slane %v941, 4
    %v947 = vshrl.u32 %v775, 16
    %v949 = vrot.slane %v947, 7
    %v950 = vshll.u32 %v775, 16
    %v952 = vor.u32 %v949, %v950
    %v953 = vrot.slane %v949, 4
    %v955 = vshrl.u32 %v776, 16
    %v957 = vrot.slane %v955, 7
    %v958 = vshll.u32 %v776, 16
    %v960 = vor.u32 %v957, %v958
    %v961 = vrot.slane %v957, 4
    %v963 = vshrl.u32 %v777, 16
    %v965 = vrot.slane %v963, 7
    %v966 = vshll.u32 %v777, 16
    %v968 = vor.u32 %v965, %v966
    %v969 = vrot.slane %v965, 4
    %v971 = vshrl.u32 %v778, 16
    %v973 = vrot.slane %v971, 7
    %v974 = vshll.u32 %v778, 16
    %v976 = vor.u32 %v973, %v974
    %v977 = vrot.slane %v973, 4
    %v979 = vshrl.u32 %v779, 16
    %v981 = vrot.slane %v979, 7
    %v982 = vshll.u32 %v779, 16
    %v984 = vor.u32 %v981, %v982
    %v985 = vrot.slane %v981, 4
    %v987 = vshrl.u32 %v780, 16
    %v989 = vrot.slane %v987, 7
    %v990 = vshll.u32 %v780, 16
    %v992 = vor.u32 %v989, %v990
    %v993 = vrot.slane %v989, 4
    %v995 = vshrl.u32 %v781, 16
    %v997 = vrot.slane %v995, 7
    %v998 = vshll.u32 %v781, 16
    %v1000 = vor.u32 %v997, %v998
    %v1001 = vrot.slane %v997, 4
    %v1003 = vshrl.u32 %v782, 16
    %v1005 = vrot.slane %v1003, 7
    %v1006 = vshll.u32 %v782, 16
    %v1008 = vor.u32 %v1005, %v1006
    %v1009 = vrot.slane %v1005, 4
    %v1011 = vshrl.u32 %v783, 16
    %v1013 = vrot.slane %v1011, 7
    %v1014 = vshll.u32 %v783, 16
    %v1016 = vor.u32 %v1013, %v1014
    %v1017 = vrot.slane %v1013, 4
    %v1019 = vshrl.u32 %v784, 16
    %v1021 = vrot.slane %v1019, 7
    %v1022 = vshll.u32 %v784, 16
    %v1024 = vor.u32 %v1021, %v1022
    %v1025 = vrot.slane %v1021, 4
    %v1027 = vshrl.u32 %v785, 16
    %v1029 = vrot.slane %v1027, 7
    %v1030 = vshll.u32 %v785, 16
    %v1032 = vor.u32 %v1029, %v1030
    %v1033 = vrot.slane %v1029, 4
    %v1035 = vshrl.u32 %v786, 16
    %v1037 = vrot.slane %v1035, 7
    %v1038 = vshll.u32 %v786, 16
    %v1040 = vor.u32 %v1037, %v1038
    %v1041 = vrot.slane %v1037, 4
    %v1043 = vshrl.u32 %v787, 16
    %v1045 = vrot.slane %v1043, 7
    %v1046 = vshll.u32 %v787, 16
    %v1048 = vor.u32 %v1045, %v1046
    %v1049 = vrot.slane %v1045, 4
    %s1082 = scalar_lea.vmem [#allocation2], 8
    %vm1083 = vcmask 1043456
    %vm1084 = vmand %vm1083, %vm860
    %v1085 = vld [vmem:[%s1082] sm:$0xf]
    %v1086 = vsel %vm1084, %v928, %v1085
    %1087 = vst [vmem:[%s1082] sm:$0xf] %v1086
    %v1088 = vld [vmem:[%s1082 + $0x4] sm:$0x1]
    %v1089 = vsel %vm799, %v929, %v1088
    %1090 = vst [vmem:[%s1082 + $0x4] sm:$0x1] %v1089
    %v1091 = vld [vmem:[%s1082 + $0x8] sm:$0xf]
    %v1092 = vsel %vm1084, %v936, %v1091
    %1093 = vst [vmem:[%s1082 + $0x8] sm:$0xf] %v1092
    %v1094 = vld [vmem:[%s1082 + $0xc] sm:$0x1]
    %v1095 = vsel %vm799, %v937, %v1094
    %1096 = vst [vmem:[%s1082 + $0xc] sm:$0x1] %v1095
    %v1097 = vld [vmem:[%s1082 + $0x10] sm:$0xf]
    %v1098 = vsel %vm1084, %v944, %v1097
    %1099 = vst [vmem:[%s1082 + $0x10] sm:$0xf] %v1098
    %v1100 = vld [vmem:[%s1082 + $0x14] sm:$0x1]
    %v1101 = vsel %vm799, %v945, %v1100
    %1102 = vst [vmem:[%s1082 + $0x14] sm:$0x1] %v1101
    %v1103 = vld [vmem:[%s1082 + $0x18] sm:$0xf]
    %v1104 = vsel %vm1084, %v952, %v1103
    %1105 = vst [vmem:[%s1082 + $0x18] sm:$0xf] %v1104
    %v1106 = vld [vmem:[%s1082 + $0x1c] sm:$0x1]
    %v1107 = vsel %vm799, %v953, %v1106
    %1108 = vst [vmem:[%s1082 + $0x1c] sm:$0x1] %v1107
    %v1109 = vld [vmem:[%s1082 + $0x20] sm:$0xf]
    %v1110 = vsel %vm1084, %v960, %v1109
    %1111 = vst [vmem:[%s1082 + $0x20] sm:$0xf] %v1110
    %v1112 = vld [vmem:[%s1082 + $0x24] sm:$0x1]
    %v1113 = vsel %vm799, %v961, %v1112
    %1114 = vst [vmem:[%s1082 + $0x24] sm:$0x1] %v1113
    %v1115 = vld [vmem:[%s1082 + $0x28] sm:$0xf]
    %v1116 = vsel %vm1084, %v968, %v1115
    %1117 = vst [vmem:[%s1082 + $0x28] sm:$0xf] %v1116
    %v1118 = vld [vmem:[%s1082 + $0x2c] sm:$0x1]
    %v1119 = vsel %vm799, %v969, %v1118
    %1120 = vst [vmem:[%s1082 + $0x2c] sm:$0x1] %v1119
    %v1121 = vld [vmem:[%s1082 + $0x30] sm:$0xf]
    %v1122 = vsel %vm1084, %v976, %v1121
    %1123 = vst [vmem:[%s1082 + $0x30] sm:$0xf] %v1122
    %v1124 = vld [vmem:[%s1082 + $0x34] sm:$0x1]
    %v1125 = vsel %vm799, %v977, %v1124
    %1126 = vst [vmem:[%s1082 + $0x34] sm:$0x1] %v1125
    %v1127 = vld [vmem:[%s1082 + $0x38] sm:$0xf]
    %v1128 = vsel %vm1084, %v984, %v1127
    %1129 = vst [vmem:[%s1082 + $0x38] sm:$0xf] %v1128
    %v1130 = vld [vmem:[%s1082 + $0x3c] sm:$0x1]
    %v1131 = vsel %vm799, %v985, %v1130
    %1132 = vst [vmem:[%s1082 + $0x3c] sm:$0x1] %v1131
    %v1133 = vld [vmem:[%s1082 + $0x50] sm:$0xf]
    %v1134 = vsel %vm1084, %v992, %v1133
    %1135 = vst [vmem:[%s1082 + $0x50] sm:$0xf] %v1134
    %v1136 = vld [vmem:[%s1082 + $0x54] sm:$0x1]
    %v1137 = vsel %vm799, %v993, %v1136
    %1138 = vst [vmem:[%s1082 + $0x54] sm:$0x1] %v1137
    %v1139 = vld [vmem:[%s1082 + $0x58] sm:$0xf]
    %v1140 = vsel %vm1084, %v1000, %v1139
    %1141 = vst [vmem:[%s1082 + $0x58] sm:$0xf] %v1140
    %v1142 = vld [vmem:[%s1082 + $0x5c] sm:$0x1]
    %v1143 = vsel %vm799, %v1001, %v1142
    %1144 = vst [vmem:[%s1082 + $0x5c] sm:$0x1] %v1143
    %v1145 = vld [vmem:[%s1082 + $0x60] sm:$0xf]
    %v1146 = vsel %vm1084, %v1008, %v1145
    %1147 = vst [vmem:[%s1082 + $0x60] sm:$0xf] %v1146
    %v1148 = vld [vmem:[%s1082 + $0x64] sm:$0x1]
    %v1149 = vsel %vm799, %v1009, %v1148
    %1150 = vst [vmem:[%s1082 + $0x64] sm:$0x1] %v1149
    %v1151 = vld [vmem:[%s1082 + $0x68] sm:$0xf]
    %v1152 = vsel %vm1084, %v1016, %v1151
    %1153 = vst [vmem:[%s1082 + $0x68] sm:$0xf] %v1152
    %v1154 = vld [vmem:[%s1082 + $0x6c] sm:$0x1]
    %v1155 = vsel %vm799, %v1017, %v1154
    %1156 = vst [vmem:[%s1082 + $0x6c] sm:$0x1] %v1155
    %v1157 = vld [vmem:[%s1082 + $0x70] sm:$0xf]
    %v1158 = vsel %vm1084, %v1024, %v1157
    %1159 = vst [vmem:[%s1082 + $0x70] sm:$0xf] %v1158
    %v1160 = vld [vmem:[%s1082 + $0x74] sm:$0x1]
    %v1161 = vsel %vm799, %v1025, %v1160
    %1162 = vst [vmem:[%s1082 + $0x74] sm:$0x1] %v1161
    %v1163 = vld [vmem:[%s1082 + $0x78] sm:$0xf]
    %v1164 = vsel %vm1084, %v1032, %v1163
    %1165 = vst [vmem:[%s1082 + $0x78] sm:$0xf] %v1164
    %v1166 = vld [vmem:[%s1082 + $0x7c] sm:$0x1]
    %v1167 = vsel %vm799, %v1033, %v1166
    %1168 = vst [vmem:[%s1082 + $0x7c] sm:$0x1] %v1167
    %v1169 = vld [vmem:[%s1082 + $0x80] sm:$0xf]
    %v1170 = vsel %vm1084, %v1040, %v1169
    %1171 = vst [vmem:[%s1082 + $0x80] sm:$0xf] %v1170
    %v1172 = vld [vmem:[%s1082 + $0x84] sm:$0x1]
    %v1173 = vsel %vm799, %v1041, %v1172
    %1174 = vst [vmem:[%s1082 + $0x84] sm:$0x1] %v1173
    %v1175 = vld [vmem:[%s1082 + $0x88] sm:$0xf]
    %v1176 = vsel %vm1084, %v1048, %v1175
    %1177 = vst [vmem:[%s1082 + $0x88] sm:$0xf] %v1176
    %v1178 = vld [vmem:[%s1082 + $0x8c] sm:$0x1]
    %v1179 = vsel %vm799, %v1049, %v1178
    %1180 = vst [vmem:[%s1082 + $0x8c] sm:$0x1] %v1179
    %v1181 = vld [vmem:[#allocation2] sm:$0xf]
    %v1182 = vld [vmem:[#allocation2 + $0x8] sm:$0xf]
    %v1183 = vld [vmem:[#allocation2 + $0x10] sm:$0xf]
    %v1184 = vld [vmem:[#allocation2 + $0x18] sm:$0xf]
    %v1185 = vld [vmem:[#allocation2 + $0x20] sm:$0xf]
    %v1186 = vld [vmem:[#allocation2 + $0x28] sm:$0xf]
    %v1187 = vld [vmem:[#allocation2 + $0x30] sm:$0xf]
    %v1188 = vld [vmem:[#allocation2 + $0x38] sm:$0xf]
    %v1189 = vld [vmem:[#allocation2 + $0x50] sm:$0xf]
    %v1190 = vld [vmem:[#allocation2 + $0x58] sm:$0xf]
    %v1191 = vld [vmem:[#allocation2 + $0x60] sm:$0xf]
    %v1192 = vld [vmem:[#allocation2 + $0x68] sm:$0xf]
    %v1193 = vld [vmem:[#allocation2 + $0x70] sm:$0xf]
    %v1194 = vld [vmem:[#allocation2 + $0x78] sm:$0xf]
    %v1195 = vld [vmem:[#allocation2 + $0x80] sm:$0xf]
    %v1196 = vld [vmem:[#allocation2 + $0x88] sm:$0xf]
    %1197 = vst [vmem:[#allocation3] sm:$0xf] %v1181
    %1198 = vst [vmem:[#allocation3 + $0x24] sm:$0xf] %v1182
    %1199 = vst [vmem:[#allocation3 + $0x48] sm:$0xf] %v1183
    %1200 = vst [vmem:[#allocation3 + $0x6c] sm:$0xf] %v1184
    %1201 = vst [vmem:[#allocation3 + $0x90] sm:$0xf] %v1185
    %1202 = vst [vmem:[#allocation3 + $0xb4] sm:$0xf] %v1186
    %1203 = vst [vmem:[#allocation3 + $0xd8] sm:$0xf] %v1187
    %1204 = vst [vmem:[#allocation3 + $0xfc] sm:$0xf] %v1188
    %1205 = vst [vmem:[#allocation3 + $0x120] sm:$0xf] %v1189
    %1206 = vst [vmem:[#allocation3 + $0x144] sm:$0xf] %v1190
    %1207 = vst [vmem:[#allocation3 + $0x168] sm:$0xf] %v1191
    %1208 = vst [vmem:[#allocation3 + $0x18c] sm:$0xf] %v1192
    %1209 = vst [vmem:[#allocation3 + $0x1b0] sm:$0xf] %v1193
    %1210 = vst [vmem:[#allocation3 + $0x1d4] sm:$0xf] %v1194
    %1211 = vst [vmem:[#allocation3 + $0x1f8] sm:$0xf] %v1195
    %1212 = vst [vmem:[#allocation3 + $0x21c] sm:$0xf] %v1196
    %v1213 = vld [vmem:[#allocation2] sm:$0xf]
    %v1214 = vld [vmem:[#allocation2 + $0x4] sm:$0x1]
    %v1215 = vld [vmem:[#allocation2 + $0x8] sm:$0xf]
    %v1216 = vld [vmem:[#allocation2 + $0xc] sm:$0x1]
    %v1217 = vld [vmem:[#allocation2 + $0x10] sm:$0xf]
    %v1218 = vld [vmem:[#allocation2 + $0x14] sm:$0x1]
    %v1219 = vld [vmem:[#allocation2 + $0x18] sm:$0xf]
    %v1220 = vld [vmem:[#allocation2 + $0x1c] sm:$0x1]
    %v1221 = vld [vmem:[#allocation2 + $0x20] sm:$0xf]
    %v1222 = vld [vmem:[#allocation2 + $0x24] sm:$0x1]
    %v1223 = vld [vmem:[#allocation2 + $0x28] sm:$0xf]
    %v1224 = vld [vmem:[#allocation2 + $0x2c] sm:$0x1]
    %v1225 = vld [vmem:[#allocation2 + $0x30] sm:$0xf]
    %v1226 = vld [vmem:[#allocation2 + $0x34] sm:$0x1]
    %v1227 = vld [vmem:[#allocation2 + $0x38] sm:$0xf]
    %v1228 = vld [vmem:[#allocation2 + $0x3c] sm:$0x1]
    %v1229 = vld [vmem:[#allocation2 + $0x50] sm:$0xf]
    %v1230 = vld [vmem:[#allocation2 + $0x54] sm:$0x1]
    %v1231 = vld [vmem:[#allocation2 + $0x58] sm:$0xf]
    %v1232 = vld [vmem:[#allocation2 + $0x5c] sm:$0x1]
    %v1233 = vld [vmem:[#allocation2 + $0x60] sm:$0xf]
    %v1234 = vld [vmem:[#allocation2 + $0x64] sm:$0x1]
    %v1235 = vld [vmem:[#allocation2 + $0x68] sm:$0xf]
    %v1236 = vld [vmem:[#allocation2 + $0x6c] sm:$0x1]
    %v1237 = vld [vmem:[#allocation2 + $0x70] sm:$0xf]
    %v1238 = vld [vmem:[#allocation2 + $0x74] sm:$0x1]
    %v1239 = vld [vmem:[#allocation2 + $0x78] sm:$0xf]
    %v1240 = vld [vmem:[#allocation2 + $0x7c] sm:$0x1]
    %v1241 = vld [vmem:[#allocation2 + $0x80] sm:$0xf]
    %v1242 = vld [vmem:[#allocation2 + $0x84] sm:$0x1]
    %v1243 = vld [vmem:[#allocation2 + $0x88] sm:$0xf]
    %v1244 = vld [vmem:[#allocation2 + $0x8c] sm:$0x1]
    %vm1245 = vsmask.f32 3328
    %vm1246 = vsmask.f32 7440
    %vm1247 = vmor %vm1245, %vm1246
    %v1249 = vshrl.u32 %v1213, 16
    %v1251 = vrot.slane %v1249, 4
    %v1252 = vshll.u32 %v1213, 16
    %v1254 = vrot.slane %v1252, 5
    %v1255 = vor.u32 %v1251, %v1254
    %v1256 = vrot.slane %v1255, 4
    %v1258 = vshll.u32 %v1214, 16
    %v1260 = vrot.slane %v1258, 5
    %v1261 = vsel %vm1247, %v1256, %v1260
    %v1263 = vshrl.u32 %v1215, 16
    %v1265 = vrot.slane %v1263, 4
    %v1266 = vshll.u32 %v1215, 16
    %v1268 = vrot.slane %v1266, 5
    %v1269 = vor.u32 %v1265, %v1268
    %v1270 = vrot.slane %v1269, 4
    %v1272 = vshll.u32 %v1216, 16
    %v1274 = vrot.slane %v1272, 5
    %v1275 = vsel %vm1247, %v1270, %v1274
    %v1277 = vshrl.u32 %v1217, 16
    %v1279 = vrot.slane %v1277, 4
    %v1280 = vshll.u32 %v1217, 16
    %v1282 = vrot.slane %v1280, 5
    %v1283 = vor.u32 %v1279, %v1282
    %v1284 = vrot.slane %v1283, 4
    %v1286 = vshll.u32 %v1218, 16
    %v1288 = vrot.slane %v1286, 5
    %v1289 = vsel %vm1247, %v1284, %v1288
    %v1291 = vshrl.u32 %v1219, 16
    %v1293 = vrot.slane %v1291, 4
    %v1294 = vshll.u32 %v1219, 16
    %v1296 = vrot.slane %v1294, 5
    %v1297 = vor.u32 %v1293, %v1296
    %v1298 = vrot.slane %v1297, 4
    %v1300 = vshll.u32 %v1220, 16
    %v1302 = vrot.slane %v1300, 5
    %v1303 = vsel %vm1247, %v1298, %v1302
    %v1305 = vshrl.u32 %v1221, 16
    %v1307 = vrot.slane %v1305, 4
    %v1308 = vshll.u32 %v1221, 16
    %v1310 = vrot.slane %v1308, 5
    %v1311 = vor.u32 %v1307, %v1310
    %v1312 = vrot.slane %v1311, 4
    %v1314 = vshll.u32 %v1222, 16
    %v1316 = vrot.slane %v1314, 5
    %v1317 = vsel %vm1247, %v1312, %v1316
    %v1319 = vshrl.u32 %v1223, 16
    %v1321 = vrot.slane %v1319, 4
    %v1322 = vshll.u32 %v1223, 16
    %v1324 = vrot.slane %v1322, 5
    %v1325 = vor.u32 %v1321, %v1324
    %v1326 = vrot.slane %v1325, 4
    %v1328 = vshll.u32 %v1224, 16
    %v1330 = vrot.slane %v1328, 5
    %v1331 = vsel %vm1247, %v1326, %v1330
    %v1333 = vshrl.u32 %v1225, 16
    %v1335 = vrot.slane %v1333, 4
    %v1336 = vshll.u32 %v1225, 16
    %v1338 = vrot.slane %v1336, 5
    %v1339 = vor.u32 %v1335, %v1338
    %v1340 = vrot.slane %v1339, 4
    %v1342 = vshll.u32 %v1226, 16
    %v1344 = vrot.slane %v1342, 5
    %v1345 = vsel %vm1247, %v1340, %v1344
    %v1347 = vshrl.u32 %v1227, 16
    %v1349 = vrot.slane %v1347, 4
    %v1350 = vshll.u32 %v1227, 16
    %v1352 = vrot.slane %v1350, 5
    %v1353 = vor.u32 %v1349, %v1352
    %v1354 = vrot.slane %v1353, 4
    %v1356 = vshll.u32 %v1228, 16
    %v1358 = vrot.slane %v1356, 5
    %v1359 = vsel %vm1247, %v1354, %v1358
    %v1361 = vshrl.u32 %v1229, 16
    %v1363 = vrot.slane %v1361, 4
    %v1364 = vshll.u32 %v1229, 16
    %v1366 = vrot.slane %v1364, 5
    %v1367 = vor.u32 %v1363, %v1366
    %v1368 = vrot.slane %v1367, 4
    %v1370 = vshll.u32 %v1230, 16
    %v1372 = vrot.slane %v1370, 5
    %v1373 = vsel %vm1247, %v1368, %v1372
    %v1375 = vshrl.u32 %v1231, 16
    %v1377 = vrot.slane %v1375, 4
    %v1378 = vshll.u32 %v1231, 16
    %v1380 = vrot.slane %v1378, 5
    %v1381 = vor.u32 %v1377, %v1380
    %v1382 = vrot.slane %v1381, 4
    %v1384 = vshll.u32 %v1232, 16
    %v1386 = vrot.slane %v1384, 5
    %v1387 = vsel %vm1247, %v1382, %v1386
    %v1389 = vshrl.u32 %v1233, 16
    %v1391 = vrot.slane %v1389, 4
    %v1392 = vshll.u32 %v1233, 16
    %v1394 = vrot.slane %v1392, 5
    %v1395 = vor.u32 %v1391, %v1394
    %v1396 = vrot.slane %v1395, 4
    %v1398 = vshll.u32 %v1234, 16
    %v1400 = vrot.slane %v1398, 5
    %v1401 = vsel %vm1247, %v1396, %v1400
    %v1403 = vshrl.u32 %v1235, 16
    %v1405 = vrot.slane %v1403, 4
    %v1406 = vshll.u32 %v1235, 16
    %v1408 = vrot.slane %v1406, 5
    %v1409 = vor.u32 %v1405, %v1408
    %v1410 = vrot.slane %v1409, 4
    %v1412 = vshll.u32 %v1236, 16
    %v1414 = vrot.slane %v1412, 5
    %v1415 = vsel %vm1247, %v1410, %v1414
    %v1417 = vshrl.u32 %v1237, 16
    %v1419 = vrot.slane %v1417, 4
    %v1420 = vshll.u32 %v1237, 16
    %v1422 = vrot.slane %v1420, 5
    %v1423 = vor.u32 %v1419, %v1422
    %v1424 = vrot.slane %v1423, 4
    %v1426 = vshll.u32 %v1238, 16
    %v1428 = vrot.slane %v1426, 5
    %v1429 = vsel %vm1247, %v1424, %v1428
    %v1431 = vshrl.u32 %v1239, 16
    %v1433 = vrot.slane %v1431, 4
    %v1434 = vshll.u32 %v1239, 16
    %v1436 = vrot.slane %v1434, 5
    %v1437 = vor.u32 %v1433, %v1436
    %v1438 = vrot.slane %v1437, 4
    %v1440 = vshll.u32 %v1240, 16
    %v1442 = vrot.slane %v1440, 5
    %v1443 = vsel %vm1247, %v1438, %v1442
    %v1445 = vshrl.u32 %v1241, 16
    %v1447 = vrot.slane %v1445, 4
    %v1448 = vshll.u32 %v1241, 16
    %v1450 = vrot.slane %v1448, 5
    %v1451 = vor.u32 %v1447, %v1450
    %v1452 = vrot.slane %v1451, 4
    %v1454 = vshll.u32 %v1242, 16
    %v1456 = vrot.slane %v1454, 5
    %v1457 = vsel %vm1247, %v1452, %v1456
    %v1459 = vshrl.u32 %v1243, 16
    %v1461 = vrot.slane %v1459, 4
    %v1462 = vshll.u32 %v1243, 16
    %v1464 = vrot.slane %v1462, 5
    %v1465 = vor.u32 %v1461, %v1464
    %v1466 = vrot.slane %v1465, 4
    %v1468 = vshll.u32 %v1244, 16
    %v1470 = vrot.slane %v1468, 5
    %v1471 = vsel %vm1247, %v1466, %v1470
    %1488 = vst [vmem:[#allocation3 + $0x4] sm:$0xf] %v1261
    %1489 = vst [vmem:[#allocation3 + $0x28] sm:$0xf] %v1275
    %1490 = vst [vmem:[#allocation3 + $0x4c] sm:$0xf] %v1289
    %1491 = vst [vmem:[#allocation3 + $0x70] sm:$0xf] %v1303
    %1492 = vst [vmem:[#allocation3 + $0x94] sm:$0xf] %v1317
    %1493 = vst [vmem:[#allocation3 + $0xb8] sm:$0xf] %v1331
    %1494 = vst [vmem:[#allocation3 + $0xdc] sm:$0xf] %v1345
    %1495 = vst [vmem:[#allocation3 + $0x100] sm:$0xf] %v1359
    %1496 = vst [vmem:[#allocation3 + $0x124] sm:$0xf] %v1373
    %1497 = vst [vmem:[#allocation3 + $0x148] sm:$0xf] %v1387
    %1498 = vst [vmem:[#allocation3 + $0x16c] sm:$0xf] %v1401
    %1499 = vst [vmem:[#allocation3 + $0x190] sm:$0xf] %v1415
    %1500 = vst [vmem:[#allocation3 + $0x1b4] sm:$0xf] %v1429
    %1501 = vst [vmem:[#allocation3 + $0x1d8] sm:$0xf] %v1443
    %1502 = vst [vmem:[#allocation3 + $0x1fc] sm:$0xf] %v1457
    %1503 = vst [vmem:[#allocation3 + $0x220] sm:$0xf] %v1471
    %v1504 = vld [vmem:[#allocation2] sm:$0xe]
    %v1505 = vld [vmem:[#allocation2 + $0x4] sm:$0x1]
    %v1506 = vld [vmem:[#allocation2 + $0x8] sm:$0xe]
    %v1507 = vld [vmem:[#allocation2 + $0xc] sm:$0x1]
    %v1508 = vld [vmem:[#allocation2 + $0x10] sm:$0xe]
    %v1509 = vld [vmem:[#allocation2 + $0x14] sm:$0x1]
    %v1510 = vld [vmem:[#allocation2 + $0x18] sm:$0xe]
    %v1511 = vld [vmem:[#allocation2 + $0x1c] sm:$0x1]
    %v1512 = vld [vmem:[#allocation2 + $0x20] sm:$0xe]
    %v1513 = vld [vmem:[#allocation2 + $0x24] sm:$0x1]
    %v1514 = vld [vmem:[#allocation2 + $0x28] sm:$0xe]
    %v1515 = vld [vmem:[#allocation2 + $0x2c] sm:$0x1]
    %v1516 = vld [vmem:[#allocation2 + $0x30] sm:$0xe]
    %v1517 = vld [vmem:[#allocation2 + $0x34] sm:$0x1]
    %v1518 = vld [vmem:[#allocation2 + $0x38] sm:$0xe]
    %v1519 = vld [vmem:[#allocation2 + $0x3c] sm:$0x1]
    %v1520 = vld [vmem:[#allocation2 + $0x50] sm:$0xe]
    %v1521 = vld [vmem:[#allocation2 + $0x54] sm:$0x1]
    %v1522 = vld [vmem:[#allocation2 + $0x58] sm:$0xe]
    %v1523 = vld [vmem:[#allocation2 + $0x5c] sm:$0x1]
    %v1524 = vld [vmem:[#allocation2 + $0x60] sm:$0xe]
    %v1525 = vld [vmem:[#allocation2 + $0x64] sm:$0x1]
    %v1526 = vld [vmem:[#allocation2 + $0x68] sm:$0xe]
    %v1527 = vld [vmem:[#allocation2 + $0x6c] sm:$0x1]
    %v1528 = vld [vmem:[#allocation2 + $0x70] sm:$0xe]
    %v1529 = vld [vmem:[#allocation2 + $0x74] sm:$0x1]
    %v1530 = vld [vmem:[#allocation2 + $0x78] sm:$0xe]
    %v1531 = vld [vmem:[#allocation2 + $0x7c] sm:$0x1]
    %v1532 = vld [vmem:[#allocation2 + $0x80] sm:$0xe]
    %v1533 = vld [vmem:[#allocation2 + $0x84] sm:$0x1]
    %v1534 = vld [vmem:[#allocation2 + $0x88] sm:$0xe]
    %v1535 = vld [vmem:[#allocation2 + $0x8c] sm:$0x1]
    %vm1568 = vcmask 1042432
    %vm1569 = vcmask 1046532
    %vm1570 = vmor %vm1568, %vm1569
    %v1571 = vrot.slane %v1504, 5
    %v1572 = vrot.slane %v1571, 4
    %v1573 = vrot.slane %v1505, 5
    %v1574 = vsel %vm1570, %v1572, %v1573
    %v1575 = vrot.slane %v1506, 5
    %v1576 = vrot.slane %v1575, 4
    %v1577 = vrot.slane %v1507, 5
    %v1578 = vsel %vm1570, %v1576, %v1577
    %v1579 = vrot.slane %v1508, 5
    %v1580 = vrot.slane %v1579, 4
    %v1581 = vrot.slane %v1509, 5
    %v1582 = vsel %vm1570, %v1580, %v1581
    %v1583 = vrot.slane %v1510, 5
    %v1584 = vrot.slane %v1583, 4
    %v1585 = vrot.slane %v1511, 5
    %v1586 = vsel %vm1570, %v1584, %v1585
    %v1587 = vrot.slane %v1512, 5
    %v1588 = vrot.slane %v1587, 4
    %v1589 = vrot.slane %v1513, 5
    %v1590 = vsel %vm1570, %v1588, %v1589
    %v1591 = vrot.slane %v1514, 5
    %v1592 = vrot.slane %v1591, 4
    %v1593 = vrot.slane %v1515, 5
    %v1594 = vsel %vm1570, %v1592, %v1593
    %v1595 = vrot.slane %v1516, 5
    %v1596 = vrot.slane %v1595, 4
    %v1597 = vrot.slane %v1517, 5
    %v1598 = vsel %vm1570, %v1596, %v1597
    %v1599 = vrot.slane %v1518, 5
    %v1600 = vrot.slane %v1599, 4
    %v1601 = vrot.slane %v1519, 5
    %v1602 = vsel %vm1570, %v1600, %v1601
    %v1603 = vrot.slane %v1520, 5
    %v1604 = vrot.slane %v1603, 4
    %v1605 = vrot.slane %v1521, 5
    %v1606 = vsel %vm1570, %v1604, %v1605
    %v1607 = vrot.slane %v1522, 5
    %v1608 = vrot.slane %v1607, 4
    %v1609 = vrot.slane %v1523, 5
    %v1610 = vsel %vm1570, %v1608, %v1609
    %v1611 = vrot.slane %v1524, 5
    %v1612 = vrot.slane %v1611, 4
    %v1613 = vrot.slane %v1525, 5
    %v1614 = vsel %vm1570, %v1612, %v1613
    %v1615 = vrot.slane %v1526, 5
    %v1616 = vrot.slane %v1615, 4
    %v1617 = vrot.slane %v1527, 5
    %v1618 = vsel %vm1570, %v1616, %v1617
    %v1619 = vrot.slane %v1528, 5
    %v1620 = vrot.slane %v1619, 4
    %v1621 = vrot.slane %v1529, 5
    %v1622 = vsel %vm1570, %v1620, %v1621
    %v1623 = vrot.slane %v1530, 5
    %v1624 = vrot.slane %v1623, 4
    %v1625 = vrot.slane %v1531, 5
    %v1626 = vsel %vm1570, %v1624, %v1625
    %v1627 = vrot.slane %v1532, 5
    %v1628 = vrot.slane %v1627, 4
    %v1629 = vrot.slane %v1533, 5
    %v1630 = vsel %vm1570, %v1628, %v1629
    %v1631 = vrot.slane %v1534, 5
    %v1632 = vrot.slane %v1631, 4
    %v1633 = vrot.slane %v1535, 5
    %v1634 = vsel %vm1570, %v1632, %v1633
    %1651 = vst [vmem:[#allocation3 + $0x8] sm:$0xf] %v1574
    %1652 = vst [vmem:[#allocation3 + $0x2c] sm:$0xf] %v1578
    %1653 = vst [vmem:[#allocation3 + $0x50] sm:$0xf] %v1582
    %1654 = vst [vmem:[#allocation3 + $0x74] sm:$0xf] %v1586
    %1655 = vst [vmem:[#allocation3 + $0x98] sm:$0xf] %v1590
    %1656 = vst [vmem:[#allocation3 + $0xbc] sm:$0xf] %v1594
    %1657 = vst [vmem:[#allocation3 + $0xe0] sm:$0xf] %v1598
    %1658 = vst [vmem:[#allocation3 + $0x104] sm:$0xf] %v1602
    %1659 = vst [vmem:[#allocation3 + $0x128] sm:$0xf] %v1606
    %1660 = vst [vmem:[#allocation3 + $0x14c] sm:$0xf] %v1610
    %1661 = vst [vmem:[#allocation3 + $0x170] sm:$0xf] %v1614
    %1662 = vst [vmem:[#allocation3 + $0x194] sm:$0xf] %v1618
    %1663 = vst [vmem:[#allocation3 + $0x1b8] sm:$0xf] %v1622
    %1664 = vst [vmem:[#allocation3 + $0x1dc] sm:$0xf] %v1626
    %1665 = vst [vmem:[#allocation3 + $0x200] sm:$0xf] %v1630
    %1666 = vst [vmem:[#allocation3 + $0x224] sm:$0xf] %v1634
    %v1667 = vld [vmem:[%s1082] sm:$0xf]
    %v1668 = vld [vmem:[%s1082 + $0x8] sm:$0xf]
    %v1669 = vld [vmem:[%s1082 + $0x10] sm:$0xf]
    %v1670 = vld [vmem:[%s1082 + $0x18] sm:$0xf]
    %v1671 = vld [vmem:[%s1082 + $0x20] sm:$0xf]
    %v1672 = vld [vmem:[%s1082 + $0x28] sm:$0xf]
    %v1673 = vld [vmem:[%s1082 + $0x30] sm:$0xf]
    %v1674 = vld [vmem:[%s1082 + $0x38] sm:$0xf]
    %v1675 = vld [vmem:[%s1082 + $0x50] sm:$0xf]
    %v1676 = vld [vmem:[%s1082 + $0x58] sm:$0xf]
    %v1677 = vld [vmem:[%s1082 + $0x60] sm:$0xf]
    %v1678 = vld [vmem:[%s1082 + $0x68] sm:$0xf]
    %v1679 = vld [vmem:[%s1082 + $0x70] sm:$0xf]
    %v1680 = vld [vmem:[%s1082 + $0x78] sm:$0xf]
    %v1681 = vld [vmem:[%s1082 + $0x80] sm:$0xf]
    %v1682 = vld [vmem:[%s1082 + $0x88] sm:$0xf]
    %1683 = vst [vmem:[#allocation3 + $0xc] sm:$0xf] %v1667
    %1684 = vst [vmem:[#allocation3 + $0x30] sm:$0xf] %v1668
    %1685 = vst [vmem:[#allocation3 + $0x54] sm:$0xf] %v1669
    %1686 = vst [vmem:[#allocation3 + $0x78] sm:$0xf] %v1670
    %1687 = vst [vmem:[#allocation3 + $0x9c] sm:$0xf] %v1671
    %1688 = vst [vmem:[#allocation3 + $0xc0] sm:$0xf] %v1672
    %1689 = vst [vmem:[#allocation3 + $0xe4] sm:$0xf] %v1673
    %1690 = vst [vmem:[#allocation3 + $0x108] sm:$0xf] %v1674
    %1691 = vst [vmem:[#allocation3 + $0x12c] sm:$0xf] %v1675
    %1692 = vst [vmem:[#allocation3 + $0x150] sm:$0xf] %v1676
    %1693 = vst [vmem:[#allocation3 + $0x174] sm:$0xf] %v1677
    %1694 = vst [vmem:[#allocation3 + $0x198] sm:$0xf] %v1678
    %1695 = vst [vmem:[#allocation3 + $0x1bc] sm:$0xf] %v1679
    %1696 = vst [vmem:[#allocation3 + $0x1e0] sm:$0xf] %v1680
    %1697 = vst [vmem:[#allocation3 + $0x204] sm:$0xf] %v1681
    %1698 = vst [vmem:[#allocation3 + $0x228] sm:$0xf] %v1682
    %v1699 = vld [vmem:[%s1082] sm:$0xf]
    %v1700 = vld [vmem:[%s1082 + $0x4] sm:$0x1]
    %v1701 = vld [vmem:[%s1082 + $0x8] sm:$0xf]
    %v1702 = vld [vmem:[%s1082 + $0xc] sm:$0x1]
    %v1703 = vld [vmem:[%s1082 + $0x10] sm:$0xf]
    %v1704 = vld [vmem:[%s1082 + $0x14] sm:$0x1]
    %v1705 = vld [vmem:[%s1082 + $0x18] sm:$0xf]
    %v1706 = vld [vmem:[%s1082 + $0x1c] sm:$0x1]
    %v1707 = vld [vmem:[%s1082 + $0x20] sm:$0xf]
    %v1708 = vld [vmem:[%s1082 + $0x24] sm:$0x1]
    %v1709 = vld [vmem:[%s1082 + $0x28] sm:$0xf]
    %v1710 = vld [vmem:[%s1082 + $0x2c] sm:$0x1]
    %v1711 = vld [vmem:[%s1082 + $0x30] sm:$0xf]
    %v1712 = vld [vmem:[%s1082 + $0x34] sm:$0x1]
    %v1713 = vld [vmem:[%s1082 + $0x38] sm:$0xf]
    %v1714 = vld [vmem:[%s1082 + $0x3c] sm:$0x1]
    %v1715 = vld [vmem:[%s1082 + $0x50] sm:$0xf]
    %v1716 = vld [vmem:[%s1082 + $0x54] sm:$0x1]
    %v1717 = vld [vmem:[%s1082 + $0x58] sm:$0xf]
    %v1718 = vld [vmem:[%s1082 + $0x5c] sm:$0x1]
    %v1719 = vld [vmem:[%s1082 + $0x60] sm:$0xf]
    %v1720 = vld [vmem:[%s1082 + $0x64] sm:$0x1]
    %v1721 = vld [vmem:[%s1082 + $0x68] sm:$0xf]
    %v1722 = vld [vmem:[%s1082 + $0x6c] sm:$0x1]
    %v1723 = vld [vmem:[%s1082 + $0x70] sm:$0xf]
    %v1724 = vld [vmem:[%s1082 + $0x74] sm:$0x1]
    %v1725 = vld [vmem:[%s1082 + $0x78] sm:$0xf]
    %v1726 = vld [vmem:[%s1082 + $0x7c] sm:$0x1]
    %v1727 = vld [vmem:[%s1082 + $0x80] sm:$0xf]
    %v1728 = vld [vmem:[%s1082 + $0x84] sm:$0x1]
    %v1729 = vld [vmem:[%s1082 + $0x88] sm:$0xf]
    %v1730 = vld [vmem:[%s1082 + $0x8c] sm:$0x1]
    %v1732 = vshrl.u32 %v1699, 16
    %v1734 = vrot.slane %v1732, 4
    %v1735 = vshll.u32 %v1699, 16
    %v1737 = vrot.slane %v1735, 5
    %v1738 = vor.u32 %v1734, %v1737
    %v1739 = vrot.slane %v1738, 4
    %v1741 = vshll.u32 %v1700, 16
    %v1743 = vrot.slane %v1741, 5
    %v1744 = vsel %vm1247, %v1739, %v1743
    %v1746 = vshrl.u32 %v1701, 16
    %v1748 = vrot.slane %v1746, 4
    %v1749 = vshll.u32 %v1701, 16
    %v1751 = vrot.slane %v1749, 5
    %v1752 = vor.u32 %v1748, %v1751
    %v1753 = vrot.slane %v1752, 4
    %v1755 = vshll.u32 %v1702, 16
    %v1757 = vrot.slane %v1755, 5
    %v1758 = vsel %vm1247, %v1753, %v1757
    %v1760 = vshrl.u32 %v1703, 16
    %v1762 = vrot.slane %v1760, 4
    %v1763 = vshll.u32 %v1703, 16
    %v1765 = vrot.slane %v1763, 5
    %v1766 = vor.u32 %v1762, %v1765
    %v1767 = vrot.slane %v1766, 4
    %v1769 = vshll.u32 %v1704, 16
    %v1771 = vrot.slane %v1769, 5
    %v1772 = vsel %vm1247, %v1767, %v1771
    %v1774 = vshrl.u32 %v1705, 16
    %v1776 = vrot.slane %v1774, 4
    %v1777 = vshll.u32 %v1705, 16
    %v1779 = vrot.slane %v1777, 5
    %v1780 = vor.u32 %v1776, %v1779
    %v1781 = vrot.slane %v1780, 4
    %v1783 = vshll.u32 %v1706, 16
    %v1785 = vrot.slane %v1783, 5
    %v1786 = vsel %vm1247, %v1781, %v1785
    %v1788 = vshrl.u32 %v1707, 16
    %v1790 = vrot.slane %v1788, 4
    %v1791 = vshll.u32 %v1707, 16
    %v1793 = vrot.slane %v1791, 5
    %v1794 = vor.u32 %v1790, %v1793
    %v1795 = vrot.slane %v1794, 4
    %v1797 = vshll.u32 %v1708, 16
    %v1799 = vrot.slane %v1797, 5
    %v1800 = vsel %vm1247, %v1795, %v1799
    %v1802 = vshrl.u32 %v1709, 16
    %v1804 = vrot.slane %v1802, 4
    %v1805 = vshll.u32 %v1709, 16
    %v1807 = vrot.slane %v1805, 5
    %v1808 = vor.u32 %v1804, %v1807
    %v1809 = vrot.slane %v1808, 4
    %v1811 = vshll.u32 %v1710, 16
    %v1813 = vrot.slane %v1811, 5
    %v1814 = vsel %vm1247, %v1809, %v1813
    %v1816 = vshrl.u32 %v1711, 16
    %v1818 = vrot.slane %v1816, 4
    %v1819 = vshll.u32 %v1711, 16
    %v1821 = vrot.slane %v1819, 5
    %v1822 = vor.u32 %v1818, %v1821
    %v1823 = vrot.slane %v1822, 4
    %v1825 = vshll.u32 %v1712, 16
    %v1827 = vrot.slane %v1825, 5
    %v1828 = vsel %vm1247, %v1823, %v1827
    %v1830 = vshrl.u32 %v1713, 16
    %v1832 = vrot.slane %v1830, 4
    %v1833 = vshll.u32 %v1713, 16
    %v1835 = vrot.slane %v1833, 5
    %v1836 = vor.u32 %v1832, %v1835
    %v1837 = vrot.slane %v1836, 4
    %v1839 = vshll.u32 %v1714, 16
    %v1841 = vrot.slane %v1839, 5
    %v1842 = vsel %vm1247, %v1837, %v1841
    %v1844 = vshrl.u32 %v1715, 16
    %v1846 = vrot.slane %v1844, 4
    %v1847 = vshll.u32 %v1715, 16
    %v1849 = vrot.slane %v1847, 5
    %v1850 = vor.u32 %v1846, %v1849
    %v1851 = vrot.slane %v1850, 4
    %v1853 = vshll.u32 %v1716, 16
    %v1855 = vrot.slane %v1853, 5
    %v1856 = vsel %vm1247, %v1851, %v1855
    %v1858 = vshrl.u32 %v1717, 16
    %v1860 = vrot.slane %v1858, 4
    %v1861 = vshll.u32 %v1717, 16
    %v1863 = vrot.slane %v1861, 5
    %v1864 = vor.u32 %v1860, %v1863
    %v1865 = vrot.slane %v1864, 4
    %v1867 = vshll.u32 %v1718, 16
    %v1869 = vrot.slane %v1867, 5
    %v1870 = vsel %vm1247, %v1865, %v1869
    %v1872 = vshrl.u32 %v1719, 16
    %v1874 = vrot.slane %v1872, 4
    %v1875 = vshll.u32 %v1719, 16
    %v1877 = vrot.slane %v1875, 5
    %v1878 = vor.u32 %v1874, %v1877
    %v1879 = vrot.slane %v1878, 4
    %v1881 = vshll.u32 %v1720, 16
    %v1883 = vrot.slane %v1881, 5
    %v1884 = vsel %vm1247, %v1879, %v1883
    %v1886 = vshrl.u32 %v1721, 16
    %v1888 = vrot.slane %v1886, 4
    %v1889 = vshll.u32 %v1721, 16
    %v1891 = vrot.slane %v1889, 5
    %v1892 = vor.u32 %v1888, %v1891
    %v1893 = vrot.slane %v1892, 4
    %v1895 = vshll.u32 %v1722, 16
    %v1897 = vrot.slane %v1895, 5
    %v1898 = vsel %vm1247, %v1893, %v1897
    %v1900 = vshrl.u32 %v1723, 16
    %v1902 = vrot.slane %v1900, 4
    %v1903 = vshll.u32 %v1723, 16
    %v1905 = vrot.slane %v1903, 5
    %v1906 = vor.u32 %v1902, %v1905
    %v1907 = vrot.slane %v1906, 4
    %v1909 = vshll.u32 %v1724, 16
    %v1911 = vrot.slane %v1909, 5
    %v1912 = vsel %vm1247, %v1907, %v1911
    %v1914 = vshrl.u32 %v1725, 16
    %v1916 = vrot.slane %v1914, 4
    %v1917 = vshll.u32 %v1725, 16
    %v1919 = vrot.slane %v1917, 5
    %v1920 = vor.u32 %v1916, %v1919
    %v1921 = vrot.slane %v1920, 4
    %v1923 = vshll.u32 %v1726, 16
    %v1925 = vrot.slane %v1923, 5
    %v1926 = vsel %vm1247, %v1921, %v1925
    %v1928 = vshrl.u32 %v1727, 16
    %v1930 = vrot.slane %v1928, 4
    %v1931 = vshll.u32 %v1727, 16
    %v1933 = vrot.slane %v1931, 5
    %v1934 = vor.u32 %v1930, %v1933
    %v1935 = vrot.slane %v1934, 4
    %v1937 = vshll.u32 %v1728, 16
    %v1939 = vrot.slane %v1937, 5
    %v1940 = vsel %vm1247, %v1935, %v1939
    %v1942 = vshrl.u32 %v1729, 16
    %v1944 = vrot.slane %v1942, 4
    %v1945 = vshll.u32 %v1729, 16
    %v1947 = vrot.slane %v1945, 5
    %v1948 = vor.u32 %v1944, %v1947
    %v1949 = vrot.slane %v1948, 4
    %v1951 = vshll.u32 %v1730, 16
    %v1953 = vrot.slane %v1951, 5
    %v1954 = vsel %vm1247, %v1949, %v1953
    %1971 = vst [vmem:[#allocation3 + $0x10] sm:$0xf] %v1744
    %1972 = vst [vmem:[#allocation3 + $0x34] sm:$0xf] %v1758
    %1973 = vst [vmem:[#allocation3 + $0x58] sm:$0xf] %v1772
    %1974 = vst [vmem:[#allocation3 + $0x7c] sm:$0xf] %v1786
    %1975 = vst [vmem:[#allocation3 + $0xa0] sm:$0xf] %v1800
    %1976 = vst [vmem:[#allocation3 + $0xc4] sm:$0xf] %v1814
    %1977 = vst [vmem:[#allocation3 + $0xe8] sm:$0xf] %v1828
    %1978 = vst [vmem:[#allocation3 + $0x10c] sm:$0xf] %v1842
    %1979 = vst [vmem:[#allocation3 + $0x130] sm:$0xf] %v1856
    %1980 = vst [vmem:[#allocation3 + $0x154] sm:$0xf] %v1870
    %1981 = vst [vmem:[#allocation3 + $0x178] sm:$0xf] %v1884
    %1982 = vst [vmem:[#allocation3 + $0x19c] sm:$0xf] %v1898
    %1983 = vst [vmem:[#allocation3 + $0x1c0] sm:$0xf] %v1912
    %1984 = vst [vmem:[#allocation3 + $0x1e4] sm:$0xf] %v1926
    %1985 = vst [vmem:[#allocation3 + $0x208] sm:$0xf] %v1940
    %1986 = vst [vmem:[#allocation3 + $0x22c] sm:$0xf] %v1954
    %v1987 = vld [vmem:[%s1082] sm:$0xe]
    %v1988 = vld [vmem:[%s1082 + $0x4] sm:$0x1]
    %v1989 = vld [vmem:[%s1082 + $0x8] sm:$0xe]
    %v1990 = vld [vmem:[%s1082 + $0xc] sm:$0x1]
    %v1991 = vld [vmem:[%s1082 + $0x10] sm:$0xe]
    %v1992 = vld [vmem:[%s1082 + $0x14] sm:$0x1]
    %v1993 = vld [vmem:[%s1082 + $0x18] sm:$0xe]
    %v1994 = vld [vmem:[%s1082 + $0x1c] sm:$0x1]
    %v1995 = vld [vmem:[%s1082 + $0x20] sm:$0xe]
    %v1996 = vld [vmem:[%s1082 + $0x24] sm:$0x1]
    %v1997 = vld [vmem:[%s1082 + $0x28] sm:$0xe]
    %v1998 = vld [vmem:[%s1082 + $0x2c] sm:$0x1]
    %v1999 = vld [vmem:[%s1082 + $0x30] sm:$0xe]
    %v2000 = vld [vmem:[%s1082 + $0x34] sm:$0x1]
    %v2001 = vld [vmem:[%s1082 + $0x38] sm:$0xe]
    %v2002 = vld [vmem:[%s1082 + $0x3c] sm:$0x1]
    %v2003 = vld [vmem:[%s1082 + $0x50] sm:$0xe]
    %v2004 = vld [vmem:[%s1082 + $0x54] sm:$0x1]
    %v2005 = vld [vmem:[%s1082 + $0x58] sm:$0xe]
    %v2006 = vld [vmem:[%s1082 + $0x5c] sm:$0x1]
    %v2007 = vld [vmem:[%s1082 + $0x60] sm:$0xe]
    %v2008 = vld [vmem:[%s1082 + $0x64] sm:$0x1]
    %v2009 = vld [vmem:[%s1082 + $0x68] sm:$0xe]
    %v2010 = vld [vmem:[%s1082 + $0x6c] sm:$0x1]
    %v2011 = vld [vmem:[%s1082 + $0x70] sm:$0xe]
    %v2012 = vld [vmem:[%s1082 + $0x74] sm:$0x1]
    %v2013 = vld [vmem:[%s1082 + $0x78] sm:$0xe]
    %v2014 = vld [vmem:[%s1082 + $0x7c] sm:$0x1]
    %v2015 = vld [vmem:[%s1082 + $0x80] sm:$0xe]
    %v2016 = vld [vmem:[%s1082 + $0x84] sm:$0x1]
    %v2017 = vld [vmem:[%s1082 + $0x88] sm:$0xe]
    %v2018 = vld [vmem:[%s1082 + $0x8c] sm:$0x1]
    %v2051 = vrot.slane %v1987, 5
    %v2052 = vrot.slane %v2051, 4
    %v2053 = vrot.slane %v1988, 5
    %v2054 = vsel %vm1570, %v2052, %v2053
    %v2055 = vrot.slane %v1989, 5
    %v2056 = vrot.slane %v2055, 4
    %v2057 = vrot.slane %v1990, 5
    %v2058 = vsel %vm1570, %v2056, %v2057
    %v2059 = vrot.slane %v1991, 5
    %v2060 = vrot.slane %v2059, 4
    %v2061 = vrot.slane %v1992, 5
    %v2062 = vsel %vm1570, %v2060, %v2061
    %v2063 = vrot.slane %v1993, 5
    %v2064 = vrot.slane %v2063, 4
    %v2065 = vrot.slane %v1994, 5
    %v2066 = vsel %vm1570, %v2064, %v2065
    %v2067 = vrot.slane %v1995, 5
    %v2068 = vrot.slane %v2067, 4
    %v2069 = vrot.slane %v1996, 5
    %v2070 = vsel %vm1570, %v2068, %v2069
    %v2071 = vrot.slane %v1997, 5
    %v2072 = vrot.slane %v2071, 4
    %v2073 = vrot.slane %v1998, 5
    %v2074 = vsel %vm1570, %v2072, %v2073
    %v2075 = vrot.slane %v1999, 5
    %v2076 = vrot.slane %v2075, 4
    %v2077 = vrot.slane %v2000, 5
    %v2078 = vsel %vm1570, %v2076, %v2077
    %v2079 = vrot.slane %v2001, 5
    %v2080 = vrot.slane %v2079, 4
    %v2081 = vrot.slane %v2002, 5
    %v2082 = vsel %vm1570, %v2080, %v2081
    %v2083 = vrot.slane %v2003, 5
    %v2084 = vrot.slane %v2083, 4
    %v2085 = vrot.slane %v2004, 5
    %v2086 = vsel %vm1570, %v2084, %v2085
    %v2087 = vrot.slane %v2005, 5
    %v2088 = vrot.slane %v2087, 4
    %v2089 = vrot.slane %v2006, 5
    %v2090 = vsel %vm1570, %v2088, %v2089
    %v2091 = vrot.slane %v2007, 5
    %v2092 = vrot.slane %v2091, 4
    %v2093 = vrot.slane %v2008, 5
    %v2094 = vsel %vm1570, %v2092, %v2093
    %v2095 = vrot.slane %v2009, 5
    %v2096 = vrot.slane %v2095, 4
    %v2097 = vrot.slane %v2010, 5
    %v2098 = vsel %vm1570, %v2096, %v2097
    %v2099 = vrot.slane %v2011, 5
    %v2100 = vrot.slane %v2099, 4
    %v2101 = vrot.slane %v2012, 5
    %v2102 = vsel %vm1570, %v2100, %v2101
    %v2103 = vrot.slane %v2013, 5
    %v2104 = vrot.slane %v2103, 4
    %v2105 = vrot.slane %v2014, 5
    %v2106 = vsel %vm1570, %v2104, %v2105
    %v2107 = vrot.slane %v2015, 5
    %v2108 = vrot.slane %v2107, 4
    %v2109 = vrot.slane %v2016, 5
    %v2110 = vsel %vm1570, %v2108, %v2109
    %v2111 = vrot.slane %v2017, 5
    %v2112 = vrot.slane %v2111, 4
    %v2113 = vrot.slane %v2018, 5
    %v2114 = vsel %vm1570, %v2112, %v2113
    %2131 = vst [vmem:[#allocation3 + $0x14] sm:$0xf] %v2054
    %2132 = vst [vmem:[#allocation3 + $0x38] sm:$0xf] %v2058
    %2133 = vst [vmem:[#allocation3 + $0x5c] sm:$0xf] %v2062
    %2134 = vst [vmem:[#allocation3 + $0x80] sm:$0xf] %v2066
    %2135 = vst [vmem:[#allocation3 + $0xa4] sm:$0xf] %v2070
    %2136 = vst [vmem:[#allocation3 + $0xc8] sm:$0xf] %v2074
    %2137 = vst [vmem:[#allocation3 + $0xec] sm:$0xf] %v2078
    %2138 = vst [vmem:[#allocation3 + $0x110] sm:$0xf] %v2082
    %2139 = vst [vmem:[#allocation3 + $0x134] sm:$0xf] %v2086
    %2140 = vst [vmem:[#allocation3 + $0x158] sm:$0xf] %v2090
    %2141 = vst [vmem:[#allocation3 + $0x17c] sm:$0xf] %v2094
    %2142 = vst [vmem:[#allocation3 + $0x1a0] sm:$0xf] %v2098
    %2143 = vst [vmem:[#allocation3 + $0x1c4] sm:$0xf] %v2102
    %2144 = vst [vmem:[#allocation3 + $0x1e8] sm:$0xf] %v2106
    %2145 = vst [vmem:[#allocation3 + $0x20c] sm:$0xf] %v2110
    %2146 = vst [vmem:[#allocation3 + $0x230] sm:$0xf] %v2114
    %s2147 = scalar_lea.vmem [#allocation2], 16
    %v2148 = vld [vmem:[%s2147] sm:$0xf]
    %v2149 = vld [vmem:[%s2147 + $0x8] sm:$0xf]
    %v2150 = vld [vmem:[%s2147 + $0x10] sm:$0xf]
    %v2151 = vld [vmem:[%s2147 + $0x18] sm:$0xf]
    %v2152 = vld [vmem:[%s2147 + $0x20] sm:$0xf]
    %v2153 = vld [vmem:[%s2147 + $0x28] sm:$0xf]
    %v2154 = vld [vmem:[%s2147 + $0x30] sm:$0xf]
    %v2155 = vld [vmem:[%s2147 + $0x38] sm:$0xf]
    %v2156 = vld [vmem:[%s2147 + $0x50] sm:$0xf]
    %v2157 = vld [vmem:[%s2147 + $0x58] sm:$0xf]
    %v2158 = vld [vmem:[%s2147 + $0x60] sm:$0xf]
    %v2159 = vld [vmem:[%s2147 + $0x68] sm:$0xf]
    %v2160 = vld [vmem:[%s2147 + $0x70] sm:$0xf]
    %v2161 = vld [vmem:[%s2147 + $0x78] sm:$0xf]
    %v2162 = vld [vmem:[%s2147 + $0x80] sm:$0xf]
    %v2163 = vld [vmem:[%s2147 + $0x88] sm:$0xf]
    %2164 = vst [vmem:[#allocation3 + $0x18] sm:$0xf] %v2148
    %2165 = vst [vmem:[#allocation3 + $0x3c] sm:$0xf] %v2149
    %2166 = vst [vmem:[#allocation3 + $0x60] sm:$0xf] %v2150
    %2167 = vst [vmem:[#allocation3 + $0x84] sm:$0xf] %v2151
    %2168 = vst [vmem:[#allocation3 + $0xa8] sm:$0xf] %v2152
    %2169 = vst [vmem:[#allocation3 + $0xcc] sm:$0xf] %v2153
    %2170 = vst [vmem:[#allocation3 + $0xf0] sm:$0xf] %v2154
    %2171 = vst [vmem:[#allocation3 + $0x114] sm:$0xf] %v2155
    %2172 = vst [vmem:[#allocation3 + $0x138] sm:$0xf] %v2156
    %2173 = vst [vmem:[#allocation3 + $0x15c] sm:$0xf] %v2157
    %2174 = vst [vmem:[#allocation3 + $0x180] sm:$0xf] %v2158
    %2175 = vst [vmem:[#allocation3 + $0x1a4] sm:$0xf] %v2159
    %2176 = vst [vmem:[#allocation3 + $0x1c8] sm:$0xf] %v2160
    %2177 = vst [vmem:[#allocation3 + $0x1ec] sm:$0xf] %v2161
    %2178 = vst [vmem:[#allocation3 + $0x210] sm:$0xf] %v2162
    %2179 = vst [vmem:[#allocation3 + $0x234] sm:$0xf] %v2163
    %v2180 = vld [vmem:[%s2147] sm:$0xf]
    %v2181 = vld [vmem:[%s2147 + $0x4] sm:$0x1]
    %v2182 = vld [vmem:[%s2147 + $0x8] sm:$0xf]
    %v2183 = vld [vmem:[%s2147 + $0xc] sm:$0x1]
    %v2184 = vld [vmem:[%s2147 + $0x10] sm:$0xf]
    %v2185 = vld [vmem:[%s2147 + $0x14] sm:$0x1]
    %v2186 = vld [vmem:[%s2147 + $0x18] sm:$0xf]
    %v2187 = vld [vmem:[%s2147 + $0x1c] sm:$0x1]
    %v2188 = vld [vmem:[%s2147 + $0x20] sm:$0xf]
    %v2189 = vld [vmem:[%s2147 + $0x24] sm:$0x1]
    %v2190 = vld [vmem:[%s2147 + $0x28] sm:$0xf]
    %v2191 = vld [vmem:[%s2147 + $0x2c] sm:$0x1]
    %v2192 = vld [vmem:[%s2147 + $0x30] sm:$0xf]
    %v2193 = vld [vmem:[%s2147 + $0x34] sm:$0x1]
    %v2194 = vld [vmem:[%s2147 + $0x38] sm:$0xf]
    %v2195 = vld [vmem:[%s2147 + $0x3c] sm:$0x1]
    %v2196 = vld [vmem:[%s2147 + $0x50] sm:$0xf]
    %v2197 = vld [vmem:[%s2147 + $0x54] sm:$0x1]
    %v2198 = vld [vmem:[%s2147 + $0x58] sm:$0xf]
    %v2199 = vld [vmem:[%s2147 + $0x5c] sm:$0x1]
    %v2200 = vld [vmem:[%s2147 + $0x60] sm:$0xf]
    %v2201 = vld [vmem:[%s2147 + $0x64] sm:$0x1]
    %v2202 = vld [vmem:[%s2147 + $0x68] sm:$0xf]
    %v2203 = vld [vmem:[%s2147 + $0x6c] sm:$0x1]
    %v2204 = vld [vmem:[%s2147 + $0x70] sm:$0xf]
    %v2205 = vld [vmem:[%s2147 + $0x74] sm:$0x1]
    %v2206 = vld [vmem:[%s2147 + $0x78] sm:$0xf]
    %v2207 = vld [vmem:[%s2147 + $0x7c] sm:$0x1]
    %v2208 = vld [vmem:[%s2147 + $0x80] sm:$0xf]
    %v2209 = vld [vmem:[%s2147 + $0x84] sm:$0x1]
    %v2210 = vld [vmem:[%s2147 + $0x88] sm:$0xf]
    %v2211 = vld [vmem:[%s2147 + $0x8c] sm:$0x1]
    %v2213 = vshrl.u32 %v2180, 16
    %v2215 = vrot.slane %v2213, 4
    %v2216 = vshll.u32 %v2180, 16
    %v2218 = vrot.slane %v2216, 5
    %v2219 = vor.u32 %v2215, %v2218
    %v2220 = vrot.slane %v2219, 4
    %v2222 = vshll.u32 %v2181, 16
    %v2224 = vrot.slane %v2222, 5
    %v2225 = vsel %vm1247, %v2220, %v2224
    %v2227 = vshrl.u32 %v2182, 16
    %v2229 = vrot.slane %v2227, 4
    %v2230 = vshll.u32 %v2182, 16
    %v2232 = vrot.slane %v2230, 5
    %v2233 = vor.u32 %v2229, %v2232
    %v2234 = vrot.slane %v2233, 4
    %v2236 = vshll.u32 %v2183, 16
    %v2238 = vrot.slane %v2236, 5
    %v2239 = vsel %vm1247, %v2234, %v2238
    %v2241 = vshrl.u32 %v2184, 16
    %v2243 = vrot.slane %v2241, 4
    %v2244 = vshll.u32 %v2184, 16
    %v2246 = vrot.slane %v2244, 5
    %v2247 = vor.u32 %v2243, %v2246
    %v2248 = vrot.slane %v2247, 4
    %v2250 = vshll.u32 %v2185, 16
    %v2252 = vrot.slane %v2250, 5
    %v2253 = vsel %vm1247, %v2248, %v2252
    %v2255 = vshrl.u32 %v2186, 16
    %v2257 = vrot.slane %v2255, 4
    %v2258 = vshll.u32 %v2186, 16
    %v2260 = vrot.slane %v2258, 5
    %v2261 = vor.u32 %v2257, %v2260
    %v2262 = vrot.slane %v2261, 4
    %v2264 = vshll.u32 %v2187, 16
    %v2266 = vrot.slane %v2264, 5
    %v2267 = vsel %vm1247, %v2262, %v2266
    %v2269 = vshrl.u32 %v2188, 16
    %v2271 = vrot.slane %v2269, 4
    %v2272 = vshll.u32 %v2188, 16
    %v2274 = vrot.slane %v2272, 5
    %v2275 = vor.u32 %v2271, %v2274
    %v2276 = vrot.slane %v2275, 4
    %v2278 = vshll.u32 %v2189, 16
    %v2280 = vrot.slane %v2278, 5
    %v2281 = vsel %vm1247, %v2276, %v2280
    %v2283 = vshrl.u32 %v2190, 16
    %v2285 = vrot.slane %v2283, 4
    %v2286 = vshll.u32 %v2190, 16
    %v2288 = vrot.slane %v2286, 5
    %v2289 = vor.u32 %v2285, %v2288
    %v2290 = vrot.slane %v2289, 4
    %v2292 = vshll.u32 %v2191, 16
    %v2294 = vrot.slane %v2292, 5
    %v2295 = vsel %vm1247, %v2290, %v2294
    %v2297 = vshrl.u32 %v2192, 16
    %v2299 = vrot.slane %v2297, 4
    %v2300 = vshll.u32 %v2192, 16
    %v2302 = vrot.slane %v2300, 5
    %v2303 = vor.u32 %v2299, %v2302
    %v2304 = vrot.slane %v2303, 4
    %v2306 = vshll.u32 %v2193, 16
    %v2308 = vrot.slane %v2306, 5
    %v2309 = vsel %vm1247, %v2304, %v2308
    %v2311 = vshrl.u32 %v2194, 16
    %v2313 = vrot.slane %v2311, 4
    %v2314 = vshll.u32 %v2194, 16
    %v2316 = vrot.slane %v2314, 5
    %v2317 = vor.u32 %v2313, %v2316
    %v2318 = vrot.slane %v2317, 4
    %v2320 = vshll.u32 %v2195, 16
    %v2322 = vrot.slane %v2320, 5
    %v2323 = vsel %vm1247, %v2318, %v2322
    %v2325 = vshrl.u32 %v2196, 16
    %v2327 = vrot.slane %v2325, 4
    %v2328 = vshll.u32 %v2196, 16
    %v2330 = vrot.slane %v2328, 5
    %v2331 = vor.u32 %v2327, %v2330
    %v2332 = vrot.slane %v2331, 4
    %v2334 = vshll.u32 %v2197, 16
    %v2336 = vrot.slane %v2334, 5
    %v2337 = vsel %vm1247, %v2332, %v2336
    %v2339 = vshrl.u32 %v2198, 16
    %v2341 = vrot.slane %v2339, 4
    %v2342 = vshll.u32 %v2198, 16
    %v2344 = vrot.slane %v2342, 5
    %v2345 = vor.u32 %v2341, %v2344
    %v2346 = vrot.slane %v2345, 4
    %v2348 = vshll.u32 %v2199, 16
    %v2350 = vrot.slane %v2348, 5
    %v2351 = vsel %vm1247, %v2346, %v2350
    %v2353 = vshrl.u32 %v2200, 16
    %v2355 = vrot.slane %v2353, 4
    %v2356 = vshll.u32 %v2200, 16
    %v2358 = vrot.slane %v2356, 5
    %v2359 = vor.u32 %v2355, %v2358
    %v2360 = vrot.slane %v2359, 4
    %v2362 = vshll.u32 %v2201, 16
    %v2364 = vrot.slane %v2362, 5
    %v2365 = vsel %vm1247, %v2360, %v2364
    %v2367 = vshrl.u32 %v2202, 16
    %v2369 = vrot.slane %v2367, 4
    %v2370 = vshll.u32 %v2202, 16
    %v2372 = vrot.slane %v2370, 5
    %v2373 = vor.u32 %v2369, %v2372
    %v2374 = vrot.slane %v2373, 4
    %v2376 = vshll.u32 %v2203, 16
    %v2378 = vrot.slane %v2376, 5
    %v2379 = vsel %vm1247, %v2374, %v2378
    %v2381 = vshrl.u32 %v2204, 16
    %v2383 = vrot.slane %v2381, 4
    %v2384 = vshll.u32 %v2204, 16
    %v2386 = vrot.slane %v2384, 5
    %v2387 = vor.u32 %v2383, %v2386
    %v2388 = vrot.slane %v2387, 4
    %v2390 = vshll.u32 %v2205, 16
    %v2392 = vrot.slane %v2390, 5
    %v2393 = vsel %vm1247, %v2388, %v2392
    %v2395 = vshrl.u32 %v2206, 16
    %v2397 = vrot.slane %v2395, 4
    %v2398 = vshll.u32 %v2206, 16
    %v2400 = vrot.slane %v2398, 5
    %v2401 = vor.u32 %v2397, %v2400
    %v2402 = vrot.slane %v2401, 4
    %v2404 = vshll.u32 %v2207, 16
    %v2406 = vrot.slane %v2404, 5
    %v2407 = vsel %vm1247, %v2402, %v2406
    %v2409 = vshrl.u32 %v2208, 16
    %v2411 = vrot.slane %v2409, 4
    %v2412 = vshll.u32 %v2208, 16
    %v2414 = vrot.slane %v2412, 5
    %v2415 = vor.u32 %v2411, %v2414
    %v2416 = vrot.slane %v2415, 4
    %v2418 = vshll.u32 %v2209, 16
    %v2420 = vrot.slane %v2418, 5
    %v2421 = vsel %vm1247, %v2416, %v2420
    %v2423 = vshrl.u32 %v2210, 16
    %v2425 = vrot.slane %v2423, 4
    %v2426 = vshll.u32 %v2210, 16
    %v2428 = vrot.slane %v2426, 5
    %v2429 = vor.u32 %v2425, %v2428
    %v2430 = vrot.slane %v2429, 4
    %v2432 = vshll.u32 %v2211, 16
    %v2434 = vrot.slane %v2432, 5
    %v2435 = vsel %vm1247, %v2430, %v2434
    %2452 = vst [vmem:[#allocation3 + $0x1c] sm:$0xf] %v2225
    %2453 = vst [vmem:[#allocation3 + $0x40] sm:$0xf] %v2239
    %2454 = vst [vmem:[#allocation3 + $0x64] sm:$0xf] %v2253
    %2455 = vst [vmem:[#allocation3 + $0x88] sm:$0xf] %v2267
    %2456 = vst [vmem:[#allocation3 + $0xac] sm:$0xf] %v2281
    %2457 = vst [vmem:[#allocation3 + $0xd0] sm:$0xf] %v2295
    %2458 = vst [vmem:[#allocation3 + $0xf4] sm:$0xf] %v2309
    %2459 = vst [vmem:[#allocation3 + $0x118] sm:$0xf] %v2323
    %2460 = vst [vmem:[#allocation3 + $0x13c] sm:$0xf] %v2337
    %2461 = vst [vmem:[#allocation3 + $0x160] sm:$0xf] %v2351
    %2462 = vst [vmem:[#allocation3 + $0x184] sm:$0xf] %v2365
    %2463 = vst [vmem:[#allocation3 + $0x1a8] sm:$0xf] %v2379
    %2464 = vst [vmem:[#allocation3 + $0x1cc] sm:$0xf] %v2393
    %2465 = vst [vmem:[#allocation3 + $0x1f0] sm:$0xf] %v2407
    %2466 = vst [vmem:[#allocation3 + $0x214] sm:$0xf] %v2421
    %2467 = vst [vmem:[#allocation3 + $0x238] sm:$0xf] %v2435
    %v2468 = vld [vmem:[%s2147] sm:$0xe]
    %v2469 = vld [vmem:[%s2147 + $0x4] sm:$0x1]
    %v2470 = vld [vmem:[%s2147 + $0x8] sm:$0xe]
    %v2471 = vld [vmem:[%s2147 + $0xc] sm:$0x1]
    %v2472 = vld [vmem:[%s2147 + $0x10] sm:$0xe]
    %v2473 = vld [vmem:[%s2147 + $0x14] sm:$0x1]
    %v2474 = vld [vmem:[%s2147 + $0x18] sm:$0xe]
    %v2475 = vld [vmem:[%s2147 + $0x1c] sm:$0x1]
    %v2476 = vld [vmem:[%s2147 + $0x20] sm:$0xe]
    %v2477 = vld [vmem:[%s2147 + $0x24] sm:$0x1]
    %v2478 = vld [vmem:[%s2147 + $0x28] sm:$0xe]
    %v2479 = vld [vmem:[%s2147 + $0x2c] sm:$0x1]
    %v2480 = vld [vmem:[%s2147 + $0x30] sm:$0xe]
    %v2481 = vld [vmem:[%s2147 + $0x34] sm:$0x1]
    %v2482 = vld [vmem:[%s2147 + $0x38] sm:$0xe]
    %v2483 = vld [vmem:[%s2147 + $0x3c] sm:$0x1]
    %v2484 = vld [vmem:[%s2147 + $0x50] sm:$0xe]
    %v2485 = vld [vmem:[%s2147 + $0x54] sm:$0x1]
    %v2486 = vld [vmem:[%s2147 + $0x58] sm:$0xe]
    %v2487 = vld [vmem:[%s2147 + $0x5c] sm:$0x1]
    %v2488 = vld [vmem:[%s2147 + $0x60] sm:$0xe]
    %v2489 = vld [vmem:[%s2147 + $0x64] sm:$0x1]
    %v2490 = vld [vmem:[%s2147 + $0x68] sm:$0xe]
    %v2491 = vld [vmem:[%s2147 + $0x6c] sm:$0x1]
    %v2492 = vld [vmem:[%s2147 + $0x70] sm:$0xe]
    %v2493 = vld [vmem:[%s2147 + $0x74] sm:$0x1]
    %v2494 = vld [vmem:[%s2147 + $0x78] sm:$0xe]
    %v2495 = vld [vmem:[%s2147 + $0x7c] sm:$0x1]
    %v2496 = vld [vmem:[%s2147 + $0x80] sm:$0xe]
    %v2497 = vld [vmem:[%s2147 + $0x84] sm:$0x1]
    %v2498 = vld [vmem:[%s2147 + $0x88] sm:$0xe]
    %v2499 = vld [vmem:[%s2147 + $0x8c] sm:$0x1]
    %v2532 = vrot.slane %v2468, 5
    %v2533 = vrot.slane %v2532, 4
    %v2534 = vrot.slane %v2469, 5
    %v2535 = vsel %vm1570, %v2533, %v2534
    %v2536 = vrot.slane %v2470, 5
    %v2537 = vrot.slane %v2536, 4
    %v2538 = vrot.slane %v2471, 5
    %v2539 = vsel %vm1570, %v2537, %v2538
    %v2540 = vrot.slane %v2472, 5
    %v2541 = vrot.slane %v2540, 4
    %v2542 = vrot.slane %v2473, 5
    %v2543 = vsel %vm1570, %v2541, %v2542
    %v2544 = vrot.slane %v2474, 5
    %v2545 = vrot.slane %v2544, 4
    %v2546 = vrot.slane %v2475, 5
    %v2547 = vsel %vm1570, %v2545, %v2546
    %v2548 = vrot.slane %v2476, 5
    %v2549 = vrot.slane %v2548, 4
    %v2550 = vrot.slane %v2477, 5
    %v2551 = vsel %vm1570, %v2549, %v2550
    %v2552 = vrot.slane %v2478, 5
    %v2553 = vrot.slane %v2552, 4
    %v2554 = vrot.slane %v2479, 5
    %v2555 = vsel %vm1570, %v2553, %v2554
    %v2556 = vrot.slane %v2480, 5
    %v2557 = vrot.slane %v2556, 4
    %v2558 = vrot.slane %v2481, 5
    %v2559 = vsel %vm1570, %v2557, %v2558
    %v2560 = vrot.slane %v2482, 5
    %v2561 = vrot.slane %v2560, 4
    %v2562 = vrot.slane %v2483, 5
    %v2563 = vsel %vm1570, %v2561, %v2562
    %v2564 = vrot.slane %v2484, 5
    %v2565 = vrot.slane %v2564, 4
    %v2566 = vrot.slane %v2485, 5
    %v2567 = vsel %vm1570, %v2565, %v2566
    %v2568 = vrot.slane %v2486, 5
    %v2569 = vrot.slane %v2568, 4
    %v2570 = vrot.slane %v2487, 5
    %v2571 = vsel %vm1570, %v2569, %v2570
    %v2572 = vrot.slane %v2488, 5
    %v2573 = vrot.slane %v2572, 4
    %v2574 = vrot.slane %v2489, 5
    %v2575 = vsel %vm1570, %v2573, %v2574
    %v2576 = vrot.slane %v2490, 5
    %v2577 = vrot.slane %v2576, 4
    %v2578 = vrot.slane %v2491, 5
    %v2579 = vsel %vm1570, %v2577, %v2578
    %v2580 = vrot.slane %v2492, 5
    %v2581 = vrot.slane %v2580, 4
    %v2582 = vrot.slane %v2493, 5
    %v2583 = vsel %vm1570, %v2581, %v2582
    %v2584 = vrot.slane %v2494, 5
    %v2585 = vrot.slane %v2584, 4
    %v2586 = vrot.slane %v2495, 5
    %v2587 = vsel %vm1570, %v2585, %v2586
    %v2588 = vrot.slane %v2496, 5
    %v2589 = vrot.slane %v2588, 4
    %v2590 = vrot.slane %v2497, 5
    %v2591 = vsel %vm1570, %v2589, %v2590
    %v2592 = vrot.slane %v2498, 5
    %v2593 = vrot.slane %v2592, 4
    %v2594 = vrot.slane %v2499, 5
    %v2595 = vsel %vm1570, %v2593, %v2594
    %2612 = vst [vmem:[#allocation3 + $0x20] sm:$0xf] %v2535
    %2613 = vst [vmem:[#allocation3 + $0x44] sm:$0xf] %v2539
    %2614 = vst [vmem:[#allocation3 + $0x68] sm:$0xf] %v2543
    %2615 = vst [vmem:[#allocation3 + $0x8c] sm:$0xf] %v2547
    %2616 = vst [vmem:[#allocation3 + $0xb0] sm:$0xf] %v2551
    %2617 = vst [vmem:[#allocation3 + $0xd4] sm:$0xf] %v2555
    %2618 = vst [vmem:[#allocation3 + $0xf8] sm:$0xf] %v2559
    %2619 = vst [vmem:[#allocation3 + $0x11c] sm:$0xf] %v2563
    %2620 = vst [vmem:[#allocation3 + $0x140] sm:$0xf] %v2567
    %2621 = vst [vmem:[#allocation3 + $0x164] sm:$0xf] %v2571
    %2622 = vst [vmem:[#allocation3 + $0x188] sm:$0xf] %v2575
    %2623 = vst [vmem:[#allocation3 + $0x1ac] sm:$0xf] %v2579
    %2624 = vst [vmem:[#allocation3 + $0x1d0] sm:$0xf] %v2583
    %2625 = vst [vmem:[#allocation3 + $0x1f4] sm:$0xf] %v2587
    %2626 = vst [vmem:[#allocation3 + $0x218] sm:$0xf] %v2591
    %2627 = vst [vmem:[#allocation3 + $0x23c] sm:$0xf] %v2595
    %v2628 = vld [vmem:[#allocation3] sm:$0xff]
    %v2629 = vld [vmem:[#allocation3 + $0x8] sm:$0xff]
    %v2630 = vld [vmem:[#allocation3 + $0x10] sm:$0xff]
    %v2631 = vld [vmem:[#allocation3 + $0x18] sm:$0xff]
    %v2632 = vld [vmem:[#allocation3 + $0x20] sm:$0xf]
    %v2633 = vld [vmem:[#allocation3 + $0x24] sm:$0xff]
    %v2634 = vld [vmem:[#allocation3 + $0x2c] sm:$0xff]
    %v2635 = vld [vmem:[#allocation3 + $0x34] sm:$0xff]
    %v2636 = vld [vmem:[#allocation3 + $0x3c] sm:$0xff]
    %v2637 = vld [vmem:[#allocation3 + $0x44] sm:$0xf]
    %v2638 = vld [vmem:[#allocation3 + $0x48] sm:$0xff]
    %v2639 = vld [vmem:[#allocation3 + $0x50] sm:$0xff]
    %v2640 = vld [vmem:[#allocation3 + $0x58] sm:$0xff]
    %v2641 = vld [vmem:[#allocation3 + $0x60] sm:$0xff]
    %v2642 = vld [vmem:[#allocation3 + $0x68] sm:$0xf]
    %v2643 = vld [vmem:[#allocation3 + $0x6c] sm:$0xff]
    %v2644 = vld [vmem:[#allocation3 + $0x74] sm:$0xff]
    %v2645 = vld [vmem:[#allocation3 + $0x7c] sm:$0xff]
    %v2646 = vld [vmem:[#allocation3 + $0x84] sm:$0xff]
    %v2647 = vld [vmem:[#allocation3 + $0x8c] sm:$0xf]
    %v2648 = vld [vmem:[#allocation3 + $0x90] sm:$0xff]
    %v2649 = vld [vmem:[#allocation3 + $0x98] sm:$0xff]
    %v2650 = vld [vmem:[#allocation3 + $0xa0] sm:$0xff]
    %v2651 = vld [vmem:[#allocation3 + $0xa8] sm:$0xff]
    %v2652 = vld [vmem:[#allocation3 + $0xb0] sm:$0xf]
    %v2653 = vld [vmem:[#allocation3 + $0xb4] sm:$0xff]
    %v2654 = vld [vmem:[#allocation3 + $0xbc] sm:$0xff]
    %v2655 = vld [vmem:[#allocation3 + $0xc4] sm:$0xff]
    %v2656 = vld [vmem:[#allocation3 + $0xcc] sm:$0xff]
    %v2657 = vld [vmem:[#allocation3 + $0xd4] sm:$0xf]
    %v2658 = vld [vmem:[#allocation3 + $0xd8] sm:$0xff]
    %v2659 = vld [vmem:[#allocation3 + $0xe0] sm:$0xff]
    %v2660 = vld [vmem:[#allocation3 + $0xe8] sm:$0xff]
    %v2661 = vld [vmem:[#allocation3 + $0xf0] sm:$0xff]
    %v2662 = vld [vmem:[#allocation3 + $0xf8] sm:$0xf]
    %v2663 = vld [vmem:[#allocation3 + $0xfc] sm:$0xff]
    %v2664 = vld [vmem:[#allocation3 + $0x104] sm:$0xff]
    %v2665 = vld [vmem:[#allocation3 + $0x10c] sm:$0xff]
    %v2666 = vld [vmem:[#allocation3 + $0x114] sm:$0xff]
    %v2667 = vld [vmem:[#allocation3 + $0x11c] sm:$0xf]
    %v2668 = vld [vmem:[#allocation3 + $0x120] sm:$0xff]
    %v2669 = vld [vmem:[#allocation3 + $0x128] sm:$0xff]
    %v2670 = vld [vmem:[#allocation3 + $0x130] sm:$0xff]
    %v2671 = vld [vmem:[#allocation3 + $0x138] sm:$0xff]
    %v2672 = vld [vmem:[#allocation3 + $0x140] sm:$0xf]
    %v2673 = vld [vmem:[#allocation3 + $0x144] sm:$0xff]
    %v2674 = vld [vmem:[#allocation3 + $0x14c] sm:$0xff]
    %v2675 = vld [vmem:[#allocation3 + $0x154] sm:$0xff]
    %v2676 = vld [vmem:[#allocation3 + $0x15c] sm:$0xff]
    %v2677 = vld [vmem:[#allocation3 + $0x164] sm:$0xf]
    %v2678 = vld [vmem:[#allocation3 + $0x168] sm:$0xff]
    %v2679 = vld [vmem:[#allocation3 + $0x170] sm:$0xff]
    %v2680 = vld [vmem:[#allocation3 + $0x178] sm:$0xff]
    %v2681 = vld [vmem:[#allocation3 + $0x180] sm:$0xff]
    %v2682 = vld [vmem:[#allocation3 + $0x188] sm:$0xf]
    %v2683 = vld [vmem:[#allocation3 + $0x18c] sm:$0xff]
    %v2684 = vld [vmem:[#allocation3 + $0x194] sm:$0xff]
    %v2685 = vld [vmem:[#allocation3 + $0x19c] sm:$0xff]
    %v2686 = vld [vmem:[#allocation3 + $0x1a4] sm:$0xff]
    %v2687 = vld [vmem:[#allocation3 + $0x1ac] sm:$0xf]
    %v2688 = vld [vmem:[#allocation3 + $0x1b0] sm:$0xff]
    %v2689 = vld [vmem:[#allocation3 + $0x1b8] sm:$0xff]
    %v2690 = vld [vmem:[#allocation3 + $0x1c0] sm:$0xff]
    %v2691 = vld [vmem:[#allocation3 + $0x1c8] sm:$0xff]
    %v2692 = vld [vmem:[#allocation3 + $0x1d0] sm:$0xf]
    %v2693 = vld [vmem:[#allocation3 + $0x1d4] sm:$0xff]
    %v2694 = vld [vmem:[#allocation3 + $0x1dc] sm:$0xff]
    %v2695 = vld [vmem:[#allocation3 + $0x1e4] sm:$0xff]
    %v2696 = vld [vmem:[#allocation3 + $0x1ec] sm:$0xff]
    %v2697 = vld [vmem:[#allocation3 + $0x1f4] sm:$0xf]
    %v2698 = vld [vmem:[#allocation3 + $0x1f8] sm:$0xff]
    %v2699 = vld [vmem:[#allocation3 + $0x200] sm:$0xff]
    %v2700 = vld [vmem:[#allocation3 + $0x208] sm:$0xff]
    %v2701 = vld [vmem:[#allocation3 + $0x210] sm:$0xff]
    %v2702 = vld [vmem:[#allocation3 + $0x218] sm:$0xf]
    %v2703 = vld [vmem:[#allocation3 + $0x21c] sm:$0xff]
    %v2704 = vld [vmem:[#allocation3 + $0x224] sm:$0xff]
    %v2705 = vld [vmem:[#allocation3 + $0x22c] sm:$0xff]
    %v2706 = vld [vmem:[#allocation3 + $0x234] sm:$0xff]
    %v2707 = vld [vmem:[#allocation3 + $0x23c] sm:$0xf]
    %v2708 = vld [vmem:[#allocation8] sm:$0xf]
    %v2709 = vld [vmem:[#allocation8 + $0x4] sm:$0xf]
    %v2710 = vld [vmem:[#allocation8 + $0x8] sm:$0xf]
    %v2711 = vld [vmem:[#allocation8 + $0xc] sm:$0xf]
    %v2712 = vld [vmem:[#allocation8 + $0x10] sm:$0xf]
    %v2713 = vld [vmem:[#allocation8 + $0x14] sm:$0xf]
    %v2714 = vld [vmem:[#allocation8 + $0x18] sm:$0xf]
    %v2715 = vld [vmem:[#allocation8 + $0x1c] sm:$0xf]
    %v2716 = vld [vmem:[#allocation8 + $0x20] sm:$0xf]
    %v2717 = vld [vmem:[#allocation8 + $0x24] sm:$0xf]
    %v2718 = vld [vmem:[#allocation8 + $0x28] sm:$0xf]
    %v2719 = vld [vmem:[#allocation8 + $0x2c] sm:$0xf]
    %v2720 = vld [vmem:[#allocation8 + $0x30] sm:$0xf]
    %v2721 = vld [vmem:[#allocation8 + $0x34] sm:$0xf]
    %v2722 = vld [vmem:[#allocation8 + $0x38] sm:$0xf]
    %v2723 = vld [vmem:[#allocation8 + $0x3c] sm:$0xf]
    %v2724 = vld [vmem:[#allocation8 + $0x40] sm:$0xf]
    %v2725 = vld [vmem:[#allocation8 + $0x44] sm:$0xf]
    %v2726 = vld [vmem:[#allocation8 + $0x48] sm:$0xf]
    %v2727 = vld [vmem:[#allocation8 + $0x4c] sm:$0xf]
    %v2728 = vld [vmem:[#allocation8 + $0x50] sm:$0xf]
    %v2729 = vld [vmem:[#allocation8 + $0x54] sm:$0xf]
    %v2730 = vld [vmem:[#allocation8 + $0x58] sm:$0xf]
    %v2731 = vld [vmem:[#allocation8 + $0x5c] sm:$0xf]
    %v2732 = vld [vmem:[#allocation8 + $0x60] sm:$0xf]
    %v2733 = vld [vmem:[#allocation8 + $0x64] sm:$0xf]
    %v2734 = vld [vmem:[#allocation8 + $0x68] sm:$0xf]
    %v2735 = vld [vmem:[#allocation8 + $0x6c] sm:$0xf]
    %v2736 = vld [vmem:[#allocation8 + $0x70] sm:$0xf]
    %v2737 = vld [vmem:[#allocation8 + $0x74] sm:$0xf]
    %v2738 = vld [vmem:[#allocation8 + $0x78] sm:$0xf]
    %v2739 = vld [vmem:[#allocation8 + $0x7c] sm:$0xf]
    %v2740 = vld [vmem:[#allocation8 + $0x80] sm:$0xf]
    %v2741 = vld [vmem:[#allocation8 + $0x84] sm:$0xf]
    %v2742 = vld [vmem:[#allocation8 + $0x88] sm:$0xf]
    %v2743 = vld [vmem:[#allocation8 + $0x8c] sm:$0xf]
    %v2744 = vld [vmem:[#allocation8 + $0x90] sm:$0xf]
    %v2745 = vld [vmem:[#allocation8 + $0x94] sm:$0xf]
    %v2746 = vld [vmem:[#allocation8 + $0x98] sm:$0xf]
    %v2747 = vld [vmem:[#allocation8 + $0x9c] sm:$0xf]
    %v2748 = vld [vmem:[#allocation8 + $0xa0] sm:$0xf]
    %v2749 = vld [vmem:[#allocation8 + $0xa4] sm:$0xf]
    %v2750 = vld [vmem:[#allocation8 + $0xa8] sm:$0xf]
    %v2751 = vld [vmem:[#allocation8 + $0xac] sm:$0xf]
    %v2752 = vld [vmem:[#allocation8 + $0xb0] sm:$0xf]
    %v2753 = vld [vmem:[#allocation8 + $0xb4] sm:$0xf]
    %v2754 = vld [vmem:[#allocation8 + $0xb8] sm:$0xf]
    %v2755 = vld [vmem:[#allocation8 + $0xbc] sm:$0xf]
    %v2756 = vld [vmem:[#allocation8 + $0xc0] sm:$0xf]
    %v2757 = vld [vmem:[#allocation8 + $0xc4] sm:$0xf]
    %v2758 = vld [vmem:[#allocation8 + $0xc8] sm:$0xf]
    %v2759 = vld [vmem:[#allocation8 + $0xcc] sm:$0xf]
    %v2760 = vld [vmem:[#allocation8 + $0xd0] sm:$0xf]
    %v2761 = vld [vmem:[#allocation8 + $0xd4] sm:$0xf]
    %v2762 = vld [vmem:[#allocation8 + $0xd8] sm:$0xf]
    %v2763 = vld [vmem:[#allocation8 + $0xdc] sm:$0xf]
    %v2764 = vld [vmem:[#allocation8 + $0xe0] sm:$0xf]
    %v2765 = vld [vmem:[#allocation8 + $0xe4] sm:$0xf]
    %v2766 = vld [vmem:[#allocation8 + $0xe8] sm:$0xf]
    %v2767 = vld [vmem:[#allocation8 + $0xec] sm:$0xf]
    %v2768 = vld [vmem:[#allocation8 + $0xf0] sm:$0xf]
    %v2769 = vld [vmem:[#allocation8 + $0xf4] sm:$0xf]
    %v2770 = vld [vmem:[#allocation8 + $0xf8] sm:$0xf]
    %v2771 = vld [vmem:[#allocation8 + $0xfc] sm:$0xf]
    %v2772 = vld [vmem:[#allocation8 + $0x100] sm:$0xf]
    %v2773 = vld [vmem:[#allocation8 + $0x104] sm:$0xf]
    %v2774 = vld [vmem:[#allocation8 + $0x108] sm:$0xf]
    %v2775 = vld [vmem:[#allocation8 + $0x10c] sm:$0xf]
    %v2776 = vld [vmem:[#allocation8 + $0x110] sm:$0xf]
    %v2777 = vld [vmem:[#allocation8 + $0x114] sm:$0xf]
    %v2778 = vld [vmem:[#allocation8 + $0x118] sm:$0xf]
    %v2779 = vld [vmem:[#allocation8 + $0x11c] sm:$0xf]
    %v2780 = vld [vmem:[#allocation8 + $0x120] sm:$0xf]
    %v2781 = vld [vmem:[#allocation8 + $0x124] sm:$0xf]
    %v2782 = vld [vmem:[#allocation8 + $0x128] sm:$0xf]
    %v2783 = vld [vmem:[#allocation8 + $0x12c] sm:$0xf]
    %v2784 = vld [vmem:[#allocation8 + $0x130] sm:$0xf]
    %v2785 = vld [vmem:[#allocation8 + $0x134] sm:$0xf]
    %v2786 = vld [vmem:[#allocation8 + $0x138] sm:$0xf]
    %v2787 = vld [vmem:[#allocation8 + $0x13c] sm:$0xf]
    %v2788 = vld [vmem:[#allocation8 + $0x140] sm:$0xf]
    %v2789 = vld [vmem:[#allocation8 + $0x144] sm:$0xf]
    %v2790 = vld [vmem:[#allocation8 + $0x148] sm:$0xf]
    %v2791 = vld [vmem:[#allocation8 + $0x14c] sm:$0xf]
    %v2792 = vld [vmem:[#allocation8 + $0x150] sm:$0xf]
    %v2793 = vld [vmem:[#allocation8 + $0x154] sm:$0xf]
    %v2794 = vld [vmem:[#allocation8 + $0x158] sm:$0xf]
    %v2795 = vld [vmem:[#allocation8 + $0x15c] sm:$0xf]
    %v2796 = vld [vmem:[#allocation8 + $0x160] sm:$0xf]
    %v2797 = vld [vmem:[#allocation8 + $0x164] sm:$0xf]
    %v2798 = vld [vmem:[#allocation8 + $0x168] sm:$0xf]
    %v2799 = vld [vmem:[#allocation8 + $0x16c] sm:$0xf]
    %v2800 = vld [vmem:[#allocation8 + $0x170] sm:$0xf]
    %v2801 = vld [vmem:[#allocation8 + $0x174] sm:$0xf]
    %v2802 = vld [vmem:[#allocation8 + $0x178] sm:$0xf]
    %v2803 = vld [vmem:[#allocation8 + $0x17c] sm:$0xf]
    %v2804 = vld [vmem:[#allocation8 + $0x180] sm:$0xf]
    %v2805 = vld [vmem:[#allocation8 + $0x184] sm:$0xf]
    %v2806 = vld [vmem:[#allocation8 + $0x188] sm:$0xf]
    %v2807 = vld [vmem:[#allocation8 + $0x18c] sm:$0xf]
    %v2808 = vld [vmem:[#allocation8 + $0x190] sm:$0xf]
    %v2809 = vld [vmem:[#allocation8 + $0x194] sm:$0xf]
    %v2810 = vld [vmem:[#allocation8 + $0x198] sm:$0xf]
    %v2811 = vld [vmem:[#allocation8 + $0x19c] sm:$0xf]
    %v2812 = vld [vmem:[#allocation8 + $0x1a0] sm:$0xf]
    %v2813 = vld [vmem:[#allocation8 + $0x1a4] sm:$0xf]
    %v2814 = vld [vmem:[#allocation8 + $0x1a8] sm:$0xf]
    %v2815 = vld [vmem:[#allocation8 + $0x1ac] sm:$0xf]
    %v2816 = vld [vmem:[#allocation8 + $0x1b0] sm:$0xf]
    %v2817 = vld [vmem:[#allocation8 + $0x1b4] sm:$0xf]
    %v2818 = vld [vmem:[#allocation8 + $0x1b8] sm:$0xf]
    %v2819 = vld [vmem:[#allocation8 + $0x1bc] sm:$0xf]
    %v2820 = vld [vmem:[#allocation8 + $0x1c0] sm:$0xf]
    %v2821 = vld [vmem:[#allocation8 + $0x1c4] sm:$0xf]
    %v2822 = vld [vmem:[#allocation8 + $0x1c8] sm:$0xf]
    %v2823 = vld [vmem:[#allocation8 + $0x1cc] sm:$0xf]
    %v2824 = vld [vmem:[#allocation8 + $0x1d0] sm:$0xf]
    %v2825 = vld [vmem:[#allocation8 + $0x1d4] sm:$0xf]
    %v2826 = vld [vmem:[#allocation8 + $0x1d8] sm:$0xf]
    %v2827 = vld [vmem:[#allocation8 + $0x1dc] sm:$0xf]
    %v2828 = vld [vmem:[#allocation8 + $0x1e0] sm:$0xf]
    %v2829 = vld [vmem:[#allocation8 + $0x1e4] sm:$0xf]
    %v2830 = vld [vmem:[#allocation8 + $0x1e8] sm:$0xf]
    %v2831 = vld [vmem:[#allocation8 + $0x1ec] sm:$0xf]
    %v2832 = vld [vmem:[#allocation8 + $0x1f0] sm:$0xf]
    %v2833 = vld [vmem:[#allocation8 + $0x1f4] sm:$0xf]
    %v2834 = vld [vmem:[#allocation8 + $0x1f8] sm:$0xf]
    %v2835 = vld [vmem:[#allocation8 + $0x1fc] sm:$0xf]
    %v2836 = vld [vmem:[#allocation8 + $0x200] sm:$0xf]
    %v2837 = vld [vmem:[#allocation8 + $0x204] sm:$0xf]
    %v2838 = vld [vmem:[#allocation8 + $0x208] sm:$0xf]
    %v2839 = vld [vmem:[#allocation8 + $0x20c] sm:$0xf]
    %v2840 = vld [vmem:[#allocation8 + $0x210] sm:$0xf]
    %v2841 = vld [vmem:[#allocation8 + $0x214] sm:$0xf]
    %v2842 = vld [vmem:[#allocation8 + $0x218] sm:$0xf]
    %v2843 = vld [vmem:[#allocation8 + $0x21c] sm:$0xf]
    %v2844 = vld [vmem:[#allocation8 + $0x220] sm:$0xf]
    %v2845 = vld [vmem:[#allocation8 + $0x224] sm:$0xf]
    %v2846 = vld [vmem:[#allocation8 + $0x228] sm:$0xf]
    %v2847 = vld [vmem:[#allocation8 + $0x22c] sm:$0xf]
    %v2848 = vld [vmem:[#allocation8 + $0x230] sm:$0xf]
    %v2849 = vld [vmem:[#allocation8 + $0x234] sm:$0xf]
    %v2850 = vld [vmem:[#allocation8 + $0x238] sm:$0xf]
    %v2851 = vld [vmem:[#allocation8 + $0x23c] sm:$0xf]
    %v2852 = vld [vmem:[%s4] sm:$0x1]
    %v2854 = vlaneseq
    %v2855 = vshrl.u32 %v2854, 7
    %v2856 = vsub.s32 0, %v2855
    %v2857 = vrot.slane %v2852, %v2856
    %v2939 = vunpack.c.l.b16 %v2628
    %v2940 = vunpack.c.h.b16 %v2628
    %v2941 = vunpack.c.l.b16 %v2629
    %v2942 = vunpack.c.h.b16 %v2629
    %v2943 = vunpack.c.l.b16 %v2630
    %v2944 = vunpack.c.h.b16 %v2630
    %v2945 = vunpack.c.l.b16 %v2631
    %v2946 = vunpack.c.h.b16 %v2631
    %v2947 = vunpack.c.l.b16 %v2632
    %v2948 = vunpack.c.l.b16 %v2633
    %v2949 = vunpack.c.h.b16 %v2633
    %v2950 = vunpack.c.l.b16 %v2634
    %v2951 = vunpack.c.h.b16 %v2634
    %v2952 = vunpack.c.l.b16 %v2635
    %v2953 = vunpack.c.h.b16 %v2635
    %v2954 = vunpack.c.l.b16 %v2636
    %v2955 = vunpack.c.h.b16 %v2636
    %v2956 = vunpack.c.l.b16 %v2637
    %v2957 = vunpack.c.l.b16 %v2638
    %v2958 = vunpack.c.h.b16 %v2638
    %v2959 = vunpack.c.l.b16 %v2639
    %v2960 = vunpack.c.h.b16 %v2639
    %v2961 = vunpack.c.l.b16 %v2640
    %v2962 = vunpack.c.h.b16 %v2640
    %v2963 = vunpack.c.l.b16 %v2641
    %v2964 = vunpack.c.h.b16 %v2641
    %v2965 = vunpack.c.l.b16 %v2642
    %v2966 = vunpack.c.l.b16 %v2643
    %v2967 = vunpack.c.h.b16 %v2643
    %v2968 = vunpack.c.l.b16 %v2644
    %v2969 = vunpack.c.h.b16 %v2644
    %v2970 = vunpack.c.l.b16 %v2645
    %v2971 = vunpack.c.h.b16 %v2645
    %v2972 = vunpack.c.l.b16 %v2646
    %v2973 = vunpack.c.h.b16 %v2646
    %v2974 = vunpack.c.l.b16 %v2647
    %v2975 = vunpack.c.l.b16 %v2648
    %v2976 = vunpack.c.h.b16 %v2648
    %v2977 = vunpack.c.l.b16 %v2649
    %v2978 = vunpack.c.h.b16 %v2649
    %v2979 = vunpack.c.l.b16 %v2650
    %v2980 = vunpack.c.h.b16 %v2650
    %v2981 = vunpack.c.l.b16 %v2651
    %v2982 = vunpack.c.h.b16 %v2651
    %v2983 = vunpack.c.l.b16 %v2652
    %v2984 = vunpack.c.l.b16 %v2653
    %v2985 = vunpack.c.h.b16 %v2653
    %v2986 = vunpack.c.l.b16 %v2654
    %v2987 = vunpack.c.h.b16 %v2654
    %v2988 = vunpack.c.l.b16 %v2655
    %v2989 = vunpack.c.h.b16 %v2655
    %v2990 = vunpack.c.l.b16 %v2656
    %v2991 = vunpack.c.h.b16 %v2656
    %v2992 = vunpack.c.l.b16 %v2657
    %v2993 = vunpack.c.l.b16 %v2658
    %v2994 = vunpack.c.h.b16 %v2658
    %v2995 = vunpack.c.l.b16 %v2659
    %v2996 = vunpack.c.h.b16 %v2659
    %v2997 = vunpack.c.l.b16 %v2660
    %v2998 = vunpack.c.h.b16 %v2660
    %v2999 = vunpack.c.l.b16 %v2661
    %v3000 = vunpack.c.h.b16 %v2661
    %v3001 = vunpack.c.l.b16 %v2662
    %v3002 = vunpack.c.l.b16 %v2663
    %v3003 = vunpack.c.h.b16 %v2663
    %v3004 = vunpack.c.l.b16 %v2664
    %v3005 = vunpack.c.h.b16 %v2664
    %v3006 = vunpack.c.l.b16 %v2665
    %v3007 = vunpack.c.h.b16 %v2665
    %v3008 = vunpack.c.l.b16 %v2666
    %v3009 = vunpack.c.h.b16 %v2666
    %v3010 = vunpack.c.l.b16 %v2667
    %v3011 = vunpack.c.l.b16 %v2668
    %v3012 = vunpack.c.h.b16 %v2668
    %v3013 = vunpack.c.l.b16 %v2669
    %v3014 = vunpack.c.h.b16 %v2669
    %v3015 = vunpack.c.l.b16 %v2670
    %v3016 = vunpack.c.h.b16 %v2670
    %v3017 = vunpack.c.l.b16 %v2671
    %v3018 = vunpack.c.h.b16 %v2671
    %v3019 = vunpack.c.l.b16 %v2672
    %v3020 = vunpack.c.l.b16 %v2673
    %v3021 = vunpack.c.h.b16 %v2673
    %v3022 = vunpack.c.l.b16 %v2674
    %v3023 = vunpack.c.h.b16 %v2674
    %v3024 = vunpack.c.l.b16 %v2675
    %v3025 = vunpack.c.h.b16 %v2675
    %v3026 = vunpack.c.l.b16 %v2676
    %v3027 = vunpack.c.h.b16 %v2676
    %v3028 = vunpack.c.l.b16 %v2677
    %v3029 = vunpack.c.l.b16 %v2678
    %v3030 = vunpack.c.h.b16 %v2678
    %v3031 = vunpack.c.l.b16 %v2679
    %v3032 = vunpack.c.h.b16 %v2679
    %v3033 = vunpack.c.l.b16 %v2680
    %v3034 = vunpack.c.h.b16 %v2680
    %v3035 = vunpack.c.l.b16 %v2681
    %v3036 = vunpack.c.h.b16 %v2681
    %v3037 = vunpack.c.l.b16 %v2682
    %v3038 = vunpack.c.l.b16 %v2683
    %v3039 = vunpack.c.h.b16 %v2683
    %v3040 = vunpack.c.l.b16 %v2684
    %v3041 = vunpack.c.h.b16 %v2684
    %v3042 = vunpack.c.l.b16 %v2685
    %v3043 = vunpack.c.h.b16 %v2685
    %v3044 = vunpack.c.l.b16 %v2686
    %v3045 = vunpack.c.h.b16 %v2686
    %v3046 = vunpack.c.l.b16 %v2687
    %v3047 = vunpack.c.l.b16 %v2688
    %v3048 = vunpack.c.h.b16 %v2688
    %v3049 = vunpack.c.l.b16 %v2689
    %v3050 = vunpack.c.h.b16 %v2689
    %v3051 = vunpack.c.l.b16 %v2690
    %v3052 = vunpack.c.h.b16 %v2690
    %v3053 = vunpack.c.l.b16 %v2691
    %v3054 = vunpack.c.h.b16 %v2691
    %v3055 = vunpack.c.l.b16 %v2692
    %v3056 = vunpack.c.l.b16 %v2693
    %v3057 = vunpack.c.h.b16 %v2693
    %v3058 = vunpack.c.l.b16 %v2694
    %v3059 = vunpack.c.h.b16 %v2694
    %v3060 = vunpack.c.l.b16 %v2695
    %v3061 = vunpack.c.h.b16 %v2695
    %v3062 = vunpack.c.l.b16 %v2696
    %v3063 = vunpack.c.h.b16 %v2696
    %v3064 = vunpack.c.l.b16 %v2697
    %v3065 = vunpack.c.l.b16 %v2698
    %v3066 = vunpack.c.h.b16 %v2698
    %v3067 = vunpack.c.l.b16 %v2699
    %v3068 = vunpack.c.h.b16 %v2699
    %v3069 = vunpack.c.l.b16 %v2700
    %v3070 = vunpack.c.h.b16 %v2700
    %v3071 = vunpack.c.l.b16 %v2701
    %v3072 = vunpack.c.h.b16 %v2701
    %v3073 = vunpack.c.l.b16 %v2702
    %v3074 = vunpack.c.l.b16 %v2703
    %v3075 = vunpack.c.h.b16 %v2703
    %v3076 = vunpack.c.l.b16 %v2704
    %v3077 = vunpack.c.h.b16 %v2704
    %v3078 = vunpack.c.l.b16 %v2705
    %v3079 = vunpack.c.h.b16 %v2705
    %v3080 = vunpack.c.l.b16 %v2706
    %v3081 = vunpack.c.h.b16 %v2706
    %v3082 = vunpack.c.l.b16 %v2707
    %v3083 = vpack.c.b16 %v2948, %v2939
    %v3084 = vpack.c.b16 %v2949, %v2940
    %v3085 = vpack.c.b16 %v2950, %v2941
    %v3086 = vpack.c.b16 %v2951, %v2942
    %v3087 = vpack.c.b16 %v2952, %v2943
    %v3088 = vpack.c.b16 %v2953, %v2944
    %v3089 = vpack.c.b16 %v2954, %v2945
    %v3090 = vpack.c.b16 %v2955, %v2946
    %v3091 = vpack.c.b16 %v2956, %v2947
    %v3092 = vpack.c.b16 %v2966, %v2957
    %v3093 = vpack.c.b16 %v2967, %v2958
    %v3094 = vpack.c.b16 %v2968, %v2959
    %v3095 = vpack.c.b16 %v2969, %v2960
    %v3096 = vpack.c.b16 %v2970, %v2961
    %v3097 = vpack.c.b16 %v2971, %v2962
    %v3098 = vpack.c.b16 %v2972, %v2963
    %v3099 = vpack.c.b16 %v2973, %v2964
    %v3100 = vpack.c.b16 %v2974, %v2965
    %v3101 = vpack.c.b16 %v2984, %v2975
    %v3102 = vpack.c.b16 %v2985, %v2976
    %v3103 = vpack.c.b16 %v2986, %v2977
    %v3104 = vpack.c.b16 %v2987, %v2978
    %v3105 = vpack.c.b16 %v2988, %v2979
    %v3106 = vpack.c.b16 %v2989, %v2980
    %v3107 = vpack.c.b16 %v2990, %v2981
    %v3108 = vpack.c.b16 %v2991, %v2982
    %v3109 = vpack.c.b16 %v2992, %v2983
    %v3110 = vpack.c.b16 %v3002, %v2993
    %v3111 = vpack.c.b16 %v3003, %v2994
    %v3112 = vpack.c.b16 %v3004, %v2995
    %v3113 = vpack.c.b16 %v3005, %v2996
    %v3114 = vpack.c.b16 %v3006, %v2997
    %v3115 = vpack.c.b16 %v3007, %v2998
    %v3116 = vpack.c.b16 %v3008, %v2999
    %v3117 = vpack.c.b16 %v3009, %v3000
    %v3118 = vpack.c.b16 %v3010, %v3001
    %v3119 = vpack.c.b16 %v3020, %v3011
    %v3120 = vpack.c.b16 %v3021, %v3012
    %v3121 = vpack.c.b16 %v3022, %v3013
    %v3122 = vpack.c.b16 %v3023, %v3014
    %v3123 = vpack.c.b16 %v3024, %v3015
    %v3124 = vpack.c.b16 %v3025, %v3016
    %v3125 = vpack.c.b16 %v3026, %v3017
    %v3126 = vpack.c.b16 %v3027, %v3018
    %v3127 = vpack.c.b16 %v3028, %v3019
    %v3128 = vpack.c.b16 %v3038, %v3029
    %v3129 = vpack.c.b16 %v3039, %v3030
    %v3130 = vpack.c.b16 %v3040, %v3031
    %v3131 = vpack.c.b16 %v3041, %v3032
    %v3132 = vpack.c.b16 %v3042, %v3033
    %v3133 = vpack.c.b16 %v3043, %v3034
    %v3134 = vpack.c.b16 %v3044, %v3035
    %v3135 = vpack.c.b16 %v3045, %v3036
    %v3136 = vpack.c.b16 %v3046, %v3037
    %v3137 = vpack.c.b16 %v3056, %v3047
    %v3138 = vpack.c.b16 %v3057, %v3048
    %v3139 = vpack.c.b16 %v3058, %v3049
    %v3140 = vpack.c.b16 %v3059, %v3050
    %v3141 = vpack.c.b16 %v3060, %v3051
    %v3142 = vpack.c.b16 %v3061, %v3052
    %v3143 = vpack.c.b16 %v3062, %v3053
    %v3144 = vpack.c.b16 %v3063, %v3054
    %v3145 = vpack.c.b16 %v3064, %v3055
    %v3146 = vpack.c.b16 %v3074, %v3065
    %v3147 = vpack.c.b16 %v3075, %v3066
    %v3148 = vpack.c.b16 %v3076, %v3067
    %v3149 = vpack.c.b16 %v3077, %v3068
    %v3150 = vpack.c.b16 %v3078, %v3069
    %v3151 = vpack.c.b16 %v3079, %v3070
    %v3152 = vpack.c.b16 %v3080, %v3071
    %v3153 = vpack.c.b16 %v3081, %v3072
    %v3154 = vpack.c.b16 %v3082, %v3073
    %v3371 = vunpack.c.l.b16 %v2708
    %v3372 = vunpack.c.l.b16 %v2709
    %v3373 = vunpack.c.l.b16 %v2710
    %v3374 = vunpack.c.l.b16 %v2711
    %v3375 = vunpack.c.l.b16 %v2712
    %v3376 = vunpack.c.l.b16 %v2713
    %v3377 = vunpack.c.l.b16 %v2714
    %v3378 = vunpack.c.l.b16 %v2715
    %v3379 = vunpack.c.l.b16 %v2716
    %v3380 = vunpack.c.l.b16 %v2717
    %v3381 = vunpack.c.l.b16 %v2718
    %v3382 = vunpack.c.l.b16 %v2719
    %v3383 = vunpack.c.l.b16 %v2720
    %v3384 = vunpack.c.l.b16 %v2721
    %v3385 = vunpack.c.l.b16 %v2722
    %v3386 = vunpack.c.l.b16 %v2723
    %v3387 = vunpack.c.l.b16 %v2724
    %v3388 = vunpack.c.l.b16 %v2725
    %v3389 = vunpack.c.l.b16 %v2726
    %v3390 = vunpack.c.l.b16 %v2727
    %v3391 = vunpack.c.l.b16 %v2728
    %v3392 = vunpack.c.l.b16 %v2729
    %v3393 = vunpack.c.l.b16 %v2730
    %v3394 = vunpack.c.l.b16 %v2731
    %v3395 = vunpack.c.l.b16 %v2732
    %v3396 = vunpack.c.l.b16 %v2733
    %v3397 = vunpack.c.l.b16 %v2734
    %v3398 = vunpack.c.l.b16 %v2735
    %v3399 = vunpack.c.l.b16 %v2736
    %v3400 = vunpack.c.l.b16 %v2737
    %v3401 = vunpack.c.l.b16 %v2738
    %v3402 = vunpack.c.l.b16 %v2739
    %v3403 = vunpack.c.l.b16 %v2740
    %v3404 = vunpack.c.l.b16 %v2741
    %v3405 = vunpack.c.l.b16 %v2742
    %v3406 = vunpack.c.l.b16 %v2743
    %v3407 = vunpack.c.l.b16 %v2744
    %v3408 = vunpack.c.l.b16 %v2745
    %v3409 = vunpack.c.l.b16 %v2746
    %v3410 = vunpack.c.l.b16 %v2747
    %v3411 = vunpack.c.l.b16 %v2748
    %v3412 = vunpack.c.l.b16 %v2749
    %v3413 = vunpack.c.l.b16 %v2750
    %v3414 = vunpack.c.l.b16 %v2751
    %v3415 = vunpack.c.l.b16 %v2752
    %v3416 = vunpack.c.l.b16 %v2753
    %v3417 = vunpack.c.l.b16 %v2754
    %v3418 = vunpack.c.l.b16 %v2755
    %v3419 = vunpack.c.l.b16 %v2756
    %v3420 = vunpack.c.l.b16 %v2757
    %v3421 = vunpack.c.l.b16 %v2758
    %v3422 = vunpack.c.l.b16 %v2759
    %v3423 = vunpack.c.l.b16 %v2760
    %v3424 = vunpack.c.l.b16 %v2761
    %v3425 = vunpack.c.l.b16 %v2762
    %v3426 = vunpack.c.l.b16 %v2763
    %v3427 = vunpack.c.l.b16 %v2764
    %v3428 = vunpack.c.l.b16 %v2765
    %v3429 = vunpack.c.l.b16 %v2766
    %v3430 = vunpack.c.l.b16 %v2767
    %v3431 = vunpack.c.l.b16 %v2768
    %v3432 = vunpack.c.l.b16 %v2769
    %v3433 = vunpack.c.l.b16 %v2770
    %v3434 = vunpack.c.l.b16 %v2771
    %v3435 = vunpack.c.l.b16 %v2772
    %v3436 = vunpack.c.l.b16 %v2773
    %v3437 = vunpack.c.l.b16 %v2774
    %v3438 = vunpack.c.l.b16 %v2775
    %v3439 = vunpack.c.l.b16 %v2776
    %v3440 = vunpack.c.l.b16 %v2777
    %v3441 = vunpack.c.l.b16 %v2778
    %v3442 = vunpack.c.l.b16 %v2779
    %v3443 = vunpack.c.l.b16 %v2780
    %v3444 = vunpack.c.l.b16 %v2781
    %v3445 = vunpack.c.l.b16 %v2782
    %v3446 = vunpack.c.l.b16 %v2783
    %v3447 = vunpack.c.l.b16 %v2784
    %v3448 = vunpack.c.l.b16 %v2785
    %v3449 = vunpack.c.l.b16 %v2786
    %v3450 = vunpack.c.l.b16 %v2787
    %v3451 = vunpack.c.l.b16 %v2788
    %v3452 = vunpack.c.l.b16 %v2789
    %v3453 = vunpack.c.l.b16 %v2790
    %v3454 = vunpack.c.l.b16 %v2791
    %v3455 = vunpack.c.l.b16 %v2792
    %v3456 = vunpack.c.l.b16 %v2793
    %v3457 = vunpack.c.l.b16 %v2794
    %v3458 = vunpack.c.l.b16 %v2795
    %v3459 = vunpack.c.l.b16 %v2796
    %v3460 = vunpack.c.l.b16 %v2797
    %v3461 = vunpack.c.l.b16 %v2798
    %v3462 = vunpack.c.l.b16 %v2799
    %v3463 = vunpack.c.l.b16 %v2800
    %v3464 = vunpack.c.l.b16 %v2801
    %v3465 = vunpack.c.l.b16 %v2802
    %v3466 = vunpack.c.l.b16 %v2803
    %v3467 = vunpack.c.l.b16 %v2804
    %v3468 = vunpack.c.l.b16 %v2805
    %v3469 = vunpack.c.l.b16 %v2806
    %v3470 = vunpack.c.l.b16 %v2807
    %v3471 = vunpack.c.l.b16 %v2808
    %v3472 = vunpack.c.l.b16 %v2809
    %v3473 = vunpack.c.l.b16 %v2810
    %v3474 = vunpack.c.l.b16 %v2811
    %v3475 = vunpack.c.l.b16 %v2812
    %v3476 = vunpack.c.l.b16 %v2813
    %v3477 = vunpack.c.l.b16 %v2814
    %v3478 = vunpack.c.l.b16 %v2815
    %v3479 = vunpack.c.l.b16 %v2816
    %v3480 = vunpack.c.l.b16 %v2817
    %v3481 = vunpack.c.l.b16 %v2818
    %v3482 = vunpack.c.l.b16 %v2819
    %v3483 = vunpack.c.l.b16 %v2820
    %v3484 = vunpack.c.l.b16 %v2821
    %v3485 = vunpack.c.l.b16 %v2822
    %v3486 = vunpack.c.l.b16 %v2823
    %v3487 = vunpack.c.l.b16 %v2824
    %v3488 = vunpack.c.l.b16 %v2825
    %v3489 = vunpack.c.l.b16 %v2826
    %v3490 = vunpack.c.l.b16 %v2827
    %v3491 = vunpack.c.l.b16 %v2828
    %v3492 = vunpack.c.l.b16 %v2829
    %v3493 = vunpack.c.l.b16 %v2830
    %v3494 = vunpack.c.l.b16 %v2831
    %v3495 = vunpack.c.l.b16 %v2832
    %v3496 = vunpack.c.l.b16 %v2833
    %v3497 = vunpack.c.l.b16 %v2834
    %v3498 = vunpack.c.l.b16 %v2835
    %v3499 = vunpack.c.l.b16 %v2836
    %v3500 = vunpack.c.l.b16 %v2837
    %v3501 = vunpack.c.l.b16 %v2838
    %v3502 = vunpack.c.l.b16 %v2839
    %v3503 = vunpack.c.l.b16 %v2840
    %v3504 = vunpack.c.l.b16 %v2841
    %v3505 = vunpack.c.l.b16 %v2842
    %v3506 = vunpack.c.l.b16 %v2843
    %v3507 = vunpack.c.l.b16 %v2844
    %v3508 = vunpack.c.l.b16 %v2845
    %v3509 = vunpack.c.l.b16 %v2846
    %v3510 = vunpack.c.l.b16 %v2847
    %v3511 = vunpack.c.l.b16 %v2848
    %v3512 = vunpack.c.l.b16 %v2849
    %v3513 = vunpack.c.l.b16 %v2850
    %v3514 = vunpack.c.l.b16 %v2851
    %v3515 = vpack.c.b16 %v3372, %v3371
    %v3516 = vpack.c.b16 %v3374, %v3373
    %v3517 = vpack.c.b16 %v3376, %v3375
    %v3518 = vpack.c.b16 %v3378, %v3377
    %v3519 = vpack.c.b16 %v3380, %v3379
    %v3520 = vpack.c.b16 %v3382, %v3381
    %v3521 = vpack.c.b16 %v3384, %v3383
    %v3522 = vpack.c.b16 %v3386, %v3385
    %v3523 = vpack.c.b16 %v3388, %v3387
    %v3524 = vpack.c.b16 %v3390, %v3389
    %v3525 = vpack.c.b16 %v3392, %v3391
    %v3526 = vpack.c.b16 %v3394, %v3393
    %v3527 = vpack.c.b16 %v3396, %v3395
    %v3528 = vpack.c.b16 %v3398, %v3397
    %v3529 = vpack.c.b16 %v3400, %v3399
    %v3530 = vpack.c.b16 %v3402, %v3401
    %v3531 = vpack.c.b16 %v3404, %v3403
    %v3532 = vpack.c.b16 %v3406, %v3405
    %v3533 = vpack.c.b16 %v3408, %v3407
    %v3534 = vpack.c.b16 %v3410, %v3409
    %v3535 = vpack.c.b16 %v3412, %v3411
    %v3536 = vpack.c.b16 %v3414, %v3413
    %v3537 = vpack.c.b16 %v3416, %v3415
    %v3538 = vpack.c.b16 %v3418, %v3417
    %v3539 = vpack.c.b16 %v3420, %v3419
    %v3540 = vpack.c.b16 %v3422, %v3421
    %v3541 = vpack.c.b16 %v3424, %v3423
    %v3542 = vpack.c.b16 %v3426, %v3425
    %v3543 = vpack.c.b16 %v3428, %v3427
    %v3544 = vpack.c.b16 %v3430, %v3429
    %v3545 = vpack.c.b16 %v3432, %v3431
    %v3546 = vpack.c.b16 %v3434, %v3433
    %v3547 = vpack.c.b16 %v3436, %v3435
    %v3548 = vpack.c.b16 %v3438, %v3437
    %v3549 = vpack.c.b16 %v3440, %v3439
    %v3550 = vpack.c.b16 %v3442, %v3441
    %v3551 = vpack.c.b16 %v3444, %v3443
    %v3552 = vpack.c.b16 %v3446, %v3445
    %v3553 = vpack.c.b16 %v3448, %v3447
    %v3554 = vpack.c.b16 %v3450, %v3449
    %v3555 = vpack.c.b16 %v3452, %v3451
    %v3556 = vpack.c.b16 %v3454, %v3453
    %v3557 = vpack.c.b16 %v3456, %v3455
    %v3558 = vpack.c.b16 %v3458, %v3457
    %v3559 = vpack.c.b16 %v3460, %v3459
    %v3560 = vpack.c.b16 %v3462, %v3461
    %v3561 = vpack.c.b16 %v3464, %v3463
    %v3562 = vpack.c.b16 %v3466, %v3465
    %v3563 = vpack.c.b16 %v3468, %v3467
    %v3564 = vpack.c.b16 %v3470, %v3469
    %v3565 = vpack.c.b16 %v3472, %v3471
    %v3566 = vpack.c.b16 %v3474, %v3473
    %v3567 = vpack.c.b16 %v3476, %v3475
    %v3568 = vpack.c.b16 %v3478, %v3477
    %v3569 = vpack.c.b16 %v3480, %v3479
    %v3570 = vpack.c.b16 %v3482, %v3481
    %v3571 = vpack.c.b16 %v3484, %v3483
    %v3572 = vpack.c.b16 %v3486, %v3485
    %v3573 = vpack.c.b16 %v3488, %v3487
    %v3574 = vpack.c.b16 %v3490, %v3489
    %v3575 = vpack.c.b16 %v3492, %v3491
    %v3576 = vpack.c.b16 %v3494, %v3493
    %v3577 = vpack.c.b16 %v3496, %v3495
    %v3578 = vpack.c.b16 %v3498, %v3497
    %v3579 = vpack.c.b16 %v3500, %v3499
    %v3580 = vpack.c.b16 %v3502, %v3501
    %v3581 = vpack.c.b16 %v3504, %v3503
    %v3582 = vpack.c.b16 %v3506, %v3505
    %v3583 = vpack.c.b16 %v3508, %v3507
    %v3584 = vpack.c.b16 %v3510, %v3509
    %v3585 = vpack.c.b16 %v3512, %v3511
    %v3586 = vpack.c.b16 %v3514, %v3513
    %3659 = vmatprep.subr.bf16.mxu0 0
    %3660 = vmatpush1.bf16.msra.mxu0 %v3522
    %3661 = vmatprep.subr.bf16.mxu0 0
    %3662 = vmatpush1.bf16.msra.mxu0 %v3521
    %3663 = vmatprep.subr.bf16.mxu0 0
    %3664 = vmatpush1.bf16.msra.mxu0 %v3520
    %3665 = vmatprep.subr.bf16.mxu0 0
    %3666 = vmatpush1.bf16.msra.mxu0 %v3519
    %3667 = vmatprep.subr.bf16.mxu0 0
    %3668 = vmatpush1.bf16.msra.mxu0 %v3518
    %3669 = vmatprep.subr.bf16.mxu0 0
    %3670 = vmatpush1.bf16.msra.mxu0 %v3517
    %3671 = vmatprep.subr.bf16.mxu0 0
    %3672 = vmatpush1.bf16.msra.mxu0 %v3516
    %3673 = vmatprep.subr.bf16.mxu0 0
    %3674 = vmatpush1.bf16.msra.mxu0 %v3515
    %3675 = vmatprep.subr.bf16.mxu0 0
    %3676 = vmatpush2.bf16.msra.mxu0 %v3530
    %3677 = vmatprep.subr.bf16.mxu0 0
    %3678 = vmatpush2.bf16.msra.mxu0 %v3529
    %3679 = vmatprep.subr.bf16.mxu0 0
    %3680 = vmatpush2.bf16.msra.mxu0 %v3528
    %3681 = vmatprep.subr.bf16.mxu0 0
    %3682 = vmatpush2.bf16.msra.mxu0 %v3527
    %3683 = vmatprep.subr.bf16.mxu0 0
    %3684 = vmatpush2.bf16.msra.mxu0 %v3526
    %3685 = vmatprep.subr.bf16.mxu0 0
    %3686 = vmatpush2.bf16.msra.mxu0 %v3525
    %3687 = vmatprep.subr.bf16.mxu0 0
    %3688 = vmatpush2.bf16.msra.mxu0 %v3524
    %3689 = vmatprep.subr.bf16.mxu0 0
    %3690 = vmatpush2.bf16.msra.mxu0 %v3523
    %3691 = vmatprep.mubr.bf16.mxu0 %v3084
    %3692 = vmatmul.mubr.bf16.gmra.mxu0 %v3083
    %v3693 = vpop.f32.mrf.mxu0
    %v3694 = vadd.f32 %v2857, %v3693
    %v3695 = vpop.f32.mrf.mxu0
    %v3696 = vpop.f32.mrf.mxu0
    %v3697 = vadd.f32 %v2857, %v3696
    %v3698 = vpop.f32.mrf.mxu0
    %3699 = vmatprep.mubr.bf16.mxu0 %v3093
    %3700 = vmatmul.mubr.bf16.gmra.mxu0 %v3092
    %v3701 = vpop.f32.mrf.mxu0
    %v3702 = vadd.f32 %v2857, %v3701
    %v3703 = vpop.f32.mrf.mxu0
    %v3704 = vpop.f32.mrf.mxu0
    %v3705 = vadd.f32 %v2857, %v3704
    %v3706 = vpop.f32.mrf.mxu0
    %3707 = vmatprep.mubr.bf16.mxu0 %v3102
    %3708 = vmatmul.mubr.bf16.gmra.mxu0 %v3101
    %v3709 = vpop.f32.mrf.mxu0
    %v3710 = vadd.f32 %v2857, %v3709
    %v3711 = vpop.f32.mrf.mxu0
    %v3712 = vpop.f32.mrf.mxu0
    %v3713 = vadd.f32 %v2857, %v3712
    %v3714 = vpop.f32.mrf.mxu0
    %3715 = vmatprep.mubr.bf16.mxu0 %v3111
    %3716 = vmatmul.mubr.bf16.gmra.mxu0 %v3110
    %v3717 = vpop.f32.mrf.mxu0
    %v3718 = vadd.f32 %v2857, %v3717
    %v3719 = vpop.f32.mrf.mxu0
    %v3720 = vpop.f32.mrf.mxu0
    %v3721 = vadd.f32 %v2857, %v3720
    %v3722 = vpop.f32.mrf.mxu0
    %3723 = vmatprep.mubr.bf16.mxu0 %v3120
    %3724 = vmatmul.mubr.bf16.gmra.mxu0 %v3119
    %v3725 = vpop.f32.mrf.mxu0
    %v3726 = vadd.f32 %v2857, %v3725
    %v3727 = vpop.f32.mrf.mxu0
    %v3728 = vpop.f32.mrf.mxu0
    %v3729 = vadd.f32 %v2857, %v3728
    %v3730 = vpop.f32.mrf.mxu0
    %3731 = vmatprep.mubr.bf16.mxu0 %v3129
    %3732 = vmatmul.mubr.bf16.gmra.mxu0 %v3128
    %v3733 = vpop.f32.mrf.mxu0
    %v3734 = vadd.f32 %v2857, %v3733
    %v3735 = vpop.f32.mrf.mxu0
    %v3736 = vpop.f32.mrf.mxu0
    %v3737 = vadd.f32 %v2857, %v3736
    %v3738 = vpop.f32.mrf.mxu0
    %3739 = vmatprep.mubr.bf16.mxu0 %v3138
    %3740 = vmatmul.mubr.bf16.gmra.mxu0 %v3137
    %v3741 = vpop.f32.mrf.mxu0
    %v3742 = vadd.f32 %v2857, %v3741
    %v3743 = vpop.f32.mrf.mxu0
    %v3744 = vpop.f32.mrf.mxu0
    %v3745 = vadd.f32 %v2857, %v3744
    %v3746 = vpop.f32.mrf.mxu0
    %3747 = vmatprep.mubr.bf16.mxu0 %v3147
    %3748 = vmatmul.mubr.bf16.gmra.mxu0 %v3146
    %v3749 = vpop.f32.mrf.mxu0
    %v3750 = vadd.f32 %v2857, %v3749
    %v3751 = vpop.f32.mrf.mxu0
    %v3752 = vpop.f32.mrf.mxu0
    %v3753 = vadd.f32 %v2857, %v3752
    %v3754 = vpop.f32.mrf.mxu0
    %3755 = vdwg.mxu0
    %3756 = vmatprep.subr.bf16.mxu0 0
    %3757 = vmatpush1.bf16.msra.mxu0 %v3538
    %3758 = vmatprep.subr.bf16.mxu0 0
    %3759 = vmatpush1.bf16.msra.mxu0 %v3537
    %3760 = vmatprep.subr.bf16.mxu0 0
    %3761 = vmatpush1.bf16.msra.mxu0 %v3536
    %3762 = vmatprep.subr.bf16.mxu0 0
    %3763 = vmatpush1.bf16.msra.mxu0 %v3535
    %3764 = vmatprep.subr.bf16.mxu0 0
    %3765 = vmatpush1.bf16.msra.mxu0 %v3534
    %3766 = vmatprep.subr.bf16.mxu0 0
    %3767 = vmatpush1.bf16.msra.mxu0 %v3533
    %3768 = vmatprep.subr.bf16.mxu0 0
    %3769 = vmatpush1.bf16.msra.mxu0 %v3532
    %3770 = vmatprep.subr.bf16.mxu0 0
    %3771 = vmatpush1.bf16.msra.mxu0 %v3531
    %3772 = vmatprep.subr.bf16.mxu0 0
    %3773 = vmatpush2.bf16.msra.mxu0 %v3546
    %3774 = vmatprep.subr.bf16.mxu0 0
    %3775 = vmatpush2.bf16.msra.mxu0 %v3545
    %3776 = vmatprep.subr.bf16.mxu0 0
    %3777 = vmatpush2.bf16.msra.mxu0 %v3544
    %3778 = vmatprep.subr.bf16.mxu0 0
    %3779 = vmatpush2.bf16.msra.mxu0 %v3543
    %3780 = vmatprep.subr.bf16.mxu0 0
    %3781 = vmatpush2.bf16.msra.mxu0 %v3542
    %3782 = vmatprep.subr.bf16.mxu0 0
    %3783 = vmatpush2.bf16.msra.mxu0 %v3541
    %3784 = vmatprep.subr.bf16.mxu0 0
    %3785 = vmatpush2.bf16.msra.mxu0 %v3540
    %3786 = vmatprep.subr.bf16.mxu0 0
    %3787 = vmatpush2.bf16.msra.mxu0 %v3539
    %3788 = vmatprep.mubr.bf16.mxu0 %v3086
    %3789 = vmatmul.mubr.bf16.gmra.mxu0 %v3085
    %v3790 = vpop.f32.mrf.mxu0
    %v3791 = vadd.f32 %v3694, %v3790
    %v3792 = vpop.f32.mrf.mxu0
    %v3793 = vpop.f32.mrf.mxu0
    %v3794 = vadd.f32 %v3697, %v3793
    %v3795 = vpop.f32.mrf.mxu0
    %3796 = vmatprep.mubr.bf16.mxu0 %v3095
    %3797 = vmatmul.mubr.bf16.gmra.mxu0 %v3094
    %v3798 = vpop.f32.mrf.mxu0
    %v3799 = vadd.f32 %v3702, %v3798
    %v3800 = vpop.f32.mrf.mxu0
    %v3801 = vpop.f32.mrf.mxu0
    %v3802 = vadd.f32 %v3705, %v3801
    %v3803 = vpop.f32.mrf.mxu0
    %3804 = vmatprep.mubr.bf16.mxu0 %v3104
    %3805 = vmatmul.mubr.bf16.gmra.mxu0 %v3103
    %v3806 = vpop.f32.mrf.mxu0
    %v3807 = vadd.f32 %v3710, %v3806
    %v3808 = vpop.f32.mrf.mxu0
    %v3809 = vpop.f32.mrf.mxu0
    %v3810 = vadd.f32 %v3713, %v3809
    %v3811 = vpop.f32.mrf.mxu0
    %3812 = vmatprep.mubr.bf16.mxu0 %v3113
    %3813 = vmatmul.mubr.bf16.gmra.mxu0 %v3112
    %v3814 = vpop.f32.mrf.mxu0
    %v3815 = vadd.f32 %v3718, %v3814
    %v3816 = vpop.f32.mrf.mxu0
    %v3817 = vpop.f32.mrf.mxu0
    %v3818 = vadd.f32 %v3721, %v3817
    %v3819 = vpop.f32.mrf.mxu0
    %3820 = vmatprep.mubr.bf16.mxu0 %v3122
    %3821 = vmatmul.mubr.bf16.gmra.mxu0 %v3121
    %v3822 = vpop.f32.mrf.mxu0
    %v3823 = vadd.f32 %v3726, %v3822
    %v3824 = vpop.f32.mrf.mxu0
    %v3825 = vpop.f32.mrf.mxu0
    %v3826 = vadd.f32 %v3729, %v3825
    %v3827 = vpop.f32.mrf.mxu0
    %3828 = vmatprep.mubr.bf16.mxu0 %v3131
    %3829 = vmatmul.mubr.bf16.gmra.mxu0 %v3130
    %v3830 = vpop.f32.mrf.mxu0
    %v3831 = vadd.f32 %v3734, %v3830
    %v3832 = vpop.f32.mrf.mxu0
    %v3833 = vpop.f32.mrf.mxu0
    %v3834 = vadd.f32 %v3737, %v3833
    %v3835 = vpop.f32.mrf.mxu0
    %3836 = vmatprep.mubr.bf16.mxu0 %v3140
    %3837 = vmatmul.mubr.bf16.gmra.mxu0 %v3139
    %v3838 = vpop.f32.mrf.mxu0
    %v3839 = vadd.f32 %v3742, %v3838
    %v3840 = vpop.f32.mrf.mxu0
    %v3841 = vpop.f32.mrf.mxu0
    %v3842 = vadd.f32 %v3745, %v3841
    %v3843 = vpop.f32.mrf.mxu0
    %3844 = vmatprep.mubr.bf16.mxu0 %v3149
    %3845 = vmatmul.mubr.bf16.gmra.mxu0 %v3148
    %v3846 = vpop.f32.mrf.mxu0
    %v3847 = vadd.f32 %v3750, %v3846
    %v3848 = vpop.f32.mrf.mxu0
    %v3849 = vpop.f32.mrf.mxu0
    %v3850 = vadd.f32 %v3753, %v3849
    %v3851 = vpop.f32.mrf.mxu0
    %3852 = vdwg.mxu0
    %3853 = vmatprep.subr.bf16.mxu0 0
    %3854 = vmatpush1.bf16.msra.mxu0 %v3554
    %3855 = vmatprep.subr.bf16.mxu0 0
    %3856 = vmatpush1.bf16.msra.mxu0 %v3553
    %3857 = vmatprep.subr.bf16.mxu0 0
    %3858 = vmatpush1.bf16.msra.mxu0 %v3552
    %3859 = vmatprep.subr.bf16.mxu0 0
    %3860 = vmatpush1.bf16.msra.mxu0 %v3551
    %3861 = vmatprep.subr.bf16.mxu0 0
    %3862 = vmatpush1.bf16.msra.mxu0 %v3550
    %3863 = vmatprep.subr.bf16.mxu0 0
    %3864 = vmatpush1.bf16.msra.mxu0 %v3549
    %3865 = vmatprep.subr.bf16.mxu0 0
    %3866 = vmatpush1.bf16.msra.mxu0 %v3548
    %3867 = vmatprep.subr.bf16.mxu0 0
    %3868 = vmatpush1.bf16.msra.mxu0 %v3547
    %3869 = vmatprep.subr.bf16.mxu0 0
    %3870 = vmatpush2.bf16.msra.mxu0 %v3562
    %3871 = vmatprep.subr.bf16.mxu0 0
    %3872 = vmatpush2.bf16.msra.mxu0 %v3561
    %3873 = vmatprep.subr.bf16.mxu0 0
    %3874 = vmatpush2.bf16.msra.mxu0 %v3560
    %3875 = vmatprep.subr.bf16.mxu0 0
    %3876 = vmatpush2.bf16.msra.mxu0 %v3559
    %3877 = vmatprep.subr.bf16.mxu0 0
    %3878 = vmatpush2.bf16.msra.mxu0 %v3558
    %3879 = vmatprep.subr.bf16.mxu0 0
    %3880 = vmatpush2.bf16.msra.mxu0 %v3557
    %3881 = vmatprep.subr.bf16.mxu0 0
    %3882 = vmatpush2.bf16.msra.mxu0 %v3556
    %3883 = vmatprep.subr.bf16.mxu0 0
    %3884 = vmatpush2.bf16.msra.mxu0 %v3555
    %3885 = vmatprep.mubr.bf16.mxu0 %v3088
    %3886 = vmatmul.mubr.bf16.gmra.mxu0 %v3087
    %v3887 = vpop.f32.mrf.mxu0
    %v3888 = vadd.f32 %v3791, %v3887
    %v3889 = vpop.f32.mrf.mxu0
    %v3890 = vpop.f32.mrf.mxu0
    %v3891 = vadd.f32 %v3794, %v3890
    %v3892 = vpop.f32.mrf.mxu0
    %3893 = vmatprep.mubr.bf16.mxu0 %v3097
    %3894 = vmatmul.mubr.bf16.gmra.mxu0 %v3096
    %v3895 = vpop.f32.mrf.mxu0
    %v3896 = vadd.f32 %v3799, %v3895
    %v3897 = vpop.f32.mrf.mxu0
    %v3898 = vpop.f32.mrf.mxu0
    %v3899 = vadd.f32 %v3802, %v3898
    %v3900 = vpop.f32.mrf.mxu0
    %3901 = vmatprep.mubr.bf16.mxu0 %v3106
    %3902 = vmatmul.mubr.bf16.gmra.mxu0 %v3105
    %v3903 = vpop.f32.mrf.mxu0
    %v3904 = vadd.f32 %v3807, %v3903
    %v3905 = vpop.f32.mrf.mxu0
    %v3906 = vpop.f32.mrf.mxu0
    %v3907 = vadd.f32 %v3810, %v3906
    %v3908 = vpop.f32.mrf.mxu0
    %3909 = vmatprep.mubr.bf16.mxu0 %v3115
    %3910 = vmatmul.mubr.bf16.gmra.mxu0 %v3114
    %v3911 = vpop.f32.mrf.mxu0
    %v3912 = vadd.f32 %v3815, %v3911
    %v3913 = vpop.f32.mrf.mxu0
    %v3914 = vpop.f32.mrf.mxu0
    %v3915 = vadd.f32 %v3818, %v3914
    %v3916 = vpop.f32.mrf.mxu0
    %3917 = vmatprep.mubr.bf16.mxu0 %v3124
    %3918 = vmatmul.mubr.bf16.gmra.mxu0 %v3123
    %v3919 = vpop.f32.mrf.mxu0
    %v3920 = vadd.f32 %v3823, %v3919
    %v3921 = vpop.f32.mrf.mxu0
    %v3922 = vpop.f32.mrf.mxu0
    %v3923 = vadd.f32 %v3826, %v3922
    %v3924 = vpop.f32.mrf.mxu0
    %3925 = vmatprep.mubr.bf16.mxu0 %v3133
    %3926 = vmatmul.mubr.bf16.gmra.mxu0 %v3132
    %v3927 = vpop.f32.mrf.mxu0
    %v3928 = vadd.f32 %v3831, %v3927
    %v3929 = vpop.f32.mrf.mxu0
    %v3930 = vpop.f32.mrf.mxu0
    %v3931 = vadd.f32 %v3834, %v3930
    %v3932 = vpop.f32.mrf.mxu0
    %3933 = vmatprep.mubr.bf16.mxu0 %v3142
    %3934 = vmatmul.mubr.bf16.gmra.mxu0 %v3141
    %v3935 = vpop.f32.mrf.mxu0
    %v3936 = vadd.f32 %v3839, %v3935
    %v3937 = vpop.f32.mrf.mxu0
    %v3938 = vpop.f32.mrf.mxu0
    %v3939 = vadd.f32 %v3842, %v3938
    %v3940 = vpop.f32.mrf.mxu0
    %3941 = vmatprep.mubr.bf16.mxu0 %v3151
    %3942 = vmatmul.mubr.bf16.gmra.mxu0 %v3150
    %v3943 = vpop.f32.mrf.mxu0
    %v3944 = vadd.f32 %v3847, %v3943
    %v3945 = vpop.f32.mrf.mxu0
    %v3946 = vpop.f32.mrf.mxu0
    %v3947 = vadd.f32 %v3850, %v3946
    %v3948 = vpop.f32.mrf.mxu0
    %3949 = vdwg.mxu0
    %3950 = vmatprep.subr.bf16.mxu0 0
    %3951 = vmatpush1.bf16.msra.mxu0 %v3570
    %3952 = vmatprep.subr.bf16.mxu0 0
    %3953 = vmatpush1.bf16.msra.mxu0 %v3569
    %3954 = vmatprep.subr.bf16.mxu0 0
    %3955 = vmatpush1.bf16.msra.mxu0 %v3568
    %3956 = vmatprep.subr.bf16.mxu0 0
    %3957 = vmatpush1.bf16.msra.mxu0 %v3567
    %3958 = vmatprep.subr.bf16.mxu0 0
    %3959 = vmatpush1.bf16.msra.mxu0 %v3566
    %3960 = vmatprep.subr.bf16.mxu0 0
    %3961 = vmatpush1.bf16.msra.mxu0 %v3565
    %3962 = vmatprep.subr.bf16.mxu0 0
    %3963 = vmatpush1.bf16.msra.mxu0 %v3564
    %3964 = vmatprep.subr.bf16.mxu0 0
    %3965 = vmatpush1.bf16.msra.mxu0 %v3563
    %3966 = vmatprep.subr.bf16.mxu0 0
    %3967 = vmatpush2.bf16.msra.mxu0 %v3578
    %3968 = vmatprep.subr.bf16.mxu0 0
    %3969 = vmatpush2.bf16.msra.mxu0 %v3577
    %3970 = vmatprep.subr.bf16.mxu0 0
    %3971 = vmatpush2.bf16.msra.mxu0 %v3576
    %3972 = vmatprep.subr.bf16.mxu0 0
    %3973 = vmatpush2.bf16.msra.mxu0 %v3575
    %3974 = vmatprep.subr.bf16.mxu0 0
    %3975 = vmatpush2.bf16.msra.mxu0 %v3574
    %3976 = vmatprep.subr.bf16.mxu0 0
    %3977 = vmatpush2.bf16.msra.mxu0 %v3573
    %3978 = vmatprep.subr.bf16.mxu0 0
    %3979 = vmatpush2.bf16.msra.mxu0 %v3572
    %3980 = vmatprep.subr.bf16.mxu0 0
    %3981 = vmatpush2.bf16.msra.mxu0 %v3571
    %3982 = vmatprep.mubr.bf16.mxu0 %v3090
    %3983 = vmatmul.mubr.bf16.gmra.mxu0 %v3089
    %v3984 = vpop.f32.mrf.mxu0
    %v3985 = vadd.f32 %v3888, %v3984
    %v3986 = vpop.f32.mrf.mxu0
    %v3987 = vpop.f32.mrf.mxu0
    %v3988 = vadd.f32 %v3891, %v3987
    %v3989 = vpop.f32.mrf.mxu0
    %3990 = vmatprep.mubr.bf16.mxu0 %v3099
    %3991 = vmatmul.mubr.bf16.gmra.mxu0 %v3098
    %v3992 = vpop.f32.mrf.mxu0
    %v3993 = vadd.f32 %v3896, %v3992
    %v3994 = vpop.f32.mrf.mxu0
    %v3995 = vpop.f32.mrf.mxu0
    %v3996 = vadd.f32 %v3899, %v3995
    %v3997 = vpop.f32.mrf.mxu0
    %3998 = vmatprep.mubr.bf16.mxu0 %v3108
    %3999 = vmatmul.mubr.bf16.gmra.mxu0 %v3107
    %v4000 = vpop.f32.mrf.mxu0
    %v4001 = vadd.f32 %v3904, %v4000
    %v4002 = vpop.f32.mrf.mxu0
    %v4003 = vpop.f32.mrf.mxu0
    %v4004 = vadd.f32 %v3907, %v4003
    %v4005 = vpop.f32.mrf.mxu0
    %4006 = vmatprep.mubr.bf16.mxu0 %v3117
    %4007 = vmatmul.mubr.bf16.gmra.mxu0 %v3116
    %v4008 = vpop.f32.mrf.mxu0
    %v4009 = vadd.f32 %v3912, %v4008
    %v4010 = vpop.f32.mrf.mxu0
    %v4011 = vpop.f32.mrf.mxu0
    %v4012 = vadd.f32 %v3915, %v4011
    %v4013 = vpop.f32.mrf.mxu0
    %4014 = vmatprep.mubr.bf16.mxu0 %v3126
    %4015 = vmatmul.mubr.bf16.gmra.mxu0 %v3125
    %v4016 = vpop.f32.mrf.mxu0
    %v4017 = vadd.f32 %v3920, %v4016
    %v4018 = vpop.f32.mrf.mxu0
    %v4019 = vpop.f32.mrf.mxu0
    %v4020 = vadd.f32 %v3923, %v4019
    %v4021 = vpop.f32.mrf.mxu0
    %4022 = vmatprep.mubr.bf16.mxu0 %v3135
    %4023 = vmatmul.mubr.bf16.gmra.mxu0 %v3134
    %v4024 = vpop.f32.mrf.mxu0
    %v4025 = vadd.f32 %v3928, %v4024
    %v4026 = vpop.f32.mrf.mxu0
    %v4027 = vpop.f32.mrf.mxu0
    %v4028 = vadd.f32 %v3931, %v4027
    %v4029 = vpop.f32.mrf.mxu0
    %4030 = vmatprep.mubr.bf16.mxu0 %v3144
    %4031 = vmatmul.mubr.bf16.gmra.mxu0 %v3143
    %v4032 = vpop.f32.mrf.mxu0
    %v4033 = vadd.f32 %v3936, %v4032
    %v4034 = vpop.f32.mrf.mxu0
    %v4035 = vpop.f32.mrf.mxu0
    %v4036 = vadd.f32 %v3939, %v4035
    %v4037 = vpop.f32.mrf.mxu0
    %4038 = vmatprep.mubr.bf16.mxu0 %v3153
    %4039 = vmatmul.mubr.bf16.gmra.mxu0 %v3152
    %v4040 = vpop.f32.mrf.mxu0
    %v4041 = vadd.f32 %v3944, %v4040
    %v4042 = vpop.f32.mrf.mxu0
    %v4043 = vpop.f32.mrf.mxu0
    %v4044 = vadd.f32 %v3947, %v4043
    %v4045 = vpop.f32.mrf.mxu0
    %4046 = vdwg.mxu0
    %4047 = vmatprep.subr.bf16.mxu0 0
    %4048 = vmatpush1.bf16.msra.mxu0 %v3586
    %4049 = vmatprep.subr.bf16.mxu0 0
    %4050 = vmatpush1.bf16.msra.mxu0 %v3585
    %4051 = vmatprep.subr.bf16.mxu0 0
    %4052 = vmatpush1.bf16.msra.mxu0 %v3584
    %4053 = vmatprep.subr.bf16.mxu0 0
    %4054 = vmatpush1.bf16.msra.mxu0 %v3583
    %4055 = vmatprep.subr.bf16.mxu0 0
    %4056 = vmatpush1.bf16.msra.mxu0 %v3582
    %4057 = vmatprep.subr.bf16.mxu0 0
    %4058 = vmatpush1.bf16.msra.mxu0 %v3581
    %4059 = vmatprep.subr.bf16.mxu0 0
    %4060 = vmatpush1.bf16.msra.mxu0 %v3580
    %4061 = vmatprep.subr.bf16.mxu0 0
    %4062 = vmatpush1.bf16.msra.mxu0 %v3579
    %4063 = vmatprep.subr.bf16.mxu0 0
    %4064 = vmatpush2.bf16.msra.mxu0 0
    %4065 = vmatprep.subr.bf16.mxu0 0
    %4066 = vmatpush2.bf16.msra.mxu0 0
    %4067 = vmatprep.subr.bf16.mxu0 0
    %4068 = vmatpush2.bf16.msra.mxu0 0
    %4069 = vmatprep.subr.bf16.mxu0 0
    %4070 = vmatpush2.bf16.msra.mxu0 0
    %4071 = vmatprep.subr.bf16.mxu0 0
    %4072 = vmatpush2.bf16.msra.mxu0 0
    %4073 = vmatprep.subr.bf16.mxu0 0
    %4074 = vmatpush2.bf16.msra.mxu0 0
    %4075 = vmatprep.subr.bf16.mxu0 0
    %4076 = vmatpush2.bf16.msra.mxu0 0
    %4077 = vmatprep.subr.bf16.mxu0 0
    %4078 = vmatpush2.bf16.msra.mxu0 0
    %4079 = vmatprep.mubr.bf16.mxu0 0
    %4080 = vmatmul.mubr.bf16.gmra.mxu0 %v3091
    %v4081 = vpop.f32.mrf.mxu0
    %v4082 = vadd.f32 %v3985, %v4081
    %v4083 = vpop.f32.mrf.mxu0
    %v4084 = vpop.f32.mrf.mxu0
    %v4085 = vadd.f32 %v3988, %v4084
    %v4086 = vpop.f32.mrf.mxu0
    %4087 = vmatprep.mubr.bf16.mxu0 0
    %4088 = vmatmul.mubr.bf16.gmra.mxu0 %v3100
    %v4089 = vpop.f32.mrf.mxu0
    %v4090 = vadd.f32 %v3993, %v4089
    %v4091 = vpop.f32.mrf.mxu0
    %v4092 = vpop.f32.mrf.mxu0
    %v4093 = vadd.f32 %v3996, %v4092
    %v4094 = vpop.f32.mrf.mxu0
    %4095 = vmatprep.mubr.bf16.mxu0 0
    %4096 = vmatmul.mubr.bf16.gmra.mxu0 %v3109
    %v4097 = vpop.f32.mrf.mxu0
    %v4098 = vadd.f32 %v4001, %v4097
    %v4099 = vpop.f32.mrf.mxu0
    %v4100 = vpop.f32.mrf.mxu0
    %v4101 = vadd.f32 %v4004, %v4100
    %v4102 = vpop.f32.mrf.mxu0
    %4103 = vmatprep.mubr.bf16.mxu0 0
    %4104 = vmatmul.mubr.bf16.gmra.mxu0 %v3118
    %v4105 = vpop.f32.mrf.mxu0
    %v4106 = vadd.f32 %v4009, %v4105
    %v4107 = vpop.f32.mrf.mxu0
    %v4108 = vpop.f32.mrf.mxu0
    %v4109 = vadd.f32 %v4012, %v4108
    %v4110 = vpop.f32.mrf.mxu0
    %4111 = vmatprep.mubr.bf16.mxu0 0
    %4112 = vmatmul.mubr.bf16.gmra.mxu0 %v3127
    %v4113 = vpop.f32.mrf.mxu0
    %v4114 = vadd.f32 %v4017, %v4113
    %v4115 = vpop.f32.mrf.mxu0
    %v4116 = vpop.f32.mrf.mxu0
    %v4117 = vadd.f32 %v4020, %v4116
    %v4118 = vpop.f32.mrf.mxu0
    %4119 = vmatprep.mubr.bf16.mxu0 0
    %4120 = vmatmul.mubr.bf16.gmra.mxu0 %v3136
    %v4121 = vpop.f32.mrf.mxu0
    %v4122 = vadd.f32 %v4025, %v4121
    %v4123 = vpop.f32.mrf.mxu0
    %v4124 = vpop.f32.mrf.mxu0
    %v4125 = vadd.f32 %v4028, %v4124
    %v4126 = vpop.f32.mrf.mxu0
    %4127 = vmatprep.mubr.bf16.mxu0 0
    %4128 = vmatmul.mubr.bf16.gmra.mxu0 %v3145
    %v4129 = vpop.f32.mrf.mxu0
    %v4130 = vadd.f32 %v4033, %v4129
    %v4131 = vpop.f32.mrf.mxu0
    %v4132 = vpop.f32.mrf.mxu0
    %v4133 = vadd.f32 %v4036, %v4132
    %v4134 = vpop.f32.mrf.mxu0
    %4135 = vmatprep.mubr.bf16.mxu0 0
    %4136 = vmatmul.mubr.bf16.gmra.mxu0 %v3154
    %v4137 = vpop.f32.mrf.mxu0
    %v4138 = vadd.f32 %v4041, %v4137
    %v4139 = vpop.f32.mrf.mxu0
    %v4140 = vpop.f32.mrf.mxu0
    %v4141 = vadd.f32 %v4044, %v4140
    %v4142 = vpop.f32.mrf.mxu0
    %4143 = vdwg.mxu0
    %v4144 = vmax.f32 %v4082, 0.0
    %v4145 = vmax.f32 %v4085, 0.0
    %v4146 = vmax.f32 %v4090, 0.0
    %v4147 = vmax.f32 %v4093, 0.0
    %v4148 = vmax.f32 %v4098, 0.0
    %v4149 = vmax.f32 %v4101, 0.0
    %v4150 = vmax.f32 %v4106, 0.0
    %v4151 = vmax.f32 %v4109, 0.0
    %v4152 = vmax.f32 %v4114, 0.0
    %v4153 = vmax.f32 %v4117, 0.0
    %v4154 = vmax.f32 %v4122, 0.0
    %v4155 = vmax.f32 %v4125, 0.0
    %v4156 = vmax.f32 %v4130, 0.0
    %v4157 = vmax.f32 %v4133, 0.0
    %v4158 = vmax.f32 %v4138, 0.0
    %v4159 = vmax.f32 %v4141, 0.0
    %v4160 = vpack.c.bf16 %v4145, %v4144
    %v4161 = vpack.c.bf16 %v4147, %v4146
    %v4162 = vpack.c.bf16 %v4149, %v4148
    %v4163 = vpack.c.bf16 %v4151, %v4150
    %v4164 = vpack.c.bf16 %v4153, %v4152
    %v4165 = vpack.c.bf16 %v4155, %v4154
    %v4166 = vpack.c.bf16 %v4157, %v4156
    %v4167 = vpack.c.bf16 %v4159, %v4158
    %v4168 = vld [vmem:[#allocation10] sm:$0xff]
    %v4169 = vld [vmem:[#allocation10 + $0x8] sm:$0xff]
    %v4170 = vld [vmem:[#allocation10 + $0x10] sm:$0xff]
    %v4171 = vld [vmem:[#allocation10 + $0x18] sm:$0xff]
    %v4172 = vld [vmem:[#allocation10 + $0x20] sm:$0xff]
    %v4173 = vld [vmem:[#allocation10 + $0x28] sm:$0xff]
    %v4174 = vld [vmem:[#allocation10 + $0x30] sm:$0xff]
    %v4175 = vld [vmem:[#allocation10 + $0x38] sm:$0xff]
    %v4176 = vld [vmem:[#allocation10 + $0x40] sm:$0xff]
    %v4177 = vld [vmem:[#allocation10 + $0x48] sm:$0xff]
    %v4178 = vld [vmem:[#allocation10 + $0x50] sm:$0xff]
    %v4179 = vld [vmem:[#allocation10 + $0x58] sm:$0xff]
    %v4180 = vld [vmem:[#allocation10 + $0x60] sm:$0xff]
    %v4181 = vld [vmem:[#allocation10 + $0x68] sm:$0xff]
    %v4182 = vld [vmem:[#allocation10 + $0x70] sm:$0xff]
    %v4183 = vld [vmem:[#allocation10 + $0x78] sm:$0xff]
    %v4184 = vld [vmem:[#allocation10 + $0x80] sm:$0xff]
    %v4185 = vld [vmem:[#allocation10 + $0x88] sm:$0xff]
    %v4186 = vld [vmem:[#allocation10 + $0x90] sm:$0xff]
    %v4187 = vld [vmem:[#allocation10 + $0x98] sm:$0xff]
    %v4188 = vld [vmem:[#allocation10 + $0xa0] sm:$0xff]
    %v4189 = vld [vmem:[#allocation10 + $0xa8] sm:$0xff]
    %v4190 = vld [vmem:[#allocation10 + $0xb0] sm:$0xff]
    %v4191 = vld [vmem:[#allocation10 + $0xb8] sm:$0xff]
    %v4192 = vld [vmem:[#allocation10 + $0xc0] sm:$0xff]
    %v4193 = vld [vmem:[#allocation10 + $0xc8] sm:$0xff]
    %v4194 = vld [vmem:[#allocation10 + $0xd0] sm:$0xff]
    %v4195 = vld [vmem:[#allocation10 + $0xd8] sm:$0xff]
    %v4196 = vld [vmem:[#allocation10 + $0xe0] sm:$0xff]
    %v4197 = vld [vmem:[#allocation10 + $0xe8] sm:$0xff]
    %v4198 = vld [vmem:[#allocation10 + $0xf0] sm:$0xff]
    %v4199 = vld [vmem:[#allocation10 + $0xf8] sm:$0xff]
    %v4200 = vld [vmem:[%s6] sm:$0xf]
    %v4202 = vlaneseq
    %v4203 = vshrl.u32 %v4202, 7
    %v4204 = vsub.s32 0, %v4203
    %v4205 = vrot.slane %v4200, %v4204
    %v4206 = vlaneseq
    %v4207 = vshrl.u32 %v4206, 7
    %v4208 = vsub.s32 1, %v4207
    %v4209 = vrot.slane %v4200, %v4208
    %v4210 = vlaneseq
    %v4211 = vshrl.u32 %v4210, 7
    %v4212 = vsub.s32 2, %v4211
    %v4213 = vrot.slane %v4200, %v4212
    %v4214 = vlaneseq
    %v4215 = vshrl.u32 %v4214, 7
    %v4216 = vsub.s32 3, %v4215
    %v4217 = vrot.slane %v4200, %v4216
    %v4254 = vunpack.c.l.b16 %v4168
    %v4255 = vunpack.c.h.b16 %v4168
    %v4256 = vunpack.c.l.b16 %v4169
    %v4257 = vunpack.c.h.b16 %v4169
    %v4258 = vunpack.c.l.b16 %v4170
    %v4259 = vunpack.c.h.b16 %v4170
    %v4260 = vunpack.c.l.b16 %v4171
    %v4261 = vunpack.c.h.b16 %v4171
    %v4262 = vunpack.c.l.b16 %v4172
    %v4263 = vunpack.c.h.b16 %v4172
    %v4264 = vunpack.c.l.b16 %v4173
    %v4265 = vunpack.c.h.b16 %v4173
    %v4266 = vunpack.c.l.b16 %v4174
    %v4267 = vunpack.c.h.b16 %v4174
    %v4268 = vunpack.c.l.b16 %v4175
    %v4269 = vunpack.c.h.b16 %v4175
    %v4270 = vunpack.c.l.b16 %v4176
    %v4271 = vunpack.c.h.b16 %v4176
    %v4272 = vunpack.c.l.b16 %v4177
    %v4273 = vunpack.c.h.b16 %v4177
    %v4274 = vunpack.c.l.b16 %v4178
    %v4275 = vunpack.c.h.b16 %v4178
    %v4276 = vunpack.c.l.b16 %v4179
    %v4277 = vunpack.c.h.b16 %v4179
    %v4278 = vunpack.c.l.b16 %v4180
    %v4279 = vunpack.c.h.b16 %v4180
    %v4280 = vunpack.c.l.b16 %v4181
    %v4281 = vunpack.c.h.b16 %v4181
    %v4282 = vunpack.c.l.b16 %v4182
    %v4283 = vunpack.c.h.b16 %v4182
    %v4284 = vunpack.c.l.b16 %v4183
    %v4285 = vunpack.c.h.b16 %v4183
    %v4286 = vunpack.c.l.b16 %v4184
    %v4287 = vunpack.c.h.b16 %v4184
    %v4288 = vunpack.c.l.b16 %v4185
    %v4289 = vunpack.c.h.b16 %v4185
    %v4290 = vunpack.c.l.b16 %v4186
    %v4291 = vunpack.c.h.b16 %v4186
    %v4292 = vunpack.c.l.b16 %v4187
    %v4293 = vunpack.c.h.b16 %v4187
    %v4294 = vunpack.c.l.b16 %v4188
    %v4295 = vunpack.c.h.b16 %v4188
    %v4296 = vunpack.c.l.b16 %v4189
    %v4297 = vunpack.c.h.b16 %v4189
    %v4298 = vunpack.c.l.b16 %v4190
    %v4299 = vunpack.c.h.b16 %v4190
    %v4300 = vunpack.c.l.b16 %v4191
    %v4301 = vunpack.c.h.b16 %v4191
    %v4302 = vunpack.c.l.b16 %v4192
    %v4303 = vunpack.c.h.b16 %v4192
    %v4304 = vunpack.c.l.b16 %v4193
    %v4305 = vunpack.c.h.b16 %v4193
    %v4306 = vunpack.c.l.b16 %v4194
    %v4307 = vunpack.c.h.b16 %v4194
    %v4308 = vunpack.c.l.b16 %v4195
    %v4309 = vunpack.c.h.b16 %v4195
    %v4310 = vunpack.c.l.b16 %v4196
    %v4311 = vunpack.c.h.b16 %v4196
    %v4312 = vunpack.c.l.b16 %v4197
    %v4313 = vunpack.c.h.b16 %v4197
    %v4314 = vunpack.c.l.b16 %v4198
    %v4315 = vunpack.c.h.b16 %v4198
    %v4316 = vunpack.c.l.b16 %v4199
    %v4317 = vunpack.c.h.b16 %v4199
    %v4318 = vpack.c.b16 %v4258, %v4254
    %v4319 = vpack.c.b16 %v4259, %v4255
    %v4320 = vpack.c.b16 %v4260, %v4256
    %v4321 = vpack.c.b16 %v4261, %v4257
    %v4322 = vpack.c.b16 %v4266, %v4262
    %v4323 = vpack.c.b16 %v4267, %v4263
    %v4324 = vpack.c.b16 %v4268, %v4264
    %v4325 = vpack.c.b16 %v4269, %v4265
    %v4326 = vpack.c.b16 %v4274, %v4270
    %v4327 = vpack.c.b16 %v4275, %v4271
    %v4328 = vpack.c.b16 %v4276, %v4272
    %v4329 = vpack.c.b16 %v4277, %v4273
    %v4330 = vpack.c.b16 %v4282, %v4278
    %v4331 = vpack.c.b16 %v4283, %v4279
    %v4332 = vpack.c.b16 %v4284, %v4280
    %v4333 = vpack.c.b16 %v4285, %v4281
    %v4334 = vpack.c.b16 %v4290, %v4286
    %v4335 = vpack.c.b16 %v4291, %v4287
    %v4336 = vpack.c.b16 %v4292, %v4288
    %v4337 = vpack.c.b16 %v4293, %v4289
    %v4338 = vpack.c.b16 %v4298, %v4294
    %v4339 = vpack.c.b16 %v4299, %v4295
    %v4340 = vpack.c.b16 %v4300, %v4296
    %v4341 = vpack.c.b16 %v4301, %v4297
    %v4342 = vpack.c.b16 %v4306, %v4302
    %v4343 = vpack.c.b16 %v4307, %v4303
    %v4344 = vpack.c.b16 %v4308, %v4304
    %v4345 = vpack.c.b16 %v4309, %v4305
    %v4346 = vpack.c.b16 %v4314, %v4310
    %v4347 = vpack.c.b16 %v4315, %v4311
    %v4348 = vpack.c.b16 %v4316, %v4312
    %v4349 = vpack.c.b16 %v4317, %v4313
    %4382 = vmatprep.subr.bf16.mxu0 %v4347
    %4383 = vmatpush1.bf16.msra.mxu0 %v4346
    %4384 = vmatprep.subr.bf16.mxu0 %v4343
    %4385 = vmatpush1.bf16.msra.mxu0 %v4342
    %4386 = vmatprep.subr.bf16.mxu0 %v4339
    %4387 = vmatpush1.bf16.msra.mxu0 %v4338
    %4388 = vmatprep.subr.bf16.mxu0 %v4335
    %4389 = vmatpush1.bf16.msra.mxu0 %v4334
    %4390 = vmatprep.subr.bf16.mxu0 %v4331
    %4391 = vmatpush1.bf16.msra.mxu0 %v4330
    %4392 = vmatprep.subr.bf16.mxu0 %v4327
    %4393 = vmatpush1.bf16.msra.mxu0 %v4326
    %4394 = vmatprep.subr.bf16.mxu0 %v4323
    %4395 = vmatpush1.bf16.msra.mxu0 %v4322
    %4396 = vmatprep.subr.bf16.mxu0 %v4319
    %4397 = vmatpush1.bf16.msra.mxu0 %v4318
    %4398 = vmatprep.subr.bf16.mxu0 0
    %4399 = vmatpush2.bf16.msra.mxu0 0
    %4400 = vmatprep.subr.bf16.mxu0 0
    %4401 = vmatpush2.bf16.msra.mxu0 0
    %4402 = vmatprep.subr.bf16.mxu0 0
    %4403 = vmatpush2.bf16.msra.mxu0 0
    %4404 = vmatprep.subr.bf16.mxu0 0
    %4405 = vmatpush2.bf16.msra.mxu0 0
    %4406 = vmatprep.subr.bf16.mxu0 0
    %4407 = vmatpush2.bf16.msra.mxu0 0
    %4408 = vmatprep.subr.bf16.mxu0 0
    %4409 = vmatpush2.bf16.msra.mxu0 0
    %4410 = vmatprep.subr.bf16.mxu0 0
    %4411 = vmatpush2.bf16.msra.mxu0 0
    %4412 = vmatprep.subr.bf16.mxu0 0
    %4413 = vmatpush2.bf16.msra.mxu0 0
    %4414 = vmatprep.mubr.bf16.mxu0 0
    %4415 = vmatmul.mubr.bf16.gmra.mxu0 %v4160
    %v4416 = vpop.f32.mrf.mxu0
    %v4417 = vadd.f32 %v4205, %v4416
    %v4418 = vpop.f32.mrf.mxu0
    %v4419 = vadd.f32 %v4209, %v4418
    %v4420 = vpop.f32.mrf.mxu0
    %v4421 = vadd.f32 %v4205, %v4420
    %v4422 = vpop.f32.mrf.mxu0
    %v4423 = vadd.f32 %v4209, %v4422
    %4424 = vmatprep.mubr.bf16.mxu0 0
    %4425 = vmatmul.mubr.bf16.gmra.mxu0 %v4161
    %v4426 = vpop.f32.mrf.mxu0
    %v4427 = vadd.f32 %v4205, %v4426
    %v4428 = vpop.f32.mrf.mxu0
    %v4429 = vadd.f32 %v4209, %v4428
    %v4430 = vpop.f32.mrf.mxu0
    %v4431 = vadd.f32 %v4205, %v4430
    %v4432 = vpop.f32.mrf.mxu0
    %v4433 = vadd.f32 %v4209, %v4432
    %4434 = vmatprep.mubr.bf16.mxu0 0
    %4435 = vmatmul.mubr.bf16.gmra.mxu0 %v4162
    %v4436 = vpop.f32.mrf.mxu0
    %v4437 = vadd.f32 %v4205, %v4436
    %v4438 = vpop.f32.mrf.mxu0
    %v4439 = vadd.f32 %v4209, %v4438
    %v4440 = vpop.f32.mrf.mxu0
    %v4441 = vadd.f32 %v4205, %v4440
    %v4442 = vpop.f32.mrf.mxu0
    %v4443 = vadd.f32 %v4209, %v4442
    %4444 = vmatprep.mubr.bf16.mxu0 0
    %4445 = vmatmul.mubr.bf16.gmra.mxu0 %v4163
    %v4446 = vpop.f32.mrf.mxu0
    %v4447 = vadd.f32 %v4205, %v4446
    %v4448 = vpop.f32.mrf.mxu0
    %v4449 = vadd.f32 %v4209, %v4448
    %v4450 = vpop.f32.mrf.mxu0
    %v4451 = vadd.f32 %v4205, %v4450
    %v4452 = vpop.f32.mrf.mxu0
    %v4453 = vadd.f32 %v4209, %v4452
    %4454 = vmatprep.mubr.bf16.mxu0 0
    %4455 = vmatmul.mubr.bf16.gmra.mxu0 %v4164
    %v4456 = vpop.f32.mrf.mxu0
    %v4457 = vadd.f32 %v4205, %v4456
    %v4458 = vpop.f32.mrf.mxu0
    %v4459 = vadd.f32 %v4209, %v4458
    %v4460 = vpop.f32.mrf.mxu0
    %v4461 = vadd.f32 %v4205, %v4460
    %v4462 = vpop.f32.mrf.mxu0
    %v4463 = vadd.f32 %v4209, %v4462
    %4464 = vmatprep.mubr.bf16.mxu0 0
    %4465 = vmatmul.mubr.bf16.gmra.mxu0 %v4165
    %v4466 = vpop.f32.mrf.mxu0
    %v4467 = vadd.f32 %v4205, %v4466
    %v4468 = vpop.f32.mrf.mxu0
    %v4469 = vadd.f32 %v4209, %v4468
    %v4470 = vpop.f32.mrf.mxu0
    %v4471 = vadd.f32 %v4205, %v4470
    %v4472 = vpop.f32.mrf.mxu0
    %v4473 = vadd.f32 %v4209, %v4472
    %4474 = vmatprep.mubr.bf16.mxu0 0
    %4475 = vmatmul.mubr.bf16.gmra.mxu0 %v4166
    %v4476 = vpop.f32.mrf.mxu0
    %v4477 = vadd.f32 %v4205, %v4476
    %v4478 = vpop.f32.mrf.mxu0
    %v4479 = vadd.f32 %v4209, %v4478
    %v4480 = vpop.f32.mrf.mxu0
    %v4481 = vadd.f32 %v4205, %v4480
    %v4482 = vpop.f32.mrf.mxu0
    %v4483 = vadd.f32 %v4209, %v4482
    %4484 = vmatprep.mubr.bf16.mxu0 0
    %4485 = vmatmul.mubr.bf16.gmra.mxu0 %v4167
    %v4486 = vpop.f32.mrf.mxu0
    %v4487 = vadd.f32 %v4205, %v4486
    %v4488 = vpop.f32.mrf.mxu0
    %v4489 = vadd.f32 %v4209, %v4488
    %v4490 = vpop.f32.mrf.mxu0
    %v4491 = vadd.f32 %v4205, %v4490
    %v4492 = vpop.f32.mrf.mxu0
    %v4493 = vadd.f32 %v4209, %v4492
    %4494 = vdwg.mxu0
    %4495 = vmatprep.subr.bf16.mxu0 %v4349
    %4496 = vmatpush1.bf16.msra.mxu0 %v4348
    %4497 = vmatprep.subr.bf16.mxu0 %v4345
    %4498 = vmatpush1.bf16.msra.mxu0 %v4344
    %4499 = vmatprep.subr.bf16.mxu0 %v4341
    %4500 = vmatpush1.bf16.msra.mxu0 %v4340
    %4501 = vmatprep.subr.bf16.mxu0 %v4337
    %4502 = vmatpush1.bf16.msra.mxu0 %v4336
    %4503 = vmatprep.subr.bf16.mxu0 %v4333
    %4504 = vmatpush1.bf16.msra.mxu0 %v4332
    %4505 = vmatprep.subr.bf16.mxu0 %v4329
    %4506 = vmatpush1.bf16.msra.mxu0 %v4328
    %4507 = vmatprep.subr.bf16.mxu0 %v4325
    %4508 = vmatpush1.bf16.msra.mxu0 %v4324
    %4509 = vmatprep.subr.bf16.mxu0 %v4321
    %4510 = vmatpush1.bf16.msra.mxu0 %v4320
    %4511 = vmatprep.subr.bf16.mxu0 0
    %4512 = vmatpush2.bf16.msra.mxu0 0
    %4513 = vmatprep.subr.bf16.mxu0 0
    %4514 = vmatpush2.bf16.msra.mxu0 0
    %4515 = vmatprep.subr.bf16.mxu0 0
    %4516 = vmatpush2.bf16.msra.mxu0 0
    %4517 = vmatprep.subr.bf16.mxu0 0
    %4518 = vmatpush2.bf16.msra.mxu0 0
    %4519 = vmatprep.subr.bf16.mxu0 0
    %4520 = vmatpush2.bf16.msra.mxu0 0
    %4521 = vmatprep.subr.bf16.mxu0 0
    %4522 = vmatpush2.bf16.msra.mxu0 0
    %4523 = vmatprep.subr.bf16.mxu0 0
    %4524 = vmatpush2.bf16.msra.mxu0 0
    %4525 = vmatprep.subr.bf16.mxu0 0
    %4526 = vmatpush2.bf16.msra.mxu0 0
    %4527 = vmatprep.mubr.bf16.mxu0 0
    %4528 = vmatmul.mubr.bf16.gmra.mxu0 %v4160
    %v4529 = vpop.f32.mrf.mxu0
    %v4530 = vadd.f32 %v4213, %v4529
    %v4531 = vpop.f32.mrf.mxu0
    %v4532 = vadd.f32 %v4217, %v4531
    %v4533 = vpop.f32.mrf.mxu0
    %v4534 = vadd.f32 %v4213, %v4533
    %v4535 = vpop.f32.mrf.mxu0
    %v4536 = vadd.f32 %v4217, %v4535
    %4537 = vmatprep.mubr.bf16.mxu0 0
    %4538 = vmatmul.mubr.bf16.gmra.mxu0 %v4161
    %v4539 = vpop.f32.mrf.mxu0
    %v4540 = vadd.f32 %v4213, %v4539
    %v4541 = vpop.f32.mrf.mxu0
    %v4542 = vadd.f32 %v4217, %v4541
    %v4543 = vpop.f32.mrf.mxu0
    %v4544 = vadd.f32 %v4213, %v4543
    %v4545 = vpop.f32.mrf.mxu0
    %v4546 = vadd.f32 %v4217, %v4545
    %4547 = vmatprep.mubr.bf16.mxu0 0
    %4548 = vmatmul.mubr.bf16.gmra.mxu0 %v4162
    %v4549 = vpop.f32.mrf.mxu0
    %v4550 = vadd.f32 %v4213, %v4549
    %v4551 = vpop.f32.mrf.mxu0
    %v4552 = vadd.f32 %v4217, %v4551
    %v4553 = vpop.f32.mrf.mxu0
    %v4554 = vadd.f32 %v4213, %v4553
    %v4555 = vpop.f32.mrf.mxu0
    %v4556 = vadd.f32 %v4217, %v4555
    %4557 = vmatprep.mubr.bf16.mxu0 0
    %4558 = vmatmul.mubr.bf16.gmra.mxu0 %v4163
    %v4559 = vpop.f32.mrf.mxu0
    %v4560 = vadd.f32 %v4213, %v4559
    %v4561 = vpop.f32.mrf.mxu0
    %v4562 = vadd.f32 %v4217, %v4561
    %v4563 = vpop.f32.mrf.mxu0
    %v4564 = vadd.f32 %v4213, %v4563
    %v4565 = vpop.f32.mrf.mxu0
    %v4566 = vadd.f32 %v4217, %v4565
    %4567 = vmatprep.mubr.bf16.mxu0 0
    %4568 = vmatmul.mubr.bf16.gmra.mxu0 %v4164
    %v4569 = vpop.f32.mrf.mxu0
    %v4570 = vadd.f32 %v4213, %v4569
    %v4571 = vpop.f32.mrf.mxu0
    %v4572 = vadd.f32 %v4217, %v4571
    %v4573 = vpop.f32.mrf.mxu0
    %v4574 = vadd.f32 %v4213, %v4573
    %v4575 = vpop.f32.mrf.mxu0
    %v4576 = vadd.f32 %v4217, %v4575
    %4577 = vmatprep.mubr.bf16.mxu0 0
    %4578 = vmatmul.mubr.bf16.gmra.mxu0 %v4165
    %v4579 = vpop.f32.mrf.mxu0
    %v4580 = vadd.f32 %v4213, %v4579
    %v4581 = vpop.f32.mrf.mxu0
    %v4582 = vadd.f32 %v4217, %v4581
    %v4583 = vpop.f32.mrf.mxu0
    %v4584 = vadd.f32 %v4213, %v4583
    %v4585 = vpop.f32.mrf.mxu0
    %v4586 = vadd.f32 %v4217, %v4585
    %4587 = vmatprep.mubr.bf16.mxu0 0
    %4588 = vmatmul.mubr.bf16.gmra.mxu0 %v4166
    %v4589 = vpop.f32.mrf.mxu0
    %v4590 = vadd.f32 %v4213, %v4589
    %v4591 = vpop.f32.mrf.mxu0
    %v4592 = vadd.f32 %v4217, %v4591
    %v4593 = vpop.f32.mrf.mxu0
    %v4594 = vadd.f32 %v4213, %v4593
    %v4595 = vpop.f32.mrf.mxu0
    %v4596 = vadd.f32 %v4217, %v4595
    %4597 = vmatprep.mubr.bf16.mxu0 0
    %4598 = vmatmul.mubr.bf16.gmra.mxu0 %v4167
    %v4599 = vpop.f32.mrf.mxu0
    %v4600 = vadd.f32 %v4213, %v4599
    %v4601 = vpop.f32.mrf.mxu0
    %v4602 = vadd.f32 %v4217, %v4601
    %v4603 = vpop.f32.mrf.mxu0
    %v4604 = vadd.f32 %v4213, %v4603
    %v4605 = vpop.f32.mrf.mxu0
    %v4606 = vadd.f32 %v4217, %v4605
    %4607 = vdwg.mxu0
    %4608 = vst [vmem:[#allocation4] sm:$0xff] %v4417
    %4609 = vst [vmem:[#allocation4 + $0x8] sm:$0xff] %v4419
    %4610 = vst [vmem:[#allocation4 + $0x10] sm:$0xff] %v4530
    %4611 = vst [vmem:[#allocation4 + $0x18] sm:$0xff] %v4532
    %4612 = vst [vmem:[#allocation4 + $0x20] sm:$0xff] %v4421
    %4613 = vst [vmem:[#allocation4 + $0x28] sm:$0xff] %v4423
    %4614 = vst [vmem:[#allocation4 + $0x30] sm:$0xff] %v4534
    %4615 = vst [vmem:[#allocation4 + $0x38] sm:$0xff] %v4536
    %4616 = vst [vmem:[#allocation4 + $0x40] sm:$0xff] %v4427
    %4617 = vst [vmem:[#allocation4 + $0x48] sm:$0xff] %v4429
    %4618 = vst [vmem:[#allocation4 + $0x50] sm:$0xff] %v4540
    %4619 = vst [vmem:[#allocation4 + $0x58] sm:$0xff] %v4542
    %4620 = vst [vmem:[#allocation4 + $0x60] sm:$0xff] %v4431
    %4621 = vst [vmem:[#allocation4 + $0x68] sm:$0xff] %v4433
    %4622 = vst [vmem:[#allocation4 + $0x70] sm:$0xff] %v4544
    %4623 = vst [vmem:[#allocation4 + $0x78] sm:$0xff] %v4546
    %4624 = vst [vmem:[#allocation4 + $0x80] sm:$0xff] %v4437
    %4625 = vst [vmem:[#allocation4 + $0x88] sm:$0xff] %v4439
    %4626 = vst [vmem:[#allocation4 + $0x90] sm:$0xff] %v4550
    %4627 = vst [vmem:[#allocation4 + $0x98] sm:$0xff] %v4552
    %4628 = vst [vmem:[#allocation4 + $0xa0] sm:$0xff] %v4441
    %4629 = vst [vmem:[#allocation4 + $0xa8] sm:$0xff] %v4443
    %4630 = vst [vmem:[#allocation4 + $0xb0] sm:$0xff] %v4554
    %4631 = vst [vmem:[#allocation4 + $0xb8] sm:$0xff] %v4556
    %4632 = vst [vmem:[#allocation4 + $0xc0] sm:$0xff] %v4447
    %4633 = vst [vmem:[#allocation4 + $0xc8] sm:$0xff] %v4449
    %4634 = vst [vmem:[#allocation4 + $0xd0] sm:$0xff] %v4560
    %4635 = vst [vmem:[#allocation4 + $0xd8] sm:$0xff] %v4562
    %4636 = vst [vmem:[#allocation4 + $0xe0] sm:$0xff] %v4451
    %4637 = vst [vmem:[#allocation4 + $0xe8] sm:$0xff] %v4453
    %4638 = vst [vmem:[#allocation4 + $0xf0] sm:$0xff] %v4564
    %4639 = vst [vmem:[#allocation4 + $0xf8] sm:$0xff] %v4566
    %4640 = vst [vmem:[#allocation4 + $0x100] sm:$0xff] %v4457
    %4641 = vst [vmem:[#allocation4 + $0x108] sm:$0xff] %v4459
    %4642 = vst [vmem:[#allocation4 + $0x110] sm:$0xff] %v4570
    %4643 = vst [vmem:[#allocation4 + $0x118] sm:$0xff] %v4572
    %4644 = vst [vmem:[#allocation4 + $0x120] sm:$0xff] %v4461
    %4645 = vst [vmem:[#allocation4 + $0x128] sm:$0xff] %v4463
    %4646 = vst [vmem:[#allocation4 + $0x130] sm:$0xff] %v4574
    %4647 = vst [vmem:[#allocation4 + $0x138] sm:$0xff] %v4576
    %4648 = vst [vmem:[#allocation4 + $0x140] sm:$0xff] %v4467
    %4649 = vst [vmem:[#allocation4 + $0x148] sm:$0xff] %v4469
    %4650 = vst [vmem:[#allocation4 + $0x150] sm:$0xff] %v4580
    %4651 = vst [vmem:[#allocation4 + $0x158] sm:$0xff] %v4582
    %4652 = vst [vmem:[#allocation4 + $0x160] sm:$0xff] %v4471
    %4653 = vst [vmem:[#allocation4 + $0x168] sm:$0xff] %v4473
    %4654 = vst [vmem:[#allocation4 + $0x170] sm:$0xff] %v4584
    %4655 = vst [vmem:[#allocation4 + $0x178] sm:$0xff] %v4586
    %4656 = vst [vmem:[#allocation4 + $0x180] sm:$0xff] %v4477
    %4657 = vst [vmem:[#allocation4 + $0x188] sm:$0xff] %v4479
    %4658 = vst [vmem:[#allocation4 + $0x190] sm:$0xff] %v4590
    %4659 = vst [vmem:[#allocation4 + $0x198] sm:$0xff] %v4592
    %4660 = vst [vmem:[#allocation4 + $0x1a0] sm:$0xff] %v4481
    %4661 = vst [vmem:[#allocation4 + $0x1a8] sm:$0xff] %v4483
    %4662 = vst [vmem:[#allocation4 + $0x1b0] sm:$0xff] %v4594
    %4663 = vst [vmem:[#allocation4 + $0x1b8] sm:$0xff] %v4596
    %4664 = vst [vmem:[#allocation4 + $0x1c0] sm:$0xff] %v4487
    %4665 = vst [vmem:[#allocation4 + $0x1c8] sm:$0xff] %v4489
    %4666 = vst [vmem:[#allocation4 + $0x1d0] sm:$0xff] %v4600
    %4667 = vst [vmem:[#allocation4 + $0x1d8] sm:$0xff] %v4602
    %4668 = vst [vmem:[#allocation4 + $0x1e0] sm:$0xff] %v4491
    %4669 = vst [vmem:[#allocation4 + $0x1e8] sm:$0xff] %v4493
    %4670 = vst [vmem:[#allocation4 + $0x1f0] sm:$0xff] %v4604
    %4671 = vst [vmem:[#allocation4 + $0x1f8] sm:$0xff] %v4606
    %v4672 = vld [vmem:[#allocation4] sm:$0xff]
    %v4673 = vld [vmem:[#allocation4 + $0x8] sm:$0xff]
    %v4674 = vld [vmem:[#allocation4 + $0x10] sm:$0xff]
    %v4675 = vld [vmem:[#allocation4 + $0x18] sm:$0xff]
    %v4676 = vld [vmem:[#allocation4 + $0x20] sm:$0xff]
    %v4677 = vld [vmem:[#allocation4 + $0x28] sm:$0xff]
    %v4678 = vld [vmem:[#allocation4 + $0x30] sm:$0xff]
    %v4679 = vld [vmem:[#allocation4 + $0x38] sm:$0xff]
    %v4680 = vld [vmem:[#allocation4 + $0x40] sm:$0xff]
    %v4681 = vld [vmem:[#allocation4 + $0x48] sm:$0xff]
    %v4682 = vld [vmem:[#allocation4 + $0x50] sm:$0xff]
    %v4683 = vld [vmem:[#allocation4 + $0x58] sm:$0xff]
    %v4684 = vld [vmem:[#allocation4 + $0x60] sm:$0xff]
    %v4685 = vld [vmem:[#allocation4 + $0x68] sm:$0xff]
    %v4686 = vld [vmem:[#allocation4 + $0x70] sm:$0xff]
    %v4687 = vld [vmem:[#allocation4 + $0x78] sm:$0xff]
    %v4688 = vld [vmem:[#allocation4 + $0x80] sm:$0xff]
    %v4689 = vld [vmem:[#allocation4 + $0x88] sm:$0xff]
    %v4690 = vld [vmem:[#allocation4 + $0x90] sm:$0xff]
    %v4691 = vld [vmem:[#allocation4 + $0x98] sm:$0xff]
    %v4692 = vld [vmem:[#allocation4 + $0xa0] sm:$0xff]
    %v4693 = vld [vmem:[#allocation4 + $0xa8] sm:$0xff]
    %v4694 = vld [vmem:[#allocation4 + $0xb0] sm:$0xff]
    %v4695 = vld [vmem:[#allocation4 + $0xb8] sm:$0xff]
    %v4696 = vld [vmem:[#allocation4 + $0xc0] sm:$0xff]
    %v4697 = vld [vmem:[#allocation4 + $0xc8] sm:$0xff]
    %v4698 = vld [vmem:[#allocation4 + $0xd0] sm:$0xff]
    %v4699 = vld [vmem:[#allocation4 + $0xd8] sm:$0xff]
    %v4700 = vld [vmem:[#allocation4 + $0xe0] sm:$0xff]
    %v4701 = vld [vmem:[#allocation4 + $0xe8] sm:$0xff]
    %v4702 = vld [vmem:[#allocation4 + $0xf0] sm:$0xff]
    %v4703 = vld [vmem:[#allocation4 + $0xf8] sm:$0xff]
    %v4704 = vld [vmem:[#allocation4 + $0x100] sm:$0xff]
    %v4705 = vld [vmem:[#allocation4 + $0x108] sm:$0xff]
    %v4706 = vld [vmem:[#allocation4 + $0x110] sm:$0xff]
    %v4707 = vld [vmem:[#allocation4 + $0x118] sm:$0xff]
    %v4708 = vld [vmem:[#allocation4 + $0x120] sm:$0xff]
    %v4709 = vld [vmem:[#allocation4 + $0x128] sm:$0xff]
    %v4710 = vld [vmem:[#allocation4 + $0x130] sm:$0xff]
    %v4711 = vld [vmem:[#allocation4 + $0x138] sm:$0xff]
    %v4712 = vld [vmem:[#allocation4 + $0x140] sm:$0xff]
    %v4713 = vld [vmem:[#allocation4 + $0x148] sm:$0xff]
    %v4714 = vld [vmem:[#allocation4 + $0x150] sm:$0xff]
    %v4715 = vld [vmem:[#allocation4 + $0x158] sm:$0xff]
    %v4716 = vld [vmem:[#allocation4 + $0x160] sm:$0xff]
    %v4717 = vld [vmem:[#allocation4 + $0x168] sm:$0xff]
    %v4718 = vld [vmem:[#allocation4 + $0x170] sm:$0xff]
    %v4719 = vld [vmem:[#allocation4 + $0x178] sm:$0xff]
    %v4720 = vld [vmem:[#allocation4 + $0x180] sm:$0xff]
    %v4721 = vld [vmem:[#allocation4 + $0x188] sm:$0xff]
    %v4722 = vld [vmem:[#allocation4 + $0x190] sm:$0xff]
    %v4723 = vld [vmem:[#allocation4 + $0x198] sm:$0xff]
    %v4724 = vld [vmem:[#allocation4 + $0x1a0] sm:$0xff]
    %v4725 = vld [vmem:[#allocation4 + $0x1a8] sm:$0xff]
    %v4726 = vld [vmem:[#allocation4 + $0x1b0] sm:$0xff]
    %v4727 = vld [vmem:[#allocation4 + $0x1b8] sm:$0xff]
    %v4728 = vld [vmem:[#allocation4 + $0x1c0] sm:$0xff]
    %v4729 = vld [vmem:[#allocation4 + $0x1c8] sm:$0xff]
    %v4730 = vld [vmem:[#allocation4 + $0x1d0] sm:$0xff]
    %v4731 = vld [vmem:[#allocation4 + $0x1d8] sm:$0xff]
    %v4732 = vld [vmem:[#allocation4 + $0x1e0] sm:$0xff]
    %v4733 = vld [vmem:[#allocation4 + $0x1e8] sm:$0xff]
    %v4734 = vld [vmem:[#allocation4 + $0x1f0] sm:$0xff]
    %v4735 = vld [vmem:[#allocation4 + $0x1f8] sm:$0xff]
    %v4736 = vadd.f32 %v4672, %v4676
    %v4737 = vadd.f32 %v4736, %v4680
    %v4738 = vadd.f32 %v4737, %v4684
    %v4739 = vadd.f32 %v4738, %v4688
    %v4740 = vadd.f32 %v4739, %v4692
    %v4741 = vadd.f32 %v4740, %v4696
    %v4742 = vadd.f32 %v4741, %v4700
    %v4743 = vrot.slane %v4742, 4
    %v4744 = vadd.f32 %v4742, %v4743
    %v4745 = vrot.slane %v4744, 2
    %v4746 = vadd.f32 %v4744, %v4745
    %v4747 = vrot.slane %v4746, 1
    %v4748 = vadd.f32 %v4746, %v4747
    %v4749 = vadd.f32 %v4673, %v4677
    %v4750 = vadd.f32 %v4749, %v4681
    %v4751 = vadd.f32 %v4750, %v4685
    %v4752 = vadd.f32 %v4751, %v4689
    %v4753 = vadd.f32 %v4752, %v4693
    %v4754 = vadd.f32 %v4753, %v4697
    %v4755 = vadd.f32 %v4754, %v4701
    %v4756 = vrot.slane %v4755, 4
    %v4757 = vadd.f32 %v4755, %v4756
    %v4758 = vrot.slane %v4757, 2
    %v4759 = vadd.f32 %v4757, %v4758
    %v4760 = vrot.slane %v4759, 1
    %v4761 = vadd.f32 %v4759, %v4760
    %v4762 = vadd.f32 %v4674, %v4678
    %v4763 = vadd.f32 %v4762, %v4682
    %v4764 = vadd.f32 %v4763, %v4686
    %v4765 = vadd.f32 %v4764, %v4690
    %v4766 = vadd.f32 %v4765, %v4694
    %v4767 = vadd.f32 %v4766, %v4698
    %v4768 = vadd.f32 %v4767, %v4702
    %v4769 = vrot.slane %v4768, 4
    %v4770 = vadd.f32 %v4768, %v4769
    %v4771 = vrot.slane %v4770, 2
    %v4772 = vadd.f32 %v4770, %v4771
    %v4773 = vrot.slane %v4772, 1
    %v4774 = vadd.f32 %v4772, %v4773
    %v4775 = vadd.f32 %v4675, %v4679
    %v4776 = vadd.f32 %v4775, %v4683
    %v4777 = vadd.f32 %v4776, %v4687
    %v4778 = vadd.f32 %v4777, %v4691
    %v4779 = vadd.f32 %v4778, %v4695
    %v4780 = vadd.f32 %v4779, %v4699
    %v4781 = vadd.f32 %v4780, %v4703
    %v4782 = vrot.slane %v4781, 4
    %v4783 = vadd.f32 %v4781, %v4782
    %v4784 = vrot.slane %v4783, 2
    %v4785 = vadd.f32 %v4783, %v4784
    %v4786 = vrot.slane %v4785, 1
    %v4787 = vadd.f32 %v4785, %v4786
    %v4788 = vadd.f32 %v4704, %v4708
    %v4789 = vadd.f32 %v4788, %v4712
    %v4790 = vadd.f32 %v4789, %v4716
    %v4791 = vadd.f32 %v4790, %v4720
    %v4792 = vadd.f32 %v4791, %v4724
    %v4793 = vadd.f32 %v4792, %v4728
    %v4794 = vadd.f32 %v4793, %v4732
    %v4795 = vrot.slane %v4794, 4
    %v4796 = vadd.f32 %v4794, %v4795
    %v4797 = vrot.slane %v4796, 2
    %v4798 = vadd.f32 %v4796, %v4797
    %v4799 = vrot.slane %v4798, 1
    %v4800 = vadd.f32 %v4798, %v4799
    %v4801 = vadd.f32 %v4705, %v4709
    %v4802 = vadd.f32 %v4801, %v4713
    %v4803 = vadd.f32 %v4802, %v4717
    %v4804 = vadd.f32 %v4803, %v4721
    %v4805 = vadd.f32 %v4804, %v4725
    %v4806 = vadd.f32 %v4805, %v4729
    %v4807 = vadd.f32 %v4806, %v4733
    %v4808 = vrot.slane %v4807, 4
    %v4809 = vadd.f32 %v4807, %v4808
    %v4810 = vrot.slane %v4809, 2
    %v4811 = vadd.f32 %v4809, %v4810
    %v4812 = vrot.slane %v4811, 1
    %v4813 = vadd.f32 %v4811, %v4812
    %v4814 = vadd.f32 %v4706, %v4710
    %v4815 = vadd.f32 %v4814, %v4714
    %v4816 = vadd.f32 %v4815, %v4718
    %v4817 = vadd.f32 %v4816, %v4722
    %v4818 = vadd.f32 %v4817, %v4726
    %v4819 = vadd.f32 %v4818, %v4730
    %v4820 = vadd.f32 %v4819, %v4734
    %v4821 = vrot.slane %v4820, 4
    %v4822 = vadd.f32 %v4820, %v4821
    %v4823 = vrot.slane %v4822, 2
    %v4824 = vadd.f32 %v4822, %v4823
    %v4825 = vrot.slane %v4824, 1
    %v4826 = vadd.f32 %v4824, %v4825
    %v4827 = vadd.f32 %v4707, %v4711
    %v4828 = vadd.f32 %v4827, %v4715
    %v4829 = vadd.f32 %v4828, %v4719
    %v4830 = vadd.f32 %v4829, %v4723
    %v4831 = vadd.f32 %v4830, %v4727
    %v4832 = vadd.f32 %v4831, %v4731
    %v4833 = vadd.f32 %v4832, %v4735
    %v4834 = vrot.slane %v4833, 4
    %v4835 = vadd.f32 %v4833, %v4834
    %v4836 = vrot.slane %v4835, 2
    %v4837 = vadd.f32 %v4835, %v4836
    %v4838 = vrot.slane %v4837, 1
    %v4839 = vadd.f32 %v4837, %v4838
    %v4840 = vrcp.pop 64.0
    %v4841 = vmul.f32 %v4748, %v4840
    %v4842 = vmul.f32 %v4761, %v4840
    %v4843 = vmul.f32 %v4774, %v4840
    %v4844 = vmul.f32 %v4787, %v4840
    %v4845 = vmul.f32 %v4800, %v4840
    %v4846 = vmul.f32 %v4813, %v4840
    %v4847 = vmul.f32 %v4826, %v4840
    %v4848 = vmul.f32 %v4839, %v4840
    %v4849 = vpack.c.bf16 %v4841, %v4841
    %v4850 = vpack.c.bf16 %v4842, %v4842
    %v4851 = vpack.c.bf16 %v4843, %v4843
    %v4852 = vpack.c.bf16 %v4844, %v4844
    %v4853 = vpack.c.bf16 %v4845, %v4845
    %v4854 = vpack.c.bf16 %v4846, %v4846
    %v4855 = vpack.c.bf16 %v4847, %v4847
    %v4856 = vpack.c.bf16 %v4848, %v4848
    %v4857 = vld [vmem:[%s7] sm:$0xf]
    %v4858 = vld [vmem:[%s7 + $0x4] sm:$0xf]
    %v4859 = vld [vmem:[%s7 + $0x8] sm:$0xf]
    %v4860 = vld [vmem:[%s7 + $0xc] sm:$0xf]
    %v4861 = vld [vmem:[%s7 + $0x10] sm:$0xf]
    %v4862 = vld [vmem:[%s7 + $0x14] sm:$0xf]
    %v4863 = vld [vmem:[%s7 + $0x18] sm:$0xf]
    %v4864 = vld [vmem:[%s7 + $0x1c] sm:$0xf]
    %v4865 = vld [vmem:[%s7 + $0x20] sm:$0xf]
    %v4866 = vld [vmem:[%s7 + $0x24] sm:$0xf]
    %v4867 = vld [vmem:[%s7 + $0x28] sm:$0xf]
    %v4868 = vld [vmem:[%s7 + $0x2c] sm:$0xf]
    %v4869 = vld [vmem:[%s7 + $0x30] sm:$0xf]
    %v4870 = vld [vmem:[%s7 + $0x34] sm:$0xf]
    %v4871 = vld [vmem:[%s7 + $0x38] sm:$0xf]
    %v4872 = vld [vmem:[%s7 + $0x3c] sm:$0xf]
    %v4873 = vld [vmem:[%s7 + $0x40] sm:$0xf]
    %v4874 = vld [vmem:[%s7 + $0x44] sm:$0xf]
    %v4875 = vld [vmem:[%s7 + $0x48] sm:$0xf]
    %v4876 = vld [vmem:[%s7 + $0x4c] sm:$0xf]
    %v4877 = vld [vmem:[%s7 + $0x50] sm:$0xf]
    %v4878 = vld [vmem:[%s7 + $0x54] sm:$0xf]
    %v4879 = vld [vmem:[%s7 + $0x58] sm:$0xf]
    %v4880 = vld [vmem:[%s7 + $0x5c] sm:$0xf]
    %v4881 = vld [vmem:[%s7 + $0x60] sm:$0xf]
    %v4882 = vld [vmem:[%s7 + $0x64] sm:$0xf]
    %v4883 = vld [vmem:[%s7 + $0x68] sm:$0xf]
    %v4884 = vld [vmem:[%s7 + $0x6c] sm:$0xf]
    %v4885 = vld [vmem:[%s7 + $0x70] sm:$0xf]
    %v4886 = vld [vmem:[%s7 + $0x74] sm:$0xf]
    %v4887 = vld [vmem:[%s7 + $0x78] sm:$0xf]
    %v4888 = vld [vmem:[%s7 + $0x7c] sm:$0xf]
    %v4889 = vld [vmem:[%s7 + $0x80] sm:$0xf]
    %v4890 = vld [vmem:[%s7 + $0x84] sm:$0xf]
    %v4891 = vld [vmem:[%s7 + $0x88] sm:$0xf]
    %v4892 = vld [vmem:[%s7 + $0x8c] sm:$0xf]
    %v4893 = vld [vmem:[%s7 + $0x90] sm:$0xf]
    %v4894 = vld [vmem:[%s7 + $0x94] sm:$0xf]
    %v4895 = vld [vmem:[%s7 + $0x98] sm:$0xf]
    %v4896 = vld [vmem:[%s7 + $0x9c] sm:$0xf]
    %v4897 = vld [vmem:[%s7 + $0xa0] sm:$0xf]
    %v4898 = vld [vmem:[%s7 + $0xa4] sm:$0xf]
    %v4899 = vld [vmem:[%s7 + $0xa8] sm:$0xf]
    %v4900 = vld [vmem:[%s7 + $0xac] sm:$0xf]
    %v4901 = vld [vmem:[%s7 + $0xb0] sm:$0xf]
    %v4902 = vld [vmem:[%s7 + $0xb4] sm:$0xf]
    %v4903 = vld [vmem:[%s7 + $0xb8] sm:$0xf]
    %v4904 = vld [vmem:[%s7 + $0xbc] sm:$0xf]
    %v4905 = vld [vmem:[%s7 + $0xc0] sm:$0xf]
    %v4906 = vld [vmem:[%s7 + $0xc4] sm:$0xf]
    %v4907 = vld [vmem:[%s7 + $0xc8] sm:$0xf]
    %v4908 = vld [vmem:[%s7 + $0xcc] sm:$0xf]
    %v4909 = vld [vmem:[%s7 + $0xd0] sm:$0xf]
    %v4910 = vld [vmem:[%s7 + $0xd4] sm:$0xf]
    %v4911 = vld [vmem:[%s7 + $0xd8] sm:$0xf]
    %v4912 = vld [vmem:[%s7 + $0xdc] sm:$0xf]
    %v4913 = vld [vmem:[%s7 + $0xe0] sm:$0xf]
    %v4914 = vld [vmem:[%s7 + $0xe4] sm:$0xf]
    %v4915 = vld [vmem:[%s7 + $0xe8] sm:$0xf]
    %v4916 = vld [vmem:[%s7 + $0xec] sm:$0xf]
    %v4917 = vld [vmem:[%s7 + $0xf0] sm:$0xf]
    %v4918 = vld [vmem:[%s7 + $0xf4] sm:$0xf]
    %v4919 = vld [vmem:[%s7 + $0xf8] sm:$0xf]
    %v4920 = vld [vmem:[%s7 + $0xfc] sm:$0xf]
    %v4929 = vunpack.c.l.b16 %v4849
    %v4930 = vunpack.c.l.b16 %v4850
    %v4931 = vunpack.c.l.b16 %v4851
    %v4932 = vunpack.c.l.b16 %v4852
    %v4933 = vunpack.c.l.b16 %v4853
    %v4934 = vunpack.c.l.b16 %v4854
    %v4935 = vunpack.c.l.b16 %v4855
    %v4936 = vunpack.c.l.b16 %v4856
    %vm4937 = vcmask 1041409
    %v4938 = vsel %vm4937, %v4933, %v4929
    %v4939 = vsel %vm4937, %v4934, %v4930
    %v4940 = vsel %vm4937, %v4935, %v4931
    %v4941 = vsel %vm4937, %v4936, %v4932
    %v4942 = vpack.c.b16 %v4938, %v4938
    %v4943 = vpack.c.b16 %v4939, %v4939
    %v4944 = vpack.c.b16 %v4940, %v4940
    %v4945 = vpack.c.b16 %v4941, %v4941
    %v5014 = vunpack.c.l.b16 %v4857
    %v5015 = vunpack.c.l.b16 %v4858
    %v5016 = vunpack.c.l.b16 %v4859
    %v5017 = vunpack.c.l.b16 %v4860
    %v5018 = vunpack.c.l.b16 %v4861
    %v5019 = vunpack.c.l.b16 %v4862
    %v5020 = vunpack.c.l.b16 %v4863
    %v5021 = vunpack.c.l.b16 %v4864
    %v5022 = vunpack.c.l.b16 %v4865
    %v5023 = vunpack.c.l.b16 %v4866
    %v5024 = vunpack.c.l.b16 %v4867
    %v5025 = vunpack.c.l.b16 %v4868
    %v5026 = vunpack.c.l.b16 %v4869
    %v5027 = vunpack.c.l.b16 %v4870
    %v5028 = vunpack.c.l.b16 %v4871
    %v5029 = vunpack.c.l.b16 %v4872
    %v5030 = vunpack.c.l.b16 %v4873
    %v5031 = vunpack.c.l.b16 %v4874
    %v5032 = vunpack.c.l.b16 %v4875
    %v5033 = vunpack.c.l.b16 %v4876
    %v5034 = vunpack.c.l.b16 %v4877
    %v5035 = vunpack.c.l.b16 %v4878
    %v5036 = vunpack.c.l.b16 %v4879
    %v5037 = vunpack.c.l.b16 %v4880
    %v5038 = vunpack.c.l.b16 %v4881
    %v5039 = vunpack.c.l.b16 %v4882
    %v5040 = vunpack.c.l.b16 %v4883
    %v5041 = vunpack.c.l.b16 %v4884
    %v5042 = vunpack.c.l.b16 %v4885
    %v5043 = vunpack.c.l.b16 %v4886
    %v5044 = vunpack.c.l.b16 %v4887
    %v5045 = vunpack.c.l.b16 %v4888
    %v5046 = vunpack.c.l.b16 %v4889
    %v5047 = vunpack.c.l.b16 %v4890
    %v5048 = vunpack.c.l.b16 %v4891
    %v5049 = vunpack.c.l.b16 %v4892
    %v5050 = vunpack.c.l.b16 %v4893
    %v5051 = vunpack.c.l.b16 %v4894
    %v5052 = vunpack.c.l.b16 %v4895
    %v5053 = vunpack.c.l.b16 %v4896
    %v5054 = vunpack.c.l.b16 %v4897
    %v5055 = vunpack.c.l.b16 %v4898
    %v5056 = vunpack.c.l.b16 %v4899
    %v5057 = vunpack.c.l.b16 %v4900
    %v5058 = vunpack.c.l.b16 %v4901
    %v5059 = vunpack.c.l.b16 %v4902
    %v5060 = vunpack.c.l.b16 %v4903
    %v5061 = vunpack.c.l.b16 %v4904
    %v5062 = vunpack.c.l.b16 %v4905
    %v5063 = vunpack.c.l.b16 %v4906
    %v5064 = vunpack.c.l.b16 %v4907
    %v5065 = vunpack.c.l.b16 %v4908
    %v5066 = vunpack.c.l.b16 %v4909
    %v5067 = vunpack.c.l.b16 %v4910
    %v5068 = vunpack.c.l.b16 %v4911
    %v5069 = vunpack.c.l.b16 %v4912
    %v5070 = vunpack.c.l.b16 %v4913
    %v5071 = vunpack.c.l.b16 %v4914
    %v5072 = vunpack.c.l.b16 %v4915
    %v5073 = vunpack.c.l.b16 %v4916
    %v5074 = vunpack.c.l.b16 %v4917
    %v5075 = vunpack.c.l.b16 %v4918
    %v5076 = vunpack.c.l.b16 %v4919
    %v5077 = vunpack.c.l.b16 %v4920
    %v5078 = vpack.c.b16 %v5015, %v5014
    %v5079 = vpack.c.b16 %v5017, %v5016
    %v5080 = vpack.c.b16 %v5019, %v5018
    %v5081 = vpack.c.b16 %v5021, %v5020
    %v5082 = vpack.c.b16 %v5023, %v5022
    %v5083 = vpack.c.b16 %v5025, %v5024
    %v5084 = vpack.c.b16 %v5027, %v5026
    %v5085 = vpack.c.b16 %v5029, %v5028
    %v5086 = vpack.c.b16 %v5031, %v5030
    %v5087 = vpack.c.b16 %v5033, %v5032
    %v5088 = vpack.c.b16 %v5035, %v5034
    %v5089 = vpack.c.b16 %v5037, %v5036
    %v5090 = vpack.c.b16 %v5039, %v5038
    %v5091 = vpack.c.b16 %v5041, %v5040
    %v5092 = vpack.c.b16 %v5043, %v5042
    %v5093 = vpack.c.b16 %v5045, %v5044
    %v5094 = vpack.c.b16 %v5047, %v5046
    %v5095 = vpack.c.b16 %v5049, %v5048
    %v5096 = vpack.c.b16 %v5051, %v5050
    %v5097 = vpack.c.b16 %v5053, %v5052
    %v5098 = vpack.c.b16 %v5055, %v5054
    %v5099 = vpack.c.b16 %v5057, %v5056
    %v5100 = vpack.c.b16 %v5059, %v5058
    %v5101 = vpack.c.b16 %v5061, %v5060
    %v5102 = vpack.c.b16 %v5063, %v5062
    %v5103 = vpack.c.b16 %v5065, %v5064
    %v5104 = vpack.c.b16 %v5067, %v5066
    %v5105 = vpack.c.b16 %v5069, %v5068
    %v5106 = vpack.c.b16 %v5071, %v5070
    %v5107 = vpack.c.b16 %v5073, %v5072
    %v5108 = vpack.c.b16 %v5075, %v5074
    %v5109 = vpack.c.b16 %v5077, %v5076
    %5142 = vmatprep.subr.bf16.mxu0 0
    %5143 = vmatpush1.bf16.msra.mxu0 %v5085
    %5144 = vmatprep.subr.bf16.mxu0 0
    %5145 = vmatpush1.bf16.msra.mxu0 %v5084
    %5146 = vmatprep.subr.bf16.mxu0 0
    %5147 = vmatpush1.bf16.msra.mxu0 %v5083
    %5148 = vmatprep.subr.bf16.mxu0 0
    %5149 = vmatpush1.bf16.msra.mxu0 %v5082
    %5150 = vmatprep.subr.bf16.mxu0 0
    %5151 = vmatpush1.bf16.msra.mxu0 %v5081
    %5152 = vmatprep.subr.bf16.mxu0 0
    %5153 = vmatpush1.bf16.msra.mxu0 %v5080
    %5154 = vmatprep.subr.bf16.mxu0 0
    %5155 = vmatpush1.bf16.msra.mxu0 %v5079
    %5156 = vmatprep.subr.bf16.mxu0 0
    %5157 = vmatpush1.bf16.msra.mxu0 %v5078
    %5158 = vmatprep.subr.bf16.mxu0 0
    %5159 = vmatpush2.bf16.msra.mxu0 %v5093
    %5160 = vmatprep.subr.bf16.mxu0 0
    %5161 = vmatpush2.bf16.msra.mxu0 %v5092
    %5162 = vmatprep.subr.bf16.mxu0 0
    %5163 = vmatpush2.bf16.msra.mxu0 %v5091
    %5164 = vmatprep.subr.bf16.mxu0 0
    %5165 = vmatpush2.bf16.msra.mxu0 %v5090
    %5166 = vmatprep.subr.bf16.mxu0 0
    %5167 = vmatpush2.bf16.msra.mxu0 %v5089
    %5168 = vmatprep.subr.bf16.mxu0 0
    %5169 = vmatpush2.bf16.msra.mxu0 %v5088
    %5170 = vmatprep.subr.bf16.mxu0 0
    %5171 = vmatpush2.bf16.msra.mxu0 %v5087
    %5172 = vmatprep.subr.bf16.mxu0 0
    %5173 = vmatpush2.bf16.msra.mxu0 %v5086
    %5174 = vmatprep.mubr.bf16.mxu0 %v4943
    %5175 = vmatmul.mubr.bf16.gmra.mxu0 %v4942
    %v5176 = vpop.f32.mrf.mxu0
    %v5177 = vadd.f32 0.0, %v5176
    %v5178 = vpop.f32.mrf.mxu0
    %v5179 = vpop.f32.mrf.mxu0
    %v5180 = vpop.f32.mrf.mxu0
    %5181 = vdwg.mxu0
    %5182 = vmatprep.subr.bf16.mxu0 0
    %5183 = vmatpush1.bf16.msra.mxu0 %v5101
    %5184 = vmatprep.subr.bf16.mxu0 0
    %5185 = vmatpush1.bf16.msra.mxu0 %v5100
    %5186 = vmatprep.subr.bf16.mxu0 0
    %5187 = vmatpush1.bf16.msra.mxu0 %v5099
    %5188 = vmatprep.subr.bf16.mxu0 0
    %5189 = vmatpush1.bf16.msra.mxu0 %v5098
    %5190 = vmatprep.subr.bf16.mxu0 0
    %5191 = vmatpush1.bf16.msra.mxu0 %v5097
    %5192 = vmatprep.subr.bf16.mxu0 0
    %5193 = vmatpush1.bf16.msra.mxu0 %v5096
    %5194 = vmatprep.subr.bf16.mxu0 0
    %5195 = vmatpush1.bf16.msra.mxu0 %v5095
    %5196 = vmatprep.subr.bf16.mxu0 0
    %5197 = vmatpush1.bf16.msra.mxu0 %v5094
    %5198 = vmatprep.subr.bf16.mxu0 0
    %5199 = vmatpush2.bf16.msra.mxu0 %v5109
    %5200 = vmatprep.subr.bf16.mxu0 0
    %5201 = vmatpush2.bf16.msra.mxu0 %v5108
    %5202 = vmatprep.subr.bf16.mxu0 0
    %5203 = vmatpush2.bf16.msra.mxu0 %v5107
    %5204 = vmatprep.subr.bf16.mxu0 0
    %5205 = vmatpush2.bf16.msra.mxu0 %v5106
    %5206 = vmatprep.subr.bf16.mxu0 0
    %5207 = vmatpush2.bf16.msra.mxu0 %v5105
    %5208 = vmatprep.subr.bf16.mxu0 0
    %5209 = vmatpush2.bf16.msra.mxu0 %v5104
    %5210 = vmatprep.subr.bf16.mxu0 0
    %5211 = vmatpush2.bf16.msra.mxu0 %v5103
    %5212 = vmatprep.subr.bf16.mxu0 0
    %5213 = vmatpush2.bf16.msra.mxu0 %v5102
    %5214 = vmatprep.mubr.bf16.mxu0 %v4945
    %5215 = vmatmul.mubr.bf16.gmra.mxu0 %v4944
    %v5216 = vpop.f32.mrf.mxu0
    %v5217 = vadd.f32 %v5177, %v5216
    %v5218 = vpop.f32.mrf.mxu0
    %v5219 = vpop.f32.mrf.mxu0
    %v5220 = vpop.f32.mrf.mxu0
    %5221 = vdwg.mxu0
    %v5222 = vmax.f32 %v5217, 0.0
    %v5223 = vpack.c.bf16 %v5222, %v5222
    %v5224 = vld [vmem:[%s8] sm:$0xff]
    %v5225 = vld [vmem:[%s8 + $0x8] sm:$0xff]
    %v5226 = vld [vmem:[%s8 + $0x10] sm:$0xff]
    %v5227 = vld [vmem:[%s8 + $0x18] sm:$0xff]
    %v5228 = vld [vmem:[%s8 + $0x20] sm:$0xff]
    %v5229 = vld [vmem:[%s8 + $0x28] sm:$0xff]
    %v5230 = vld [vmem:[%s8 + $0x30] sm:$0xff]
    %v5231 = vld [vmem:[%s8 + $0x38] sm:$0xff]
    %v5240 = vunpack.c.l.b16 %v5224
    %v5241 = vunpack.c.h.b16 %v5224
    %v5242 = vunpack.c.l.b16 %v5225
    %v5243 = vunpack.c.h.b16 %v5225
    %v5244 = vunpack.c.l.b16 %v5226
    %v5245 = vunpack.c.h.b16 %v5226
    %v5246 = vunpack.c.l.b16 %v5227
    %v5247 = vunpack.c.h.b16 %v5227
    %v5248 = vunpack.c.l.b16 %v5228
    %v5249 = vunpack.c.h.b16 %v5228
    %v5250 = vunpack.c.l.b16 %v5229
    %v5251 = vunpack.c.h.b16 %v5229
    %v5252 = vunpack.c.l.b16 %v5230
    %v5253 = vunpack.c.h.b16 %v5230
    %v5254 = vunpack.c.l.b16 %v5231
    %v5255 = vunpack.c.h.b16 %v5231
    %v5256 = vpack.c.b16 %v5244, %v5240
    %v5257 = vpack.c.b16 %v5245, %v5241
    %v5258 = vpack.c.b16 %v5246, %v5242
    %v5259 = vpack.c.b16 %v5247, %v5243
    %v5260 = vpack.c.b16 %v5252, %v5248
    %v5261 = vpack.c.b16 %v5253, %v5249
    %v5262 = vpack.c.b16 %v5254, %v5250
    %v5263 = vpack.c.b16 %v5255, %v5251
    %vm5272 = vcmask 261120
    %v5274 = vsel %vm5272, %v5223, 0
    %5276 = vmatprep.subr.bf16.mxu0 0
    %5277 = vmatpush1.bf16.msra.mxu0 0
    %5278 = vmatprep.subr.bf16.mxu0 0
    %5279 = vmatpush1.bf16.msra.mxu0 0
    %5280 = vmatprep.subr.bf16.mxu0 0
    %5281 = vmatpush1.bf16.msra.mxu0 0
    %5282 = vmatprep.subr.bf16.mxu0 0
    %5283 = vmatpush1.bf16.msra.mxu0 0
    %5284 = vmatprep.subr.bf16.mxu0 0
    %5285 = vmatpush1.bf16.msra.mxu0 0
    %5286 = vmatprep.subr.bf16.mxu0 0
    %5287 = vmatpush1.bf16.msra.mxu0 0
    %5288 = vmatprep.subr.bf16.mxu0 %v5261
    %5289 = vmatpush1.bf16.msra.mxu0 %v5260
    %5290 = vmatprep.subr.bf16.mxu0 %v5257
    %5291 = vmatpush1.bf16.msra.mxu0 %v5256
    %5292 = vmatprep.subr.bf16.mxu0 0
    %5293 = vmatpush2.bf16.msra.mxu0 0
    %5294 = vmatprep.subr.bf16.mxu0 0
    %5295 = vmatpush2.bf16.msra.mxu0 0
    %5296 = vmatprep.subr.bf16.mxu0 0
    %5297 = vmatpush2.bf16.msra.mxu0 0
    %5298 = vmatprep.subr.bf16.mxu0 0
    %5299 = vmatpush2.bf16.msra.mxu0 0
    %5300 = vmatprep.subr.bf16.mxu0 0
    %5301 = vmatpush2.bf16.msra.mxu0 0
    %5302 = vmatprep.subr.bf16.mxu0 0
    %5303 = vmatpush2.bf16.msra.mxu0 0
    %5304 = vmatprep.subr.bf16.mxu0 0
    %5305 = vmatpush2.bf16.msra.mxu0 0
    %5306 = vmatprep.subr.bf16.mxu0 0
    %5307 = vmatpush2.bf16.msra.mxu0 0
    %5308 = vmatprep.mubr.bf16.mxu0 0
    %5309 = vmatmul.mubr.bf16.gmra.mxu0 %v5274
    %v5310 = vpop.f32.mrf.mxu0
    %v5311 = vadd.f32 0.0, %v5310
    %v5312 = vpop.f32.mrf.mxu0
    %v5313 = vadd.f32 0.0, %v5312
    %v5314 = vpop.f32.mrf.mxu0
    %v5315 = vpop.f32.mrf.mxu0
    %5316 = vdwg.mxu0
    %5317 = vmatprep.subr.bf16.mxu0 0
    %5318 = vmatpush1.bf16.msra.mxu0 0
    %5319 = vmatprep.subr.bf16.mxu0 0
    %5320 = vmatpush1.bf16.msra.mxu0 0
    %5321 = vmatprep.subr.bf16.mxu0 0
    %5322 = vmatpush1.bf16.msra.mxu0 0
    %5323 = vmatprep.subr.bf16.mxu0 0
    %5324 = vmatpush1.bf16.msra.mxu0 0
    %5325 = vmatprep.subr.bf16.mxu0 0
    %5326 = vmatpush1.bf16.msra.mxu0 0
    %5327 = vmatprep.subr.bf16.mxu0 0
    %5328 = vmatpush1.bf16.msra.mxu0 0
    %5329 = vmatprep.subr.bf16.mxu0 %v5263
    %5330 = vmatpush1.bf16.msra.mxu0 %v5262
    %5331 = vmatprep.subr.bf16.mxu0 %v5259
    %5332 = vmatpush1.bf16.msra.mxu0 %v5258
    %5333 = vmatprep.subr.bf16.mxu0 0
    %5334 = vmatpush2.bf16.msra.mxu0 0
    %5335 = vmatprep.subr.bf16.mxu0 0
    %5336 = vmatpush2.bf16.msra.mxu0 0
    %5337 = vmatprep.subr.bf16.mxu0 0
    %5338 = vmatpush2.bf16.msra.mxu0 0
    %5339 = vmatprep.subr.bf16.mxu0 0
    %5340 = vmatpush2.bf16.msra.mxu0 0
    %5341 = vmatprep.subr.bf16.mxu0 0
    %5342 = vmatpush2.bf16.msra.mxu0 0
    %5343 = vmatprep.subr.bf16.mxu0 0
    %5344 = vmatpush2.bf16.msra.mxu0 0
    %5345 = vmatprep.subr.bf16.mxu0 0
    %5346 = vmatpush2.bf16.msra.mxu0 0
    %5347 = vmatprep.subr.bf16.mxu0 0
    %5348 = vmatpush2.bf16.msra.mxu0 0
    %5349 = vmatprep.mubr.bf16.mxu0 0
    %5350 = vmatmul.mubr.bf16.gmra.mxu0 %v5274
    %v5351 = vpop.f32.mrf.mxu0
    %v5352 = vadd.f32 0.0, %v5351
    %v5353 = vpop.f32.mrf.mxu0
    %v5354 = vadd.f32 0.0, %v5353
    %v5355 = vpop.f32.mrf.mxu0
    %v5356 = vpop.f32.mrf.mxu0
    %5357 = vdwg.mxu0
    %v5358 = vsub.f32 0.0, %v5311
    %v5359 = vsub.f32 0.0, %v5313
    %v5360 = vsub.f32 0.0, %v5352
    %v5361 = vsub.f32 0.0, %v5354
    %v5362 = vmul.f32 %v5358, 1.442695
    %v5363 = vpow.pop %v5362
    %v5364 = vmul.f32 %v5359, 1.442695
    %v5365 = vpow.pop %v5364
    %v5366 = vmul.f32 %v5360, 1.442695
    %v5367 = vpow.pop %v5366
    %v5368 = vmul.f32 %v5361, 1.442695
    %v5369 = vpow.pop %v5368
    %v5370 = vadd.f32 %v5363, 1.0
    %v5371 = vadd.f32 %v5365, 1.0
    %v5372 = vadd.f32 %v5367, 1.0
    %v5373 = vadd.f32 %v5369, 1.0
    %v5374 = vrcp.pop %v5370
    %v5375 = vmul.f32 1.0, %v5374
    %v5376 = vrcp.pop %v5371
    %v5377 = vmul.f32 1.0, %v5376
    %v5378 = vrcp.pop %v5372
    %v5379 = vmul.f32 1.0, %v5378
    %v5380 = vrcp.pop %v5373
    %v5381 = vmul.f32 1.0, %v5380
    %v5382 = vld [vmem:[%s0] sm:$0xff]
    %v5383 = vld [vmem:[%s0 + $0x8] sm:$0xff]
    %v5384 = vld [vmem:[%s0 + $0x10] sm:$0xff]
    %v5385 = vld [vmem:[%s0 + $0x18] sm:$0xff]
    %v5386 = vld [vmem:[%s0 + $0x20] sm:$0xff]
    %v5387 = vld [vmem:[%s0 + $0x28] sm:$0xff]
    %v5388 = vld [vmem:[%s0 + $0x30] sm:$0xff]
    %v5389 = vld [vmem:[%s0 + $0x38] sm:$0xff]
    %v5390 = vld [vmem:[%s0 + $0x40] sm:$0xff]
    %v5391 = vld [vmem:[%s0 + $0x48] sm:$0xff]
    %v5392 = vld [vmem:[%s0 + $0x50] sm:$0xff]
    %v5393 = vld [vmem:[%s0 + $0x58] sm:$0xff]
    %v5394 = vld [vmem:[%s0 + $0x60] sm:$0xff]
    %v5395 = vld [vmem:[%s0 + $0x68] sm:$0xff]
    %v5396 = vld [vmem:[%s0 + $0x70] sm:$0xff]
    %v5397 = vld [vmem:[%s0 + $0x78] sm:$0xff]
    %v5398 = vld [vmem:[%s0 + $0x80] sm:$0xff]
    %v5399 = vld [vmem:[%s0 + $0x88] sm:$0xff]
    %v5400 = vld [vmem:[%s0 + $0x90] sm:$0xff]
    %v5401 = vld [vmem:[%s0 + $0x98] sm:$0xff]
    %v5402 = vld [vmem:[%s0 + $0xa0] sm:$0xff]
    %v5403 = vld [vmem:[%s0 + $0xa8] sm:$0xff]
    %v5404 = vld [vmem:[%s0 + $0xb0] sm:$0xff]
    %v5405 = vld [vmem:[%s0 + $0xb8] sm:$0xff]
    %v5406 = vld [vmem:[%s0 + $0xc0] sm:$0xff]
    %v5407 = vld [vmem:[%s0 + $0xc8] sm:$0xff]
    %v5408 = vld [vmem:[%s0 + $0xd0] sm:$0xff]
    %v5409 = vld [vmem:[%s0 + $0xd8] sm:$0xff]
    %v5410 = vld [vmem:[%s0 + $0xe0] sm:$0xff]
    %v5411 = vld [vmem:[%s0 + $0xe8] sm:$0xff]
    %v5412 = vld [vmem:[%s0 + $0xf0] sm:$0xff]
    %v5413 = vld [vmem:[%s0 + $0xf8] sm:$0xff]
    %v5414 = vunpack.c.l.bf16 %v5382
    %v5415 = vunpack.c.h.bf16 %v5382
    %v5416 = vunpack.c.l.bf16 %v5383
    %v5417 = vunpack.c.h.bf16 %v5383
    %v5418 = vunpack.c.l.bf16 %v5384
    %v5419 = vunpack.c.h.bf16 %v5384
    %v5420 = vunpack.c.l.bf16 %v5385
    %v5421 = vunpack.c.h.bf16 %v5385
    %v5422 = vunpack.c.l.bf16 %v5386
    %v5423 = vunpack.c.h.bf16 %v5386
    %v5424 = vunpack.c.l.bf16 %v5387
    %v5425 = vunpack.c.h.bf16 %v5387
    %v5426 = vunpack.c.l.bf16 %v5388
    %v5427 = vunpack.c.h.bf16 %v5388
    %v5428 = vunpack.c.l.bf16 %v5389
    %v5429 = vunpack.c.h.bf16 %v5389
    %v5430 = vunpack.c.l.bf16 %v5390
    %v5431 = vunpack.c.h.bf16 %v5390
    %v5432 = vunpack.c.l.bf16 %v5391
    %v5433 = vunpack.c.h.bf16 %v5391
    %v5434 = vunpack.c.l.bf16 %v5392
    %v5435 = vunpack.c.h.bf16 %v5392
    %v5436 = vunpack.c.l.bf16 %v5393
    %v5437 = vunpack.c.h.bf16 %v5393
    %v5438 = vunpack.c.l.bf16 %v5394
    %v5439 = vunpack.c.h.bf16 %v5394
    %v5440 = vunpack.c.l.bf16 %v5395
    %v5441 = vunpack.c.h.bf16 %v5395
    %v5442 = vunpack.c.l.bf16 %v5396
    %v5443 = vunpack.c.h.bf16 %v5396
    %v5444 = vunpack.c.l.bf16 %v5397
    %v5445 = vunpack.c.h.bf16 %v5397
    %v5446 = vunpack.c.l.bf16 %v5398
    %v5447 = vunpack.c.h.bf16 %v5398
    %v5448 = vunpack.c.l.bf16 %v5399
    %v5449 = vunpack.c.h.bf16 %v5399
    %v5450 = vunpack.c.l.bf16 %v5400
    %v5451 = vunpack.c.h.bf16 %v5400
    %v5452 = vunpack.c.l.bf16 %v5401
    %v5453 = vunpack.c.h.bf16 %v5401
    %v5454 = vunpack.c.l.bf16 %v5402
    %v5455 = vunpack.c.h.bf16 %v5402
    %v5456 = vunpack.c.l.bf16 %v5403
    %v5457 = vunpack.c.h.bf16 %v5403
    %v5458 = vunpack.c.l.bf16 %v5404
    %v5459 = vunpack.c.h.bf16 %v5404
    %v5460 = vunpack.c.l.bf16 %v5405
    %v5461 = vunpack.c.h.bf16 %v5405
    %v5462 = vunpack.c.l.bf16 %v5406
    %v5463 = vunpack.c.h.bf16 %v5406
    %v5464 = vunpack.c.l.bf16 %v5407
    %v5465 = vunpack.c.h.bf16 %v5407
    %v5466 = vunpack.c.l.bf16 %v5408
    %v5467 = vunpack.c.h.bf16 %v5408
    %v5468 = vunpack.c.l.bf16 %v5409
    %v5469 = vunpack.c.h.bf16 %v5409
    %v5470 = vunpack.c.l.bf16 %v5410
    %v5471 = vunpack.c.h.bf16 %v5410
    %v5472 = vunpack.c.l.bf16 %v5411
    %v5473 = vunpack.c.h.bf16 %v5411
    %v5474 = vunpack.c.l.bf16 %v5412
    %v5475 = vunpack.c.h.bf16 %v5412
    %v5476 = vunpack.c.l.bf16 %v5413
    %v5477 = vunpack.c.h.bf16 %v5413
    %v5482 = vcombine.low %v5375, %v5377
    %v5483 = vcombine.low %v5379, %v5381
    %v5485 = vunpack.c.l.s4 1966171168
    %v5486 = vunpack.c.0.s8 %v5485
    %v5487 = vlaneseq
    %v5488 = vshrl.u32 %v5487, 7
    %v5489 = vsub.s32 %v5486, %v5488
    %v5490 = vrot.slane %v5482, %v5489
    %v5492 = vunpack.c.l.s4 1966171168
    %v5493 = vunpack.c.0.s8 %v5492
    %v5494 = vlaneseq
    %v5495 = vshrl.u32 %v5494, 7
    %v5496 = vsub.s32 %v5493, %v5495
    %v5497 = vrot.slane %v5483, %v5496
    %v5498 = vcombine.low %v5490, %v5497
    %v5499 = vcombine.high %v5490, %v5497
    %v5501 = vunpack.c.l.s4 1966171168
    %v5502 = vunpack.c.0.s8 %v5501
    %v5503 = vlaneseq
    %v5504 = vshrl.u32 %v5503, 7
    %v5505 = vsub.s32 %v5502, %v5504
    %v5506 = vrot.slane %v5498, %v5505
    %v5508 = vunpack.c.l.s4 1966171168
    %v5509 = vunpack.c.0.s8 %v5508
    %v5510 = vlaneseq
    %v5511 = vshrl.u32 %v5510, 7
    %v5512 = vsub.s32 %v5509, %v5511
    %v5513 = vrot.slane %v5499, %v5512
    %v5514 = vlaneseq
    %v5515 = vshrl.u32 %v5514, 7
    %v5516 = vsub.s32 0, %v5515
    %v5517 = vrot.slane %v5506, %v5516
    %v5518 = vlaneseq
    %v5519 = vshrl.u32 %v5518, 7
    %v5520 = vsub.s32 1, %v5519
    %v5521 = vrot.slane %v5506, %v5520
    %v5522 = vlaneseq
    %v5523 = vshrl.u32 %v5522, 7
    %v5524 = vsub.s32 2, %v5523
    %v5525 = vrot.slane %v5506, %v5524
    %v5526 = vlaneseq
    %v5527 = vshrl.u32 %v5526, 7
    %v5528 = vsub.s32 3, %v5527
    %v5529 = vrot.slane %v5506, %v5528
    %v5530 = vlaneseq
    %v5531 = vshrl.u32 %v5530, 7
    %v5532 = vsub.s32 0, %v5531
    %v5533 = vrot.slane %v5513, %v5532
    %v5534 = vlaneseq
    %v5535 = vshrl.u32 %v5534, 7
    %v5536 = vsub.s32 1, %v5535
    %v5537 = vrot.slane %v5513, %v5536
    %v5538 = vlaneseq
    %v5539 = vshrl.u32 %v5538, 7
    %v5540 = vsub.s32 2, %v5539
    %v5541 = vrot.slane %v5513, %v5540
    %v5542 = vlaneseq
    %v5543 = vshrl.u32 %v5542, 7
    %v5544 = vsub.s32 3, %v5543
    %v5545 = vrot.slane %v5513, %v5544
    %v5554 = vmul.f32 %v4672, %v5517
    %v5555 = vmul.f32 %v4673, %v5521
    %v5556 = vmul.f32 %v4674, %v5525
    %v5557 = vmul.f32 %v4675, %v5529
    %v5558 = vmul.f32 %v4676, %v5517
    %v5559 = vmul.f32 %v4677, %v5521
    %v5560 = vmul.f32 %v4678, %v5525
    %v5561 = vmul.f32 %v4679, %v5529
    %v5562 = vmul.f32 %v4680, %v5517
    %v5563 = vmul.f32 %v4681, %v5521
    %v5564 = vmul.f32 %v4682, %v5525
    %v5565 = vmul.f32 %v4683, %v5529
    %v5566 = vmul.f32 %v4684, %v5517
    %v5567 = vmul.f32 %v4685, %v5521
    %v5568 = vmul.f32 %v4686, %v5525
    %v5569 = vmul.f32 %v4687, %v5529
    %v5570 = vmul.f32 %v4688, %v5517
    %v5571 = vmul.f32 %v4689, %v5521
    %v5572 = vmul.f32 %v4690, %v5525
    %v5573 = vmul.f32 %v4691, %v5529
    %v5574 = vmul.f32 %v4692, %v5517
    %v5575 = vmul.f32 %v4693, %v5521
    %v5576 = vmul.f32 %v4694, %v5525
    %v5577 = vmul.f32 %v4695, %v5529
    %v5578 = vmul.f32 %v4696, %v5517
    %v5579 = vmul.f32 %v4697, %v5521
    %v5580 = vmul.f32 %v4698, %v5525
    %v5581 = vmul.f32 %v4699, %v5529
    %v5582 = vmul.f32 %v4700, %v5517
    %v5583 = vmul.f32 %v4701, %v5521
    %v5584 = vmul.f32 %v4702, %v5525
    %v5585 = vmul.f32 %v4703, %v5529
    %v5586 = vmul.f32 %v4704, %v5533
    %v5587 = vmul.f32 %v4705, %v5537
    %v5588 = vmul.f32 %v4706, %v5541
    %v5589 = vmul.f32 %v4707, %v5545
    %v5590 = vmul.f32 %v4708, %v5533
    %v5591 = vmul.f32 %v4709, %v5537
    %v5592 = vmul.f32 %v4710, %v5541
    %v5593 = vmul.f32 %v4711, %v5545
    %v5594 = vmul.f32 %v4712, %v5533
    %v5595 = vmul.f32 %v4713, %v5537
    %v5596 = vmul.f32 %v4714, %v5541
    %v5597 = vmul.f32 %v4715, %v5545
    %v5598 = vmul.f32 %v4716, %v5533
    %v5599 = vmul.f32 %v4717, %v5537
    %v5600 = vmul.f32 %v4718, %v5541
    %v5601 = vmul.f32 %v4719, %v5545
    %v5602 = vmul.f32 %v4720, %v5533
    %v5603 = vmul.f32 %v4721, %v5537
    %v5604 = vmul.f32 %v4722, %v5541
    %v5605 = vmul.f32 %v4723, %v5545
    %v5606 = vmul.f32 %v4724, %v5533
    %v5607 = vmul.f32 %v4725, %v5537
    %v5608 = vmul.f32 %v4726, %v5541
    %v5609 = vmul.f32 %v4727, %v5545
    %v5610 = vmul.f32 %v4728, %v5533
    %v5611 = vmul.f32 %v4729, %v5537
    %v5612 = vmul.f32 %v4730, %v5541
    %v5613 = vmul.f32 %v4731, %v5545
    %v5614 = vmul.f32 %v4732, %v5533
    %v5615 = vmul.f32 %v4733, %v5537
    %v5616 = vmul.f32 %v4734, %v5541
    %v5617 = vmul.f32 %v4735, %v5545
    %v5618 = vadd.f32 %v5554, %v5414
    %v5619 = vadd.f32 %v5555, %v5415
    %v5620 = vadd.f32 %v5556, %v5416
    %v5621 = vadd.f32 %v5557, %v5417
    %v5622 = vadd.f32 %v5558, %v5418
    %v5623 = vadd.f32 %v5559, %v5419
    %v5624 = vadd.f32 %v5560, %v5420
    %v5625 = vadd.f32 %v5561, %v5421
    %v5626 = vadd.f32 %v5562, %v5422
    %v5627 = vadd.f32 %v5563, %v5423
    %v5628 = vadd.f32 %v5564, %v5424
    %v5629 = vadd.f32 %v5565, %v5425
    %v5630 = vadd.f32 %v5566, %v5426
    %v5631 = vadd.f32 %v5567, %v5427
    %v5632 = vadd.f32 %v5568, %v5428
    %v5633 = vadd.f32 %v5569, %v5429
    %v5634 = vadd.f32 %v5570, %v5430
    %v5635 = vadd.f32 %v5571, %v5431
    %v5636 = vadd.f32 %v5572, %v5432
    %v5637 = vadd.f32 %v5573, %v5433
    %v5638 = vadd.f32 %v5574, %v5434
    %v5639 = vadd.f32 %v5575, %v5435
    %v5640 = vadd.f32 %v5576, %v5436
    %v5641 = vadd.f32 %v5577, %v5437
    %v5642 = vadd.f32 %v5578, %v5438
    %v5643 = vadd.f32 %v5579, %v5439
    %v5644 = vadd.f32 %v5580, %v5440
    %v5645 = vadd.f32 %v5581, %v5441
    %v5646 = vadd.f32 %v5582, %v5442
    %v5647 = vadd.f32 %v5583, %v5443
    %v5648 = vadd.f32 %v5584, %v5444
    %v5649 = vadd.f32 %v5585, %v5445
    %v5650 = vadd.f32 %v5586, %v5446
    %v5651 = vadd.f32 %v5587, %v5447
    %v5652 = vadd.f32 %v5588, %v5448
    %v5653 = vadd.f32 %v5589, %v5449
    %v5654 = vadd.f32 %v5590, %v5450
    %v5655 = vadd.f32 %v5591, %v5451
    %v5656 = vadd.f32 %v5592, %v5452
    %v5657 = vadd.f32 %v5593, %v5453
    %v5658 = vadd.f32 %v5594, %v5454
    %v5659 = vadd.f32 %v5595, %v5455
    %v5660 = vadd.f32 %v5596, %v5456
    %v5661 = vadd.f32 %v5597, %v5457
    %v5662 = vadd.f32 %v5598, %v5458
    %v5663 = vadd.f32 %v5599, %v5459
    %v5664 = vadd.f32 %v5600, %v5460
    %v5665 = vadd.f32 %v5601, %v5461
    %v5666 = vadd.f32 %v5602, %v5462
    %v5667 = vadd.f32 %v5603, %v5463
    %v5668 = vadd.f32 %v5604, %v5464
    %v5669 = vadd.f32 %v5605, %v5465
    %v5670 = vadd.f32 %v5606, %v5466
    %v5671 = vadd.f32 %v5607, %v5467
    %v5672 = vadd.f32 %v5608, %v5468
    %v5673 = vadd.f32 %v5609, %v5469
    %v5674 = vadd.f32 %v5610, %v5470
    %v5675 = vadd.f32 %v5611, %v5471
    %v5676 = vadd.f32 %v5612, %v5472
    %v5677 = vadd.f32 %v5613, %v5473
    %v5678 = vadd.f32 %v5614, %v5474
    %v5679 = vadd.f32 %v5615, %v5475
    %v5680 = vadd.f32 %v5616, %v5476
    %v5681 = vadd.f32 %v5617, %v5477
    %v5682 = vmax.f32 %v5618, 0.0
    %v5683 = vmax.f32 %v5619, 0.0
    %v5684 = vmax.f32 %v5620, 0.0
    %v5685 = vmax.f32 %v5621, 0.0
    %v5686 = vmax.f32 %v5622, 0.0
    %v5687 = vmax.f32 %v5623, 0.0
    %v5688 = vmax.f32 %v5624, 0.0
    %v5689 = vmax.f32 %v5625, 0.0
    %v5690 = vmax.f32 %v5626, 0.0
    %v5691 = vmax.f32 %v5627, 0.0
    %v5692 = vmax.f32 %v5628, 0.0
    %v5693 = vmax.f32 %v5629, 0.0
    %v5694 = vmax.f32 %v5630, 0.0
    %v5695 = vmax.f32 %v5631, 0.0
    %v5696 = vmax.f32 %v5632, 0.0
    %v5697 = vmax.f32 %v5633, 0.0
    %v5698 = vmax.f32 %v5634, 0.0
    %v5699 = vmax.f32 %v5635, 0.0
    %v5700 = vmax.f32 %v5636, 0.0
    %v5701 = vmax.f32 %v5637, 0.0
    %v5702 = vmax.f32 %v5638, 0.0
    %v5703 = vmax.f32 %v5639, 0.0
    %v5704 = vmax.f32 %v5640, 0.0
    %v5705 = vmax.f32 %v5641, 0.0
    %v5706 = vmax.f32 %v5642, 0.0
    %v5707 = vmax.f32 %v5643, 0.0
    %v5708 = vmax.f32 %v5644, 0.0
    %v5709 = vmax.f32 %v5645, 0.0
    %v5710 = vmax.f32 %v5646, 0.0
    %v5711 = vmax.f32 %v5647, 0.0
    %v5712 = vmax.f32 %v5648, 0.0
    %v5713 = vmax.f32 %v5649, 0.0
    %v5714 = vmax.f32 %v5650, 0.0
    %v5715 = vmax.f32 %v5651, 0.0
    %v5716 = vmax.f32 %v5652, 0.0
    %v5717 = vmax.f32 %v5653, 0.0
    %v5718 = vmax.f32 %v5654, 0.0
    %v5719 = vmax.f32 %v5655, 0.0
    %v5720 = vmax.f32 %v5656, 0.0
    %v5721 = vmax.f32 %v5657, 0.0
    %v5722 = vmax.f32 %v5658, 0.0
    %v5723 = vmax.f32 %v5659, 0.0
    %v5724 = vmax.f32 %v5660, 0.0
    %v5725 = vmax.f32 %v5661, 0.0
    %v5726 = vmax.f32 %v5662, 0.0
    %v5727 = vmax.f32 %v5663, 0.0
    %v5728 = vmax.f32 %v5664, 0.0
    %v5729 = vmax.f32 %v5665, 0.0
    %v5730 = vmax.f32 %v5666, 0.0
    %v5731 = vmax.f32 %v5667, 0.0
    %v5732 = vmax.f32 %v5668, 0.0
    %v5733 = vmax.f32 %v5669, 0.0
    %v5734 = vmax.f32 %v5670, 0.0
    %v5735 = vmax.f32 %v5671, 0.0
    %v5736 = vmax.f32 %v5672, 0.0
    %v5737 = vmax.f32 %v5673, 0.0
    %v5738 = vmax.f32 %v5674, 0.0
    %v5739 = vmax.f32 %v5675, 0.0
    %v5740 = vmax.f32 %v5676, 0.0
    %v5741 = vmax.f32 %v5677, 0.0
    %v5742 = vmax.f32 %v5678, 0.0
    %v5743 = vmax.f32 %v5679, 0.0
    %v5744 = vmax.f32 %v5680, 0.0
    %v5745 = vmax.f32 %v5681, 0.0
    %v5746 = vpack.c.bf16 %v5682, %v5682
    %v5747 = vpack.c.bf16 %v5683, %v5683
    %v5748 = vpack.c.bf16 %v5684, %v5684
    %v5749 = vpack.c.bf16 %v5685, %v5685
    %v5750 = vpack.c.bf16 %v5686, %v5686
    %v5751 = vpack.c.bf16 %v5687, %v5687
    %v5752 = vpack.c.bf16 %v5688, %v5688
    %v5753 = vpack.c.bf16 %v5689, %v5689
    %v5754 = vpack.c.bf16 %v5690, %v5690
    %v5755 = vpack.c.bf16 %v5691, %v5691
    %v5756 = vpack.c.bf16 %v5692, %v5692
    %v5757 = vpack.c.bf16 %v5693, %v5693
    %v5758 = vpack.c.bf16 %v5694, %v5694
    %v5759 = vpack.c.bf16 %v5695, %v5695
    %v5760 = vpack.c.bf16 %v5696, %v5696
    %v5761 = vpack.c.bf16 %v5697, %v5697
    %v5762 = vpack.c.bf16 %v5698, %v5698
    %v5763 = vpack.c.bf16 %v5699, %v5699
    %v5764 = vpack.c.bf16 %v5700, %v5700
    %v5765 = vpack.c.bf16 %v5701, %v5701
    %v5766 = vpack.c.bf16 %v5702, %v5702
    %v5767 = vpack.c.bf16 %v5703, %v5703
    %v5768 = vpack.c.bf16 %v5704, %v5704
    %v5769 = vpack.c.bf16 %v5705, %v5705
    %v5770 = vpack.c.bf16 %v5706, %v5706
    %v5771 = vpack.c.bf16 %v5707, %v5707
    %v5772 = vpack.c.bf16 %v5708, %v5708
    %v5773 = vpack.c.bf16 %v5709, %v5709
    %v5774 = vpack.c.bf16 %v5710, %v5710
    %v5775 = vpack.c.bf16 %v5711, %v5711
    %v5776 = vpack.c.bf16 %v5712, %v5712
    %v5777 = vpack.c.bf16 %v5713, %v5713
    %v5778 = vpack.c.bf16 %v5714, %v5714
    %v5779 = vpack.c.bf16 %v5715, %v5715
    %v5780 = vpack.c.bf16 %v5716, %v5716
    %v5781 = vpack.c.bf16 %v5717, %v5717
    %v5782 = vpack.c.bf16 %v5718, %v5718
    %v5783 = vpack.c.bf16 %v5719, %v5719
    %v5784 = vpack.c.bf16 %v5720, %v5720
    %v5785 = vpack.c.bf16 %v5721, %v5721
    %v5786 = vpack.c.bf16 %v5722, %v5722
    %v5787 = vpack.c.bf16 %v5723, %v5723
    %v5788 = vpack.c.bf16 %v5724, %v5724
    %v5789 = vpack.c.bf16 %v5725, %v5725
    %v5790 = vpack.c.bf16 %v5726, %v5726
    %v5791 = vpack.c.bf16 %v5727, %v5727
    %v5792 = vpack.c.bf16 %v5728, %v5728
    %v5793 = vpack.c.bf16 %v5729, %v5729
    %v5794 = vpack.c.bf16 %v5730, %v5730
    %v5795 = vpack.c.bf16 %v5731, %v5731
    %v5796 = vpack.c.bf16 %v5732, %v5732
    %v5797 = vpack.c.bf16 %v5733, %v5733
    %v5798 = vpack.c.bf16 %v5734, %v5734
    %v5799 = vpack.c.bf16 %v5735, %v5735
    %v5800 = vpack.c.bf16 %v5736, %v5736
    %v5801 = vpack.c.bf16 %v5737, %v5737
    %v5802 = vpack.c.bf16 %v5738, %v5738
    %v5803 = vpack.c.bf16 %v5739, %v5739
    %v5804 = vpack.c.bf16 %v5740, %v5740
    %v5805 = vpack.c.bf16 %v5741, %v5741
    %v5806 = vpack.c.bf16 %v5742, %v5742
    %v5807 = vpack.c.bf16 %v5743, %v5743
    %v5808 = vpack.c.bf16 %v5744, %v5744
    %v5809 = vpack.c.bf16 %v5745, %v5745
    %v5874 = vunpack.c.l.b16 %v5746
    %v5875 = vunpack.c.l.b16 %v5747
    %v5876 = vunpack.c.l.b16 %v5748
    %v5877 = vunpack.c.l.b16 %v5749
    %v5878 = vunpack.c.l.b16 %v5750
    %v5879 = vunpack.c.l.b16 %v5751
    %v5880 = vunpack.c.l.b16 %v5752
    %v5881 = vunpack.c.l.b16 %v5753
    %v5882 = vunpack.c.l.b16 %v5754
    %v5883 = vunpack.c.l.b16 %v5755
    %v5884 = vunpack.c.l.b16 %v5756
    %v5885 = vunpack.c.l.b16 %v5757
    %v5886 = vunpack.c.l.b16 %v5758
    %v5887 = vunpack.c.l.b16 %v5759
    %v5888 = vunpack.c.l.b16 %v5760
    %v5889 = vunpack.c.l.b16 %v5761
    %v5890 = vunpack.c.l.b16 %v5762
    %v5891 = vunpack.c.l.b16 %v5763
    %v5892 = vunpack.c.l.b16 %v5764
    %v5893 = vunpack.c.l.b16 %v5765
    %v5894 = vunpack.c.l.b16 %v5766
    %v5895 = vunpack.c.l.b16 %v5767
    %v5896 = vunpack.c.l.b16 %v5768
    %v5897 = vunpack.c.l.b16 %v5769
    %v5898 = vunpack.c.l.b16 %v5770
    %v5899 = vunpack.c.l.b16 %v5771
    %v5900 = vunpack.c.l.b16 %v5772
    %v5901 = vunpack.c.l.b16 %v5773
    %v5902 = vunpack.c.l.b16 %v5774
    %v5903 = vunpack.c.l.b16 %v5775
    %v5904 = vunpack.c.l.b16 %v5776
    %v5905 = vunpack.c.l.b16 %v5777
    %v5906 = vunpack.c.l.b16 %v5778
    %v5907 = vunpack.c.l.b16 %v5779
    %v5908 = vunpack.c.l.b16 %v5780
    %v5909 = vunpack.c.l.b16 %v5781
    %v5910 = vunpack.c.l.b16 %v5782
    %v5911 = vunpack.c.l.b16 %v5783
    %v5912 = vunpack.c.l.b16 %v5784
    %v5913 = vunpack.c.l.b16 %v5785
    %v5914 = vunpack.c.l.b16 %v5786
    %v5915 = vunpack.c.l.b16 %v5787
    %v5916 = vunpack.c.l.b16 %v5788
    %v5917 = vunpack.c.l.b16 %v5789
    %v5918 = vunpack.c.l.b16 %v5790
    %v5919 = vunpack.c.l.b16 %v5791
    %v5920 = vunpack.c.l.b16 %v5792
    %v5921 = vunpack.c.l.b16 %v5793
    %v5922 = vunpack.c.l.b16 %v5794
    %v5923 = vunpack.c.l.b16 %v5795
    %v5924 = vunpack.c.l.b16 %v5796
    %v5925 = vunpack.c.l.b16 %v5797
    %v5926 = vunpack.c.l.b16 %v5798
    %v5927 = vunpack.c.l.b16 %v5799
    %v5928 = vunpack.c.l.b16 %v5800
    %v5929 = vunpack.c.l.b16 %v5801
    %v5930 = vunpack.c.l.b16 %v5802
    %v5931 = vunpack.c.l.b16 %v5803
    %v5932 = vunpack.c.l.b16 %v5804
    %v5933 = vunpack.c.l.b16 %v5805
    %v5934 = vunpack.c.l.b16 %v5806
    %v5935 = vunpack.c.l.b16 %v5807
    %v5936 = vunpack.c.l.b16 %v5808
    %v5937 = vunpack.c.l.b16 %v5809
    %v5938 = vpack.c.b16 %v5875, %v5874
    %v5939 = vpack.c.b16 %v5877, %v5876
    %v5940 = vpack.c.b16 %v5879, %v5878
    %v5941 = vpack.c.b16 %v5881, %v5880
    %v5942 = vpack.c.b16 %v5883, %v5882
    %v5943 = vpack.c.b16 %v5885, %v5884
    %v5944 = vpack.c.b16 %v5887, %v5886
    %v5945 = vpack.c.b16 %v5889, %v5888
    %v5946 = vpack.c.b16 %v5891, %v5890
    %v5947 = vpack.c.b16 %v5893, %v5892
    %v5948 = vpack.c.b16 %v5895, %v5894
    %v5949 = vpack.c.b16 %v5897, %v5896
    %v5950 = vpack.c.b16 %v5899, %v5898
    %v5951 = vpack.c.b16 %v5901, %v5900
    %v5952 = vpack.c.b16 %v5903, %v5902
    %v5953 = vpack.c.b16 %v5905, %v5904
    %v5954 = vpack.c.b16 %v5907, %v5906
    %v5955 = vpack.c.b16 %v5909, %v5908
    %v5956 = vpack.c.b16 %v5911, %v5910
    %v5957 = vpack.c.b16 %v5913, %v5912
    %v5958 = vpack.c.b16 %v5915, %v5914
    %v5959 = vpack.c.b16 %v5917, %v5916
    %v5960 = vpack.c.b16 %v5919, %v5918
    %v5961 = vpack.c.b16 %v5921, %v5920
    %v5962 = vpack.c.b16 %v5923, %v5922
    %v5963 = vpack.c.b16 %v5925, %v5924
    %v5964 = vpack.c.b16 %v5927, %v5926
    %v5965 = vpack.c.b16 %v5929, %v5928
    %v5966 = vpack.c.b16 %v5931, %v5930
    %v5967 = vpack.c.b16 %v5933, %v5932
    %v5968 = vpack.c.b16 %v5935, %v5934
    %v5969 = vpack.c.b16 %v5937, %v5936
    %6002 = vst [vmem:[#allocation11] sm:$0xff] %v5938
    %6003 = vst [vmem:[#allocation11 + $0x8] sm:$0xff] %v5939
    %6004 = vst [vmem:[#allocation11 + $0x10] sm:$0xff] %v5940
    %6005 = vst [vmem:[#allocation11 + $0x18] sm:$0xff] %v5941
    %6006 = vst [vmem:[#allocation11 + $0x20] sm:$0xff] %v5942
    %6007 = vst [vmem:[#allocation11 + $0x28] sm:$0xff] %v5943
    %6008 = vst [vmem:[#allocation11 + $0x30] sm:$0xff] %v5944
    %6009 = vst [vmem:[#allocation11 + $0x38] sm:$0xff] %v5945
    %6010 = vst [vmem:[#allocation11 + $0x40] sm:$0xff] %v5946
    %6011 = vst [vmem:[#allocation11 + $0x48] sm:$0xff] %v5947
    %6012 = vst [vmem:[#allocation11 + $0x50] sm:$0xff] %v5948
    %6013 = vst [vmem:[#allocation11 + $0x58] sm:$0xff] %v5949
    %6014 = vst [vmem:[#allocation11 + $0x60] sm:$0xff] %v5950
    %6015 = vst [vmem:[#allocation11 + $0x68] sm:$0xff] %v5951
    %6016 = vst [vmem:[#allocation11 + $0x70] sm:$0xff] %v5952
    %6017 = vst [vmem:[#allocation11 + $0x78] sm:$0xff] %v5953
    %6018 = vst [vmem:[#allocation11 + $0x80] sm:$0xff] %v5954
    %6019 = vst [vmem:[#allocation11 + $0x88] sm:$0xff] %v5955
    %6020 = vst [vmem:[#allocation11 + $0x90] sm:$0xff] %v5956
    %6021 = vst [vmem:[#allocation11 + $0x98] sm:$0xff] %v5957
    %6022 = vst [vmem:[#allocation11 + $0xa0] sm:$0xff] %v5958
    %6023 = vst [vmem:[#allocation11 + $0xa8] sm:$0xff] %v5959
    %6024 = vst [vmem:[#allocation11 + $0xb0] sm:$0xff] %v5960
    %6025 = vst [vmem:[#allocation11 + $0xb8] sm:$0xff] %v5961
    %6026 = vst [vmem:[#allocation11 + $0xc0] sm:$0xff] %v5962
    %6027 = vst [vmem:[#allocation11 + $0xc8] sm:$0xff] %v5963
    %6028 = vst [vmem:[#allocation11 + $0xd0] sm:$0xff] %v5964
    %6029 = vst [vmem:[#allocation11 + $0xd8] sm:$0xff] %v5965
    %6030 = vst [vmem:[#allocation11 + $0xe0] sm:$0xff] %v5966
    %6031 = vst [vmem:[#allocation11 + $0xe8] sm:$0xff] %v5967
    %6032 = vst [vmem:[#allocation11 + $0xf0] sm:$0xff] %v5968
    %6033 = vst [vmem:[#allocation11 + $0xf8] sm:$0xff] %v5969
    // Predicated region
    $region50: #{tpu_custom_call.1} parent=1 // pred_check
      _
    $region51: #{tpu_custom_call.1} parent=1 // pred_check_branch
      %6035 = sbr.rel (0) target = $region53
    $region52: #{tpu_custom_call.1} parent=1 // pred_region
      %s6037 = ssub.s32 4096, 4096
      %6038 = vsyncadd [#allocation7], %s6037
      %s6039 = sshll.u32 [#allocation11], 4
      %s6040 = int_to_ptr.vmem [resolvable:$true] %s6039
      %6045 = dma.vmem_to_hbm [thread:$0]  %s6040, 4096, %s9, [#allocation7], 256, 256, 16
    $region53: #{tpu_custom_call.1} parent=1 // pred_fallthru
      _
    // Predicated region
    $region54: #{tpu_custom_call.1} parent=1 // pred_check
      _
    $region55: #{tpu_custom_call.1} parent=1 // pred_check_branch
      %6047 = sbr.rel (0) target = $region57
    $region56: #{tpu_custom_call.1} parent=1 // pred_region
      %6048 = dma.done [#allocation7], 4096
    $region57: #{tpu_custom_call.1} parent=1 // pred_fallthru
      _
    %6049 = vsyncpa [#allocation6], 1
    %6050 = vsyncpa [#allocation9], 1
    %6051 = vsyncpa [#allocation7], 1

</llo_original>
